<compile_context>
chip_gen: v7x
topology: tpu7x:2x2x1
jax: 0.10.0
libtpu: 0.0.40
codegen_flags: <defaults>
</compile_context>

<pallas_src>
import jax
import jax.numpy as jnp
from jax.experimental import pallas as pl
from jax.experimental.pallas import tpu as pltpu

# Spatial sizes fixed by Linear(32*7*7, 128): MNIST 28x28 input.
H0 = W0 = 28
H1 = W1 = 14            # conv1 output
H2 = W2 = 7             # conv2 output
C1, C2, LATENT = 16, 32, 128
K1 = 9                  # conv1 im2col width (Cin=1 * 3*3)
K2 = C1 * 9             # conv2 im2col width (16 * 3*3) = 144
KF = C2 * H2 * W2       # FC input width = 1568
WP = 16                 # padded conv1 spatial size (14 + 2)


def _de(wp):
    """Padded-width column wp -> de-interleaved row offset inside an hp block.
    Evens 0,2,...,14 -> 0..7 ; odds 1,3,...,15 -> 8..15."""
    return wp // 2 if wp % 2 == 0 else 8 + wp // 2


# slab position k holds ow1 such that _de(ow1 + 1) == k + 1
_OW_ORDER = [1, 3, 5, 7, 9, 11, 13, 0, 2, 4, 6, 8, 10, 12]


# ------------------------------- fused kernel --------------------------------
def _encoder_kernel(p1_ref, w1_ref, b1_ref, w2_ref, b2_ref, wf_ref, bf_ref,
                    out_ref, h1p_ref, p2_ref, h2f_ref):
    # ---- conv1 + ReLU: 9 VPU multiply-accumulates (K=9 too small for MXU) ----
    acc1 = jnp.zeros((H1 * W1, C1), jnp.float32)
    for t in range(K1):
        acc1 = acc1 + p1_ref[:, t:t + 1] * w1_ref[t:t + 1, :]
    h1 = jnp.maximum(acc1 + b1_ref[...], 0.0)                     # (196, 16)

    # ---- scatter conv1 output into zero-padded, width-de-interleaved scratch -
    h1p_ref[...] = jnp.zeros_like(h1p_ref)
    for oh in range(H1):
        base = (oh + 1) * WP
        h1p_ref[base + 1:base + 1 + W1, :] = h1[oh * W1:(oh + 1) * W1, :]

    # ---- conv2 im2col inside the kernel: contiguous (7,16) slabs ------------
    for t in range(9):
        di, dj = t // 3, t % 3
        s = _de(dj)                       # start offset inside an hp block
        for oh2 in range(H2):
            hp = 2 * oh2 + di
            p2_ref[oh2 * W2:(oh2 + 1) * W2, t * C1:(t + 1) * C1] = (
                h1p_ref[hp * WP + s:hp * WP + s + W2, :])

    # ---- conv2 + ReLU: one MXU matmul, bf16 operands, f32 accumulation ------
    h2 = jnp.dot(p2_ref[...].astype(jnp.bfloat16), w2_ref[...],
                 preferred_element_type=jnp.float32)
    h2 = jnp.maximum(h2 + b2_ref[...], 0.0)                       # (49, 32)

    # ---- flatten (h, w, c) into one lane-dense row for the FC ----------------
    for r in range(H2 * W2):
        h2f_ref[0:1, r * C2:(r + 1) * C2] = h2[r:r + 1, :]

    # ---- FC: (1,1568) @ (1568,128) on the MXU --------------------------------
    y = jnp.dot(h2f_ref[...].astype(jnp.bfloat16), wf_ref[...],
                preferred_element_type=jnp.float32)
    out_ref[...] = y + bf_ref[...]


# ------------------------------- JAX wrapper ----------------------------------
def _conv1_im2col(x):
    """x: (N,1,28,28) -> conv1 patches (N, 196, 9), f32.

    Rows ordered (oh1, de-interleaved ow1) so the in-kernel conv2 im2col only
    needs contiguous slices.  Columns ordered t = kh*3 + kw, matching w1m."""
    N = x.shape[0]
    xp = jnp.pad(x, ((0, 0), (0, 0), (1, 1), (1, 1)))
    taps = []
    for di in range(3):
        for dj in range(3):
            taps.append(xp[:, 0, di:di + 2 * H1:2, dj:dj + 2 * W1:2])   # (N,14,14)
    p = jnp.stack(taps, axis=-1)                       # (N, 14, 14, 9)
    p = jnp.take(p, jnp.array(_OW_ORDER), axis=2)      # de-interleave ow1
    return p.reshape(N, H1 * W1, K1).astype(jnp.float32)


def fold_params(p):
    """One-time folding of PyTorch-layout weights into kernel layout."""
    w1m = p["w1"].reshape(C1, K1).T.astype(jnp.float32)                       # (9, 16)
    w2m = p["w2"].transpose(2, 3, 1, 0).reshape(K2, C2).astype(jnp.bfloat16)  # (144, 32), rows=(kh,kw,cin)
    # FC weight: pre-transposed, rows permuted from torch's (c,h,w) flatten to
    # our (h,w,c) flatten so no activation reordering is needed at runtime.
    wf = (p["w_fc"].reshape(LATENT, C2, H2, W2)
          .transpose(2, 3, 1, 0).reshape(KF, LATENT).astype(jnp.bfloat16))    # (1568, 128)
    return {
        "w1m": w1m, "b1": p["b1"].reshape(1, C1).astype(jnp.float32),
        "w2m": w2m, "b2": p["b2"].reshape(1, C2).astype(jnp.float32),
        "wf": wf, "bf": p["b_fc"].reshape(1, LATENT).astype(jnp.float32),
    }


@jax.jit
def encoder_forward(fp, x):
    # x: (N, 1, 28, 28) -> (N, 128)
    N = x.shape[0]
    p1 = _conv1_im2col(x)
    out = pl.pallas_call(
        _encoder_kernel,
        out_shape=jax.ShapeDtypeStruct((N, 1, LATENT), jnp.float32),
        grid=(N,),
        in_specs=[
            pl.BlockSpec((None, H1 * W1, K1), lambda b: (b, 0, 0)),  # per-example conv1 patches
            pl.BlockSpec((K1, C1), lambda b: (0, 0)),                # w1m
            pl.BlockSpec((1, C1), lambda b: (0, 0)),                 # b1
            pl.BlockSpec((K2, C2), lambda b: (0, 0)),                # w2m (bf16)
            pl.BlockSpec((1, C2), lambda b: (0, 0)),                 # b2
            pl.BlockSpec((KF, LATENT), lambda b: (0, 0)),            # wf (bf16)
            pl.BlockSpec((1, LATENT), lambda b: (0, 0)),             # b_fc
        ],
        out_specs=pl.BlockSpec((None, 1, LATENT), lambda b: (b, 0, 0)),
        scratch_shapes=[
            pltpu.VMEM((WP * WP, C1), jnp.float32),   # padded, de-interleaved conv1 output
            pltpu.VMEM((H2 * W2, K2), jnp.float32),   # conv2 im2col patches
            pltpu.VMEM((1, KF), jnp.float32),         # flattened conv2 output (FC input)
        ],
        compiler_params=pltpu.CompilerParams(
            dimension_semantics=("parallel",),        # shard batch across v7x's 2 TCs
            vmem_limit_bytes=32 * 1024 * 1024,
        ),
    )(p1, fp["w1m"], fp["b1"], fp["w2m"], fp["b2"], fp["wf"], fp["bf"])
    return out.reshape(N, LATENT)


# ------------------------- init + plain-JAX reference -------------------------
def init_params(key, latent_dim=128):
    k1, k2, k3, k4, k5, k6 = jax.random.split(key, 6)
    return {
        "w1": jax.random.normal(k1, (C1, 1, 3, 3), jnp.float32) * 0.1,
        "b1": jax.random.normal(k2, (C1,), jnp.float32) * 0.01,
        "w2": jax.random.normal(k3, (C2, C1, 3, 3), jnp.float32) * 0.1,
        "b2": jax.random.normal(k4, (C2,), jnp.float32) * 0.01,
        "w_fc": jax.random.normal(k5, (latent_dim, C2 * H2 * W2), jnp.float32) * 0.05,
        "b_fc": jax.random.normal(k6, (latent_dim,), jnp.float32) * 0.01,
    }


def encoder_reference(p, x):
    """Pure-JAX reference matching the PyTorch Encoder forward (f32)."""
    h1 = jax.lax.conv_general_dilated(x, p["w1"], (2, 2), ((1, 1), (1, 1)),
                                      dimension_numbers=("NCHW", "OIHW", "NCHW"))
    h1 = jnp.maximum(h1 + p["b1"].reshape(1, C1, 1, 1), 0.0)
    h2 = jax.lax.conv_general_dilated(h1, p["w2"], (2, 2), ((1, 1), (1, 1)),
                                      dimension_numbers=("NCHW", "OIHW", "NCHW"))
    h2 = jnp.maximum(h2 + p["b2"].reshape(1, C2, 1, 1), 0.0)
    flat = h2.reshape(x.shape[0], -1)        # NCHW (c,h,w) flatten == nn.Flatten
    return flat @ p["w_fc"].T + p["b_fc"]


if __name__ == "__main__":
    key = jax.random.PRNGKey(0)
    k_x, k_p = jax.random.split(key)
    # Linear(32*7*7, 128) fixes the spatial size to 28x28 (MNIST); small batch.
    x = jax.random.normal(k_x, (2, 1, 28, 28), jnp.float32)
    torch_params = init_params(k_p, latent_dim=LATENT)
    kernel_params = fold_params(torch_params)     # one-time weight folding

    out = encoder_forward(kernel_params, x)
    jax.block_until_ready(out)
    assert out.shape == (2, LATENT), out.shape

    ref = encoder_reference(torch_params, x)
    err = float(jnp.max(jnp.abs(out - ref)))
    assert jnp.allclose(out, ref, rtol=3e-2, atol=3e-2), f"max abs err {err}"
    print("KERNEL_OK")
</pallas_src>

<mosaic_0001>
module attributes {stable_mosaic.version = 11 : i64} {
  func.func @_encoder_kernel(%arg0: i32, %arg1: memref<1x196x9xf32, #tpu.memory_space<vmem>>, %arg2: memref<9x16xf32, #tpu.memory_space<vmem>>, %arg3: memref<1x16xf32, #tpu.memory_space<vmem>>, %arg4: memref<144x32xbf16, #tpu.memory_space<vmem>>, %arg5: memref<1x32xf32, #tpu.memory_space<vmem>>, %arg6: memref<1568x128xbf16, #tpu.memory_space<vmem>>, %arg7: memref<1x128xf32, #tpu.memory_space<vmem>>, %arg8: memref<1x1x128xf32, #tpu.memory_space<vmem>>, %arg9: memref<256x16xf32, #tpu.memory_space<vmem>>, %arg10: memref<49x144xf32, #tpu.memory_space<vmem>>, %arg11: memref<1x1568xf32, #tpu.memory_space<vmem>>) attributes {dimension_semantics = [#tpu.dimension_semantics<parallel>], iteration_bounds = array<i64: 2>, scalar_prefetch = 0 : i64, scratch_operands = 3 : i64, tpu.core_type = #tpu.core_type<tc>, window_params = [{transform_indices = @transform_0, window_bounds = array<i64: 1, 196, 9>}, {pipeline_mode = #tpu.pipeline_mode<synchronous>, transform_indices = @transform_1, window_bounds = array<i64: 9, 16>}, {pipeline_mode = #tpu.pipeline_mode<synchronous>, transform_indices = @transform_2, window_bounds = array<i64: 1, 16>}, {pipeline_mode = #tpu.pipeline_mode<synchronous>, transform_indices = @transform_3, window_bounds = array<i64: 144, 32>}, {pipeline_mode = #tpu.pipeline_mode<synchronous>, transform_indices = @transform_4, window_bounds = array<i64: 1, 32>}, {pipeline_mode = #tpu.pipeline_mode<synchronous>, transform_indices = @transform_5, window_bounds = array<i64: 1568, 128>}, {pipeline_mode = #tpu.pipeline_mode<synchronous>, transform_indices = @transform_6, window_bounds = array<i64: 1, 128>}, {transform_indices = @transform_7, window_bounds = array<i64: 1, 1, 128>}]} {
    %cst = arith.constant 0.000000e+00 : f32
    %0 = vector.broadcast %cst : f32 to vector<196x16xf32>
    %c0 = arith.constant 0 : index
    %c0_0 = arith.constant 0 : index
    %c0_1 = arith.constant 0 : index
    %1 = vector.load %arg1[%c0, %c0_0, %c0_1] : memref<1x196x9xf32, #tpu.memory_space<vmem>>, vector<1x196x1xf32>
    %2 = vector.shape_cast %1 : vector<1x196x1xf32> to vector<196x1xf32>
    %c0_2 = arith.constant 0 : index
    %c0_3 = arith.constant 0 : index
    %3 = vector.load %arg2[%c0_2, %c0_3] : memref<9x16xf32, #tpu.memory_space<vmem>>, vector<1x16xf32>
    %4 = vector.broadcast %2 : vector<196x1xf32> to vector<196x16xf32>
    %5 = vector.broadcast %3 : vector<1x16xf32> to vector<196x16xf32>
    %6 = arith.mulf %4, %5 : vector<196x16xf32>
    %7 = arith.addf %0, %6 : vector<196x16xf32>
    %c0_4 = arith.constant 0 : index
    %c0_5 = arith.constant 0 : index
    %c1 = arith.constant 1 : index
    %8 = vector.load %arg1[%c0_4, %c0_5, %c1] : memref<1x196x9xf32, #tpu.memory_space<vmem>>, vector<1x196x1xf32>
    %9 = vector.shape_cast %8 : vector<1x196x1xf32> to vector<196x1xf32>
    %c1_6 = arith.constant 1 : index
    %c0_7 = arith.constant 0 : index
    %10 = vector.load %arg2[%c1_6, %c0_7] : memref<9x16xf32, #tpu.memory_space<vmem>>, vector<1x16xf32>
    %11 = vector.broadcast %9 : vector<196x1xf32> to vector<196x16xf32>
    %12 = vector.broadcast %10 : vector<1x16xf32> to vector<196x16xf32>
    %13 = arith.mulf %11, %12 : vector<196x16xf32>
    %14 = arith.addf %7, %13 : vector<196x16xf32>
    %c0_8 = arith.constant 0 : index
    %c0_9 = arith.constant 0 : index
    %c2 = arith.constant 2 : index
    %15 = vector.load %arg1[%c0_8, %c0_9, %c2] : memref<1x196x9xf32, #tpu.memory_space<vmem>>, vector<1x196x1xf32>
    %16 = vector.shape_cast %15 : vector<1x196x1xf32> to vector<196x1xf32>
    %c2_10 = arith.constant 2 : index
    %c0_11 = arith.constant 0 : index
    %17 = vector.load %arg2[%c2_10, %c0_11] : memref<9x16xf32, #tpu.memory_space<vmem>>, vector<1x16xf32>
    %18 = vector.broadcast %16 : vector<196x1xf32> to vector<196x16xf32>
    %19 = vector.broadcast %17 : vector<1x16xf32> to vector<196x16xf32>
    %20 = arith.mulf %18, %19 : vector<196x16xf32>
    %21 = arith.addf %14, %20 : vector<196x16xf32>
    %c0_12 = arith.constant 0 : index
    %c0_13 = arith.constant 0 : index
    %c3 = arith.constant 3 : index
    %22 = vector.load %arg1[%c0_12, %c0_13, %c3] : memref<1x196x9xf32, #tpu.memory_space<vmem>>, vector<1x196x1xf32>
    %23 = vector.shape_cast %22 : vector<1x196x1xf32> to vector<196x1xf32>
    %c3_14 = arith.constant 3 : index
    %c0_15 = arith.constant 0 : index
    %24 = vector.load %arg2[%c3_14, %c0_15] : memref<9x16xf32, #tpu.memory_space<vmem>>, vector<1x16xf32>
    %25 = vector.broadcast %23 : vector<196x1xf32> to vector<196x16xf32>
    %26 = vector.broadcast %24 : vector<1x16xf32> to vector<196x16xf32>
    %27 = arith.mulf %25, %26 : vector<196x16xf32>
    %28 = arith.addf %21, %27 : vector<196x16xf32>
    %c0_16 = arith.constant 0 : index
    %c0_17 = arith.constant 0 : index
    %c4 = arith.constant 4 : index
    %29 = vector.load %arg1[%c0_16, %c0_17, %c4] : memref<1x196x9xf32, #tpu.memory_space<vmem>>, vector<1x196x1xf32>
    %30 = vector.shape_cast %29 : vector<1x196x1xf32> to vector<196x1xf32>
    %c4_18 = arith.constant 4 : index
    %c0_19 = arith.constant 0 : index
    %31 = vector.load %arg2[%c4_18, %c0_19] : memref<9x16xf32, #tpu.memory_space<vmem>>, vector<1x16xf32>
    %32 = vector.broadcast %30 : vector<196x1xf32> to vector<196x16xf32>
    %33 = vector.broadcast %31 : vector<1x16xf32> to vector<196x16xf32>
    %34 = arith.mulf %32, %33 : vector<196x16xf32>
    %35 = arith.addf %28, %34 : vector<196x16xf32>
    %c0_20 = arith.constant 0 : index
    %c0_21 = arith.constant 0 : index
    %c5 = arith.constant 5 : index
    %36 = vector.load %arg1[%c0_20, %c0_21, %c5] : memref<1x196x9xf32, #tpu.memory_space<vmem>>, vector<1x196x1xf32>
    %37 = vector.shape_cast %36 : vector<1x196x1xf32> to vector<196x1xf32>
    %c5_22 = arith.constant 5 : index
    %c0_23 = arith.constant 0 : index
    %38 = vector.load %arg2[%c5_22, %c0_23] : memref<9x16xf32, #tpu.memory_space<vmem>>, vector<1x16xf32>
    %39 = vector.broadcast %37 : vector<196x1xf32> to vector<196x16xf32>
    %40 = vector.broadcast %38 : vector<1x16xf32> to vector<196x16xf32>
    %41 = arith.mulf %39, %40 : vector<196x16xf32>
    %42 = arith.addf %35, %41 : vector<196x16xf32>
    %c0_24 = arith.constant 0 : index
    %c0_25 = arith.constant 0 : index
    %c6 = arith.constant 6 : index
    %43 = vector.load %arg1[%c0_24, %c0_25, %c6] : memref<1x196x9xf32, #tpu.memory_space<vmem>>, vector<1x196x1xf32>
    %44 = vector.shape_cast %43 : vector<1x196x1xf32> to vector<196x1xf32>
    %c6_26 = arith.constant 6 : index
    %c0_27 = arith.constant 0 : index
    %45 = vector.load %arg2[%c6_26, %c0_27] : memref<9x16xf32, #tpu.memory_space<vmem>>, vector<1x16xf32>
    %46 = vector.broadcast %44 : vector<196x1xf32> to vector<196x16xf32>
    %47 = vector.broadcast %45 : vector<1x16xf32> to vector<196x16xf32>
    %48 = arith.mulf %46, %47 : vector<196x16xf32>
    %49 = arith.addf %42, %48 : vector<196x16xf32>
    %c0_28 = arith.constant 0 : index
    %c0_29 = arith.constant 0 : index
    %c7 = arith.constant 7 : index
    %50 = vector.load %arg1[%c0_28, %c0_29, %c7] : memref<1x196x9xf32, #tpu.memory_space<vmem>>, vector<1x196x1xf32>
    %51 = vector.shape_cast %50 : vector<1x196x1xf32> to vector<196x1xf32>
    %c7_30 = arith.constant 7 : index
    %c0_31 = arith.constant 0 : index
    %52 = vector.load %arg2[%c7_30, %c0_31] : memref<9x16xf32, #tpu.memory_space<vmem>>, vector<1x16xf32>
    %53 = vector.broadcast %51 : vector<196x1xf32> to vector<196x16xf32>
    %54 = vector.broadcast %52 : vector<1x16xf32> to vector<196x16xf32>
    %55 = arith.mulf %53, %54 : vector<196x16xf32>
    %56 = arith.addf %49, %55 : vector<196x16xf32>
    %c0_32 = arith.constant 0 : index
    %c0_33 = arith.constant 0 : index
    %c8 = arith.constant 8 : index
    %57 = vector.load %arg1[%c0_32, %c0_33, %c8] : memref<1x196x9xf32, #tpu.memory_space<vmem>>, vector<1x196x1xf32>
    %58 = vector.shape_cast %57 : vector<1x196x1xf32> to vector<196x1xf32>
    %c8_34 = arith.constant 8 : index
    %c0_35 = arith.constant 0 : index
    %59 = vector.load %arg2[%c8_34, %c0_35] : memref<9x16xf32, #tpu.memory_space<vmem>>, vector<1x16xf32>
    %60 = vector.broadcast %58 : vector<196x1xf32> to vector<196x16xf32>
    %61 = vector.broadcast %59 : vector<1x16xf32> to vector<196x16xf32>
    %62 = arith.mulf %60, %61 : vector<196x16xf32>
    %63 = arith.addf %56, %62 : vector<196x16xf32>
    %c0_36 = arith.constant 0 : index
    %c0_37 = arith.constant 0 : index
    %64 = vector.load %arg3[%c0_36, %c0_37] : memref<1x16xf32, #tpu.memory_space<vmem>>, vector<1x16xf32>
    %65 = vector.broadcast %64 : vector<1x16xf32> to vector<196x16xf32>
    %66 = arith.addf %63, %65 : vector<196x16xf32>
    %cst_38 = arith.constant 0.000000e+00 : f32
    %67 = vector.broadcast %cst_38 : f32 to vector<196x16xf32>
    %68 = arith.maximumf %66, %67 : vector<196x16xf32>
    %cst_39 = arith.constant 0.000000e+00 : f32
    %69 = vector.broadcast %cst_39 : f32 to vector<256x16xf32>
    %c0_40 = arith.constant 0 : index
    %c0_41 = arith.constant 0 : index
    %70 = vector.load %arg9[%c0_40, %c0_41] : memref<256x16xf32, #tpu.memory_space<vmem>>, vector<256x16xf32>
    tpu.vector_store %arg9[%c0_40, %c0_41], %69 {strides = array<i32>} : memref<256x16xf32, #tpu.memory_space<vmem>>, vector<256x16xf32>,
    %71 = vector.extract_strided_slice %68 {offsets = [0, 0], sizes = [14, 16], strides = [1, 1]} : vector<196x16xf32> to vector<14x16xf32>
    %c17 = arith.constant 17 : index
    %c0_42 = arith.constant 0 : index
    %72 = vector.load %arg9[%c17, %c0_42] : memref<256x16xf32, #tpu.memory_space<vmem>>, vector<14x16xf32>
    tpu.vector_store %arg9[%c17, %c0_42], %71 {strides = array<i32>} : memref<256x16xf32, #tpu.memory_space<vmem>>, vector<14x16xf32>,
    %73 = vector.extract_strided_slice %68 {offsets = [14, 0], sizes = [14, 16], strides = [1, 1]} : vector<196x16xf32> to vector<14x16xf32>
    %c33 = arith.constant 33 : index
    %c0_43 = arith.constant 0 : index
    %74 = vector.load %arg9[%c33, %c0_43] : memref<256x16xf32, #tpu.memory_space<vmem>>, vector<14x16xf32>
    tpu.vector_store %arg9[%c33, %c0_43], %73 {strides = array<i32>} : memref<256x16xf32, #tpu.memory_space<vmem>>, vector<14x16xf32>,
    %75 = vector.extract_strided_slice %68 {offsets = [28, 0], sizes = [14, 16], strides = [1, 1]} : vector<196x16xf32> to vector<14x16xf32>
    %c49 = arith.constant 49 : index
    %c0_44 = arith.constant 0 : index
    %76 = vector.load %arg9[%c49, %c0_44] : memref<256x16xf32, #tpu.memory_space<vmem>>, vector<14x16xf32>
    tpu.vector_store %arg9[%c49, %c0_44], %75 {strides = array<i32>} : memref<256x16xf32, #tpu.memory_space<vmem>>, vector<14x16xf32>,
    %77 = vector.extract_strided_slice %68 {offsets = [42, 0], sizes = [14, 16], strides = [1, 1]} : vector<196x16xf32> to vector<14x16xf32>
    %c65 = arith.constant 65 : index
    %c0_45 = arith.constant 0 : index
    %78 = vector.load %arg9[%c65, %c0_45] : memref<256x16xf32, #tpu.memory_space<vmem>>, vector<14x16xf32>
    tpu.vector_store %arg9[%c65, %c0_45], %77 {strides = array<i32>} : memref<256x16xf32, #tpu.memory_space<vmem>>, vector<14x16xf32>,
    %79 = vector.extract_strided_slice %68 {offsets = [56, 0], sizes = [14, 16], strides = [1, 1]} : vector<196x16xf32> to vector<14x16xf32>
    %c81 = arith.constant 81 : index
    %c0_46 = arith.constant 0 : index
    %80 = vector.load %arg9[%c81, %c0_46] : memref<256x16xf32, #tpu.memory_space<vmem>>, vector<14x16xf32>
    tpu.vector_store %arg9[%c81, %c0_46], %79 {strides = array<i32>} : memref<256x16xf32, #tpu.memory_space<vmem>>, vector<14x16xf32>,
    %81 = vector.extract_strided_slice %68 {offsets = [70, 0], sizes = [14, 16], strides = [1, 1]} : vector<196x16xf32> to vector<14x16xf32>
    %c97 = arith.constant 97 : index
    %c0_47 = arith.constant 0 : index
    %82 = vector.load %arg9[%c97, %c0_47] : memref<256x16xf32, #tpu.memory_space<vmem>>, vector<14x16xf32>
    tpu.vector_store %arg9[%c97, %c0_47], %81 {strides = array<i32>} : memref<256x16xf32, #tpu.memory_space<vmem>>, vector<14x16xf32>,
    %83 = vector.extract_strided_slice %68 {offsets = [84, 0], sizes = [14, 16], strides = [1, 1]} : vector<196x16xf32> to vector<14x16xf32>
    %c113 = arith.constant 113 : index
    %c0_48 = arith.constant 0 : index
    %84 = vector.load %arg9[%c113, %c0_48] : memref<256x16xf32, #tpu.memory_space<vmem>>, vector<14x16xf32>
    tpu.vector_store %arg9[%c113, %c0_48], %83 {strides = array<i32>} : memref<256x16xf32, #tpu.memory_space<vmem>>, vector<14x16xf32>,
    %85 = vector.extract_strided_slice %68 {offsets = [98, 0], sizes = [14, 16], strides = [1, 1]} : vector<196x16xf32> to vector<14x16xf32>
    %c129 = arith.constant 129 : index
    %c0_49 = arith.constant 0 : index
    %86 = vector.load %arg9[%c129, %c0_49] : memref<256x16xf32, #tpu.memory_space<vmem>>, vector<14x16xf32>
    tpu.vector_store %arg9[%c129, %c0_49], %85 {strides = array<i32>} : memref<256x16xf32, #tpu.memory_space<vmem>>, vector<14x16xf32>,
    %87 = vector.extract_strided_slice %68 {offsets = [112, 0], sizes = [14, 16], strides = [1, 1]} : vector<196x16xf32> to vector<14x16xf32>
    %c145 = arith.constant 145 : index
    %c0_50 = arith.constant 0 : index
    %88 = vector.load %arg9[%c145, %c0_50] : memref<256x16xf32, #tpu.memory_space<vmem>>, vector<14x16xf32>
    tpu.vector_store %arg9[%c145, %c0_50], %87 {strides = array<i32>} : memref<256x16xf32, #tpu.memory_space<vmem>>, vector<14x16xf32>,
    %89 = vector.extract_strided_slice %68 {offsets = [126, 0], sizes = [14, 16], strides = [1, 1]} : vector<196x16xf32> to vector<14x16xf32>
    %c161 = arith.constant 161 : index
    %c0_51 = arith.constant 0 : index
    %90 = vector.load %arg9[%c161, %c0_51] : memref<256x16xf32, #tpu.memory_space<vmem>>, vector<14x16xf32>
    tpu.vector_store %arg9[%c161, %c0_51], %89 {strides = array<i32>} : memref<256x16xf32, #tpu.memory_space<vmem>>, vector<14x16xf32>,
    %91 = vector.extract_strided_slice %68 {offsets = [140, 0], sizes = [14, 16], strides = [1, 1]} : vector<196x16xf32> to vector<14x16xf32>
    %c177 = arith.constant 177 : index
    %c0_52 = arith.constant 0 : index
    %92 = vector.load %arg9[%c177, %c0_52] : memref<256x16xf32, #tpu.memory_space<vmem>>, vector<14x16xf32>
    tpu.vector_store %arg9[%c177, %c0_52], %91 {strides = array<i32>} : memref<256x16xf32, #tpu.memory_space<vmem>>, vector<14x16xf32>,
    %93 = vector.extract_strided_slice %68 {offsets = [154, 0], sizes = [14, 16], strides = [1, 1]} : vector<196x16xf32> to vector<14x16xf32>
    %c193 = arith.constant 193 : index
    %c0_53 = arith.constant 0 : index
    %94 = vector.load %arg9[%c193, %c0_53] : memref<256x16xf32, #tpu.memory_space<vmem>>, vector<14x16xf32>
    tpu.vector_store %arg9[%c193, %c0_53], %93 {strides = array<i32>} : memref<256x16xf32, #tpu.memory_space<vmem>>, vector<14x16xf32>,
    %95 = vector.extract_strided_slice %68 {offsets = [168, 0], sizes = [14, 16], strides = [1, 1]} : vector<196x16xf32> to vector<14x16xf32>
    %c209 = arith.constant 209 : index
    %c0_54 = arith.constant 0 : index
    %96 = vector.load %arg9[%c209, %c0_54] : memref<256x16xf32, #tpu.memory_space<vmem>>, vector<14x16xf32>
    tpu.vector_store %arg9[%c209, %c0_54], %95 {strides = array<i32>} : memref<256x16xf32, #tpu.memory_space<vmem>>, vector<14x16xf32>,
    %97 = vector.extract_strided_slice %68 {offsets = [182, 0], sizes = [14, 16], strides = [1, 1]} : vector<196x16xf32> to vector<14x16xf32>
    %c225 = arith.constant 225 : index
    %c0_55 = arith.constant 0 : index
    %98 = vector.load %arg9[%c225, %c0_55] : memref<256x16xf32, #tpu.memory_space<vmem>>, vector<14x16xf32>
    tpu.vector_store %arg9[%c225, %c0_55], %97 {strides = array<i32>} : memref<256x16xf32, #tpu.memory_space<vmem>>, vector<14x16xf32>,
    %c0_56 = arith.constant 0 : index
    %c0_57 = arith.constant 0 : index
    %99 = vector.load %arg9[%c0_56, %c0_57] : memref<256x16xf32, #tpu.memory_space<vmem>>, vector<7x16xf32>
    %c0_58 = arith.constant 0 : index
    %c0_59 = arith.constant 0 : index
    %100 = vector.load %arg10[%c0_58, %c0_59] : memref<49x144xf32, #tpu.memory_space<vmem>>, vector<7x16xf32>
    tpu.vector_store %arg10[%c0_58, %c0_59], %99 {strides = array<i32>} : memref<49x144xf32, #tpu.memory_space<vmem>>, vector<7x16xf32>,
    %c32 = arith.constant 32 : index
    %c0_60 = arith.constant 0 : index
    %101 = vector.load %arg9[%c32, %c0_60] : memref<256x16xf32, #tpu.memory_space<vmem>>, vector<7x16xf32>
    %c7_61 = arith.constant 7 : index
    %c0_62 = arith.constant 0 : index
    %102 = vector.load %arg10[%c7_61, %c0_62] : memref<49x144xf32, #tpu.memory_space<vmem>>, vector<7x16xf32>
    tpu.vector_store %arg10[%c7_61, %c0_62], %101 {strides = array<i32>} : memref<49x144xf32, #tpu.memory_space<vmem>>, vector<7x16xf32>,
    %c64 = arith.constant 64 : index
    %c0_63 = arith.constant 0 : index
    %103 = vector.load %arg9[%c64, %c0_63] : memref<256x16xf32, #tpu.memory_space<vmem>>, vector<7x16xf32>
    %c14 = arith.constant 14 : index
    %c0_64 = arith.constant 0 : index
    %104 = vector.load %arg10[%c14, %c0_64] : memref<49x144xf32, #tpu.memory_space<vmem>>, vector<7x16xf32>
    tpu.vector_store %arg10[%c14, %c0_64], %103 {strides = array<i32>} : memref<49x144xf32, #tpu.memory_space<vmem>>, vector<7x16xf32>,
    %c96 = arith.constant 96 : index
    %c0_65 = arith.constant 0 : index
    %105 = vector.load %arg9[%c96, %c0_65] : memref<256x16xf32, #tpu.memory_space<vmem>>, vector<7x16xf32>
    %c21 = arith.constant 21 : index
    %c0_66 = arith.constant 0 : index
    %106 = vector.load %arg10[%c21, %c0_66] : memref<49x144xf32, #tpu.memory_space<vmem>>, vector<7x16xf32>
    tpu.vector_store %arg10[%c21, %c0_66], %105 {strides = array<i32>} : memref<49x144xf32, #tpu.memory_space<vmem>>, vector<7x16xf32>,
    %c128 = arith.constant 128 : index
    %c0_67 = arith.constant 0 : index
    %107 = vector.load %arg9[%c128, %c0_67] : memref<256x16xf32, #tpu.memory_space<vmem>>, vector<7x16xf32>
    %c28 = arith.constant 28 : index
    %c0_68 = arith.constant 0 : index
    %108 = vector.load %arg10[%c28, %c0_68] : memref<49x144xf32, #tpu.memory_space<vmem>>, vector<7x16xf32>
    tpu.vector_store %arg10[%c28, %c0_68], %107 {strides = array<i32>} : memref<49x144xf32, #tpu.memory_space<vmem>>, vector<7x16xf32>,
    %c160 = arith.constant 160 : index
    %c0_69 = arith.constant 0 : index
    %109 = vector.load %arg9[%c160, %c0_69] : memref<256x16xf32, #tpu.memory_space<vmem>>, vector<7x16xf32>
    %c35 = arith.constant 35 : index
    %c0_70 = arith.constant 0 : index
    %110 = vector.load %arg10[%c35, %c0_70] : memref<49x144xf32, #tpu.memory_space<vmem>>, vector<7x16xf32>
    tpu.vector_store %arg10[%c35, %c0_70], %109 {strides = array<i32>} : memref<49x144xf32, #tpu.memory_space<vmem>>, vector<7x16xf32>,
    %c192 = arith.constant 192 : index
    %c0_71 = arith.constant 0 : index
    %111 = vector.load %arg9[%c192, %c0_71] : memref<256x16xf32, #tpu.memory_space<vmem>>, vector<7x16xf32>
    %c42 = arith.constant 42 : index
    %c0_72 = arith.constant 0 : index
    %112 = vector.load %arg10[%c42, %c0_72] : memref<49x144xf32, #tpu.memory_space<vmem>>, vector<7x16xf32>
    tpu.vector_store %arg10[%c42, %c0_72], %111 {strides = array<i32>} : memref<49x144xf32, #tpu.memory_space<vmem>>, vector<7x16xf32>,
    %c8_73 = arith.constant 8 : index
    %c0_74 = arith.constant 0 : index
    %113 = vector.load %arg9[%c8_73, %c0_74] : memref<256x16xf32, #tpu.memory_space<vmem>>, vector<7x16xf32>
    %c0_75 = arith.constant 0 : index
    %c16 = arith.constant 16 : index
    %114 = vector.load %arg10[%c0_75, %c16] : memref<49x144xf32, #tpu.memory_space<vmem>>, vector<7x16xf32>
    tpu.vector_store %arg10[%c0_75, %c16], %113 {strides = array<i32>} : memref<49x144xf32, #tpu.memory_space<vmem>>, vector<7x16xf32>,
    %c40 = arith.constant 40 : index
    %c0_76 = arith.constant 0 : index
    %115 = vector.load %arg9[%c40, %c0_76] : memref<256x16xf32, #tpu.memory_space<vmem>>, vector<7x16xf32>
    %c7_77 = arith.constant 7 : index
    %c16_78 = arith.constant 16 : index
    %116 = vector.load %arg10[%c7_77, %c16_78] : memref<49x144xf32, #tpu.memory_space<vmem>>, vector<7x16xf32>
    tpu.vector_store %arg10[%c7_77, %c16_78], %115 {strides = array<i32>} : memref<49x144xf32, #tpu.memory_space<vmem>>, vector<7x16xf32>,
    %c72 = arith.constant 72 : index
    %c0_79 = arith.constant 0 : index
    %117 = vector.load %arg9[%c72, %c0_79] : memref<256x16xf32, #tpu.memory_space<vmem>>, vector<7x16xf32>
    %c14_80 = arith.constant 14 : index
    %c16_81 = arith.constant 16 : index
    %118 = vector.load %arg10[%c14_80, %c16_81] : memref<49x144xf32, #tpu.memory_space<vmem>>, vector<7x16xf32>
    tpu.vector_store %arg10[%c14_80, %c16_81], %117 {strides = array<i32>} : memref<49x144xf32, #tpu.memory_space<vmem>>, vector<7x16xf32>,
    %c104 = arith.constant 104 : index
    %c0_82 = arith.constant 0 : index
    %119 = vector.load %arg9[%c104, %c0_82] : memref<256x16xf32, #tpu.memory_space<vmem>>, vector<7x16xf32>
    %c21_83 = arith.constant 21 : index
    %c16_84 = arith.constant 16 : index
    %120 = vector.load %arg10[%c21_83, %c16_84] : memref<49x144xf32, #tpu.memory_space<vmem>>, vector<7x16xf32>
    tpu.vector_store %arg10[%c21_83, %c16_84], %119 {strides = array<i32>} : memref<49x144xf32, #tpu.memory_space<vmem>>, vector<7x16xf32>,
    %c136 = arith.constant 136 : index
    %c0_85 = arith.constant 0 : index
    %121 = vector.load %arg9[%c136, %c0_85] : memref<256x16xf32, #tpu.memory_space<vmem>>, vector<7x16xf32>
    %c28_86 = arith.constant 28 : index
    %c16_87 = arith.constant 16 : index
    %122 = vector.load %arg10[%c28_86, %c16_87] : memref<49x144xf32, #tpu.memory_space<vmem>>, vector<7x16xf32>
    tpu.vector_store %arg10[%c28_86, %c16_87], %121 {strides = array<i32>} : memref<49x144xf32, #tpu.memory_space<vmem>>, vector<7x16xf32>,
    %c168 = arith.constant 168 : index
    %c0_88 = arith.constant 0 : index
    %123 = vector.load %arg9[%c168, %c0_88] : memref<256x16xf32, #tpu.memory_space<vmem>>, vector<7x16xf32>
    %c35_89 = arith.constant 35 : index
    %c16_90 = arith.constant 16 : index
    %124 = vector.load %arg10[%c35_89, %c16_90] : memref<49x144xf32, #tpu.memory_space<vmem>>, vector<7x16xf32>
    tpu.vector_store %arg10[%c35_89, %c16_90], %123 {strides = array<i32>} : memref<49x144xf32, #tpu.memory_space<vmem>>, vector<7x16xf32>,
    %c200 = arith.constant 200 : index
    %c0_91 = arith.constant 0 : index
    %125 = vector.load %arg9[%c200, %c0_91] : memref<256x16xf32, #tpu.memory_space<vmem>>, vector<7x16xf32>
    %c42_92 = arith.constant 42 : index
    %c16_93 = arith.constant 16 : index
    %126 = vector.load %arg10[%c42_92, %c16_93] : memref<49x144xf32, #tpu.memory_space<vmem>>, vector<7x16xf32>
    tpu.vector_store %arg10[%c42_92, %c16_93], %125 {strides = array<i32>} : memref<49x144xf32, #tpu.memory_space<vmem>>, vector<7x16xf32>,
    %c1_94 = arith.constant 1 : index
    %c0_95 = arith.constant 0 : index
    %127 = vector.load %arg9[%c1_94, %c0_95] : memref<256x16xf32, #tpu.memory_space<vmem>>, vector<7x16xf32>
    %c0_96 = arith.constant 0 : index
    %c32_97 = arith.constant 32 : index
    %128 = vector.load %arg10[%c0_96, %c32_97] : memref<49x144xf32, #tpu.memory_space<vmem>>, vector<7x16xf32>
    tpu.vector_store %arg10[%c0_96, %c32_97], %127 {strides = array<i32>} : memref<49x144xf32, #tpu.memory_space<vmem>>, vector<7x16xf32>,
    %c33_98 = arith.constant 33 : index
    %c0_99 = arith.constant 0 : index
    %129 = vector.load %arg9[%c33_98, %c0_99] : memref<256x16xf32, #tpu.memory_space<vmem>>, vector<7x16xf32>
    %c7_100 = arith.constant 7 : index
    %c32_101 = arith.constant 32 : index
    %130 = vector.load %arg10[%c7_100, %c32_101] : memref<49x144xf32, #tpu.memory_space<vmem>>, vector<7x16xf32>
    tpu.vector_store %arg10[%c7_100, %c32_101], %129 {strides = array<i32>} : memref<49x144xf32, #tpu.memory_space<vmem>>, vector<7x16xf32>,
    %c65_102 = arith.constant 65 : index
    %c0_103 = arith.constant 0 : index
    %131 = vector.load %arg9[%c65_102, %c0_103] : memref<256x16xf32, #tpu.memory_space<vmem>>, vector<7x16xf32>
    %c14_104 = arith.constant 14 : index
    %c32_105 = arith.constant 32 : index
    %132 = vector.load %arg10[%c14_104, %c32_105] : memref<49x144xf32, #tpu.memory_space<vmem>>, vector<7x16xf32>
    tpu.vector_store %arg10[%c14_104, %c32_105], %131 {strides = array<i32>} : memref<49x144xf32, #tpu.memory_space<vmem>>, vector<7x16xf32>,
    %c97_106 = arith.constant 97 : index
    %c0_107 = arith.constant 0 : index
    %133 = vector.load %arg9[%c97_106, %c0_107] : memref<256x16xf32, #tpu.memory_space<vmem>>, vector<7x16xf32>
    %c21_108 = arith.constant 21 : index
    %c32_109 = arith.constant 32 : index
    %134 = vector.load %arg10[%c21_108, %c32_109] : memref<49x144xf32, #tpu.memory_space<vmem>>, vector<7x16xf32>
    tpu.vector_store %arg10[%c21_108, %c32_109], %133 {strides = array<i32>} : memref<49x144xf32, #tpu.memory_space<vmem>>, vector<7x16xf32>,
    %c129_110 = arith.constant 129 : index
    %c0_111 = arith.constant 0 : index
    %135 = vector.load %arg9[%c129_110, %c0_111] : memref<256x16xf32, #tpu.memory_space<vmem>>, vector<7x16xf32>
    %c28_112 = arith.constant 28 : index
    %c32_113 = arith.constant 32 : index
    %136 = vector.load %arg10[%c28_112, %c32_113] : memref<49x144xf32, #tpu.memory_space<vmem>>, vector<7x16xf32>
    tpu.vector_store %arg10[%c28_112, %c32_113], %135 {strides = array<i32>} : memref<49x144xf32, #tpu.memory_space<vmem>>, vector<7x16xf32>,
    %c161_114 = arith.constant 161 : index
    %c0_115 = arith.constant 0 : index
    %137 = vector.load %arg9[%c161_114, %c0_115] : memref<256x16xf32, #tpu.memory_space<vmem>>, vector<7x16xf32>
    %c35_116 = arith.constant 35 : index
    %c32_117 = arith.constant 32 : index
    %138 = vector.load %arg10[%c35_116, %c32_117] : memref<49x144xf32, #tpu.memory_space<vmem>>, vector<7x16xf32>
    tpu.vector_store %arg10[%c35_116, %c32_117], %137 {strides = array<i32>} : memref<49x144xf32, #tpu.memory_space<vmem>>, vector<7x16xf32>,
    %c193_118 = arith.constant 193 : index
    %c0_119 = arith.constant 0 : index
    %139 = vector.load %arg9[%c193_118, %c0_119] : memref<256x16xf32, #tpu.memory_space<vmem>>, vector<7x16xf32>
    %c42_120 = arith.constant 42 : index
    %c32_121 = arith.constant 32 : index
    %140 = vector.load %arg10[%c42_120, %c32_121] : memref<49x144xf32, #tpu.memory_space<vmem>>, vector<7x16xf32>
    tpu.vector_store %arg10[%c42_120, %c32_121], %139 {strides = array<i32>} : memref<49x144xf32, #tpu.memory_space<vmem>>, vector<7x16xf32>,
    %c16_122 = arith.constant 16 : index
    %c0_123 = arith.constant 0 : index
    %141 = vector.load %arg9[%c16_122, %c0_123] : memref<256x16xf32, #tpu.memory_space<vmem>>, vector<7x16xf32>
    %c0_124 = arith.constant 0 : index
    %c48 = arith.constant 48 : index
    %142 = vector.load %arg10[%c0_124, %c48] : memref<49x144xf32, #tpu.memory_space<vmem>>, vector<7x16xf32>
    tpu.vector_store %arg10[%c0_124, %c48], %141 {strides = array<i32>} : memref<49x144xf32, #tpu.memory_space<vmem>>, vector<7x16xf32>,
    %c48_125 = arith.constant 48 : index
    %c0_126 = arith.constant 0 : index
    %143 = vector.load %arg9[%c48_125, %c0_126] : memref<256x16xf32, #tpu.memory_space<vmem>>, vector<7x16xf32>
    %c7_127 = arith.constant 7 : index
    %c48_128 = arith.constant 48 : index
    %144 = vector.load %arg10[%c7_127, %c48_128] : memref<49x144xf32, #tpu.memory_space<vmem>>, vector<7x16xf32>
    tpu.vector_store %arg10[%c7_127, %c48_128], %143 {strides = array<i32>} : memref<49x144xf32, #tpu.memory_space<vmem>>, vector<7x16xf32>,
    %c80 = arith.constant 80 : index
    %c0_129 = arith.constant 0 : index
    %145 = vector.load %arg9[%c80, %c0_129] : memref<256x16xf32, #tpu.memory_space<vmem>>, vector<7x16xf32>
    %c14_130 = arith.constant 14 : index
    %c48_131 = arith.constant 48 : index
    %146 = vector.load %arg10[%c14_130, %c48_131] : memref<49x144xf32, #tpu.memory_space<vmem>>, vector<7x16xf32>
    tpu.vector_store %arg10[%c14_130, %c48_131], %145 {strides = array<i32>} : memref<49x144xf32, #tpu.memory_space<vmem>>, vector<7x16xf32>,
    %c112 = arith.constant 112 : index
    %c0_132 = arith.constant 0 : index
    %147 = vector.load %arg9[%c112, %c0_132] : memref<256x16xf32, #tpu.memory_space<vmem>>, vector<7x16xf32>
    %c21_133 = arith.constant 21 : index
    %c48_134 = arith.constant 48 : index
    %148 = vector.load %arg10[%c21_133, %c48_134] : memref<49x144xf32, #tpu.memory_space<vmem>>, vector<7x16xf32>
    tpu.vector_store %arg10[%c21_133, %c48_134], %147 {strides = array<i32>} : memref<49x144xf32, #tpu.memory_space<vmem>>, vector<7x16xf32>,
    %c144 = arith.constant 144 : index
    %c0_135 = arith.constant 0 : index
    %149 = vector.load %arg9[%c144, %c0_135] : memref<256x16xf32, #tpu.memory_space<vmem>>, vector<7x16xf32>
    %c28_136 = arith.constant 28 : index
    %c48_137 = arith.constant 48 : index
    %150 = vector.load %arg10[%c28_136, %c48_137] : memref<49x144xf32, #tpu.memory_space<vmem>>, vector<7x16xf32>
    tpu.vector_store %arg10[%c28_136, %c48_137], %149 {strides = array<i32>} : memref<49x144xf32, #tpu.memory_space<vmem>>, vector<7x16xf32>,
    %c176 = arith.constant 176 : index
    %c0_138 = arith.constant 0 : index
    %151 = vector.load %arg9[%c176, %c0_138] : memref<256x16xf32, #tpu.memory_space<vmem>>, vector<7x16xf32>
    %c35_139 = arith.constant 35 : index
    %c48_140 = arith.constant 48 : index
    %152 = vector.load %arg10[%c35_139, %c48_140] : memref<49x144xf32, #tpu.memory_space<vmem>>, vector<7x16xf32>
    tpu.vector_store %arg10[%c35_139, %c48_140], %151 {strides = array<i32>} : memref<49x144xf32, #tpu.memory_space<vmem>>, vector<7x16xf32>,
    %c208 = arith.constant 208 : index
    %c0_141 = arith.constant 0 : index
    %153 = vector.load %arg9[%c208, %c0_141] : memref<256x16xf32, #tpu.memory_space<vmem>>, vector<7x16xf32>
    %c42_142 = arith.constant 42 : index
    %c48_143 = arith.constant 48 : index
    %154 = vector.load %arg10[%c42_142, %c48_143] : memref<49x144xf32, #tpu.memory_space<vmem>>, vector<7x16xf32>
    tpu.vector_store %arg10[%c42_142, %c48_143], %153 {strides = array<i32>} : memref<49x144xf32, #tpu.memory_space<vmem>>, vector<7x16xf32>,
    %c24 = arith.constant 24 : index
    %c0_144 = arith.constant 0 : index
    %155 = vector.load %arg9[%c24, %c0_144] : memref<256x16xf32, #tpu.memory_space<vmem>>, vector<7x16xf32>
    %c0_145 = arith.constant 0 : index
    %c64_146 = arith.constant 64 : index
    %156 = vector.load %arg10[%c0_145, %c64_146] : memref<49x144xf32, #tpu.memory_space<vmem>>, vector<7x16xf32>
    tpu.vector_store %arg10[%c0_145, %c64_146], %155 {strides = array<i32>} : memref<49x144xf32, #tpu.memory_space<vmem>>, vector<7x16xf32>,
    %c56 = arith.constant 56 : index
    %c0_147 = arith.constant 0 : index
    %157 = vector.load %arg9[%c56, %c0_147] : memref<256x16xf32, #tpu.memory_space<vmem>>, vector<7x16xf32>
    %c7_148 = arith.constant 7 : index
    %c64_149 = arith.constant 64 : index
    %158 = vector.load %arg10[%c7_148, %c64_149] : memref<49x144xf32, #tpu.memory_space<vmem>>, vector<7x16xf32>
    tpu.vector_store %arg10[%c7_148, %c64_149], %157 {strides = array<i32>} : memref<49x144xf32, #tpu.memory_space<vmem>>, vector<7x16xf32>,
    %c88 = arith.constant 88 : index
    %c0_150 = arith.constant 0 : index
    %159 = vector.load %arg9[%c88, %c0_150] : memref<256x16xf32, #tpu.memory_space<vmem>>, vector<7x16xf32>
    %c14_151 = arith.constant 14 : index
    %c64_152 = arith.constant 64 : index
    %160 = vector.load %arg10[%c14_151, %c64_152] : memref<49x144xf32, #tpu.memory_space<vmem>>, vector<7x16xf32>
    tpu.vector_store %arg10[%c14_151, %c64_152], %159 {strides = array<i32>} : memref<49x144xf32, #tpu.memory_space<vmem>>, vector<7x16xf32>,
    %c120 = arith.constant 120 : index
    %c0_153 = arith.constant 0 : index
    %161 = vector.load %arg9[%c120, %c0_153] : memref<256x16xf32, #tpu.memory_space<vmem>>, vector<7x16xf32>
    %c21_154 = arith.constant 21 : index
    %c64_155 = arith.constant 64 : index
    %162 = vector.load %arg10[%c21_154, %c64_155] : memref<49x144xf32, #tpu.memory_space<vmem>>, vector<7x16xf32>
    tpu.vector_store %arg10[%c21_154, %c64_155], %161 {strides = array<i32>} : memref<49x144xf32, #tpu.memory_space<vmem>>, vector<7x16xf32>,
    %c152 = arith.constant 152 : index
    %c0_156 = arith.constant 0 : index
    %163 = vector.load %arg9[%c152, %c0_156] : memref<256x16xf32, #tpu.memory_space<vmem>>, vector<7x16xf32>
    %c28_157 = arith.constant 28 : index
    %c64_158 = arith.constant 64 : index
    %164 = vector.load %arg10[%c28_157, %c64_158] : memref<49x144xf32, #tpu.memory_space<vmem>>, vector<7x16xf32>
    tpu.vector_store %arg10[%c28_157, %c64_158], %163 {strides = array<i32>} : memref<49x144xf32, #tpu.memory_space<vmem>>, vector<7x16xf32>,
    %c184 = arith.constant 184 : index
    %c0_159 = arith.constant 0 : index
    %165 = vector.load %arg9[%c184, %c0_159] : memref<256x16xf32, #tpu.memory_space<vmem>>, vector<7x16xf32>
    %c35_160 = arith.constant 35 : index
    %c64_161 = arith.constant 64 : index
    %166 = vector.load %arg10[%c35_160, %c64_161] : memref<49x144xf32, #tpu.memory_space<vmem>>, vector<7x16xf32>
    tpu.vector_store %arg10[%c35_160, %c64_161], %165 {strides = array<i32>} : memref<49x144xf32, #tpu.memory_space<vmem>>, vector<7x16xf32>,
    %c216 = arith.constant 216 : index
    %c0_162 = arith.constant 0 : index
    %167 = vector.load %arg9[%c216, %c0_162] : memref<256x16xf32, #tpu.memory_space<vmem>>, vector<7x16xf32>
    %c42_163 = arith.constant 42 : index
    %c64_164 = arith.constant 64 : index
    %168 = vector.load %arg10[%c42_163, %c64_164] : memref<49x144xf32, #tpu.memory_space<vmem>>, vector<7x16xf32>
    tpu.vector_store %arg10[%c42_163, %c64_164], %167 {strides = array<i32>} : memref<49x144xf32, #tpu.memory_space<vmem>>, vector<7x16xf32>,
    %c17_165 = arith.constant 17 : index
    %c0_166 = arith.constant 0 : index
    %169 = vector.load %arg9[%c17_165, %c0_166] : memref<256x16xf32, #tpu.memory_space<vmem>>, vector<7x16xf32>
    %c0_167 = arith.constant 0 : index
    %c80_168 = arith.constant 80 : index
    %170 = vector.load %arg10[%c0_167, %c80_168] : memref<49x144xf32, #tpu.memory_space<vmem>>, vector<7x16xf32>
    tpu.vector_store %arg10[%c0_167, %c80_168], %169 {strides = array<i32>} : memref<49x144xf32, #tpu.memory_space<vmem>>, vector<7x16xf32>,
    %c49_169 = arith.constant 49 : index
    %c0_170 = arith.constant 0 : index
    %171 = vector.load %arg9[%c49_169, %c0_170] : memref<256x16xf32, #tpu.memory_space<vmem>>, vector<7x16xf32>
    %c7_171 = arith.constant 7 : index
    %c80_172 = arith.constant 80 : index
    %172 = vector.load %arg10[%c7_171, %c80_172] : memref<49x144xf32, #tpu.memory_space<vmem>>, vector<7x16xf32>
    tpu.vector_store %arg10[%c7_171, %c80_172], %171 {strides = array<i32>} : memref<49x144xf32, #tpu.memory_space<vmem>>, vector<7x16xf32>,
    %c81_173 = arith.constant 81 : index
    %c0_174 = arith.constant 0 : index
    %173 = vector.load %arg9[%c81_173, %c0_174] : memref<256x16xf32, #tpu.memory_space<vmem>>, vector<7x16xf32>
    %c14_175 = arith.constant 14 : index
    %c80_176 = arith.constant 80 : index
    %174 = vector.load %arg10[%c14_175, %c80_176] : memref<49x144xf32, #tpu.memory_space<vmem>>, vector<7x16xf32>
    tpu.vector_store %arg10[%c14_175, %c80_176], %173 {strides = array<i32>} : memref<49x144xf32, #tpu.memory_space<vmem>>, vector<7x16xf32>,
    %c113_177 = arith.constant 113 : index
    %c0_178 = arith.constant 0 : index
    %175 = vector.load %arg9[%c113_177, %c0_178] : memref<256x16xf32, #tpu.memory_space<vmem>>, vector<7x16xf32>
    %c21_179 = arith.constant 21 : index
    %c80_180 = arith.constant 80 : index
    %176 = vector.load %arg10[%c21_179, %c80_180] : memref<49x144xf32, #tpu.memory_space<vmem>>, vector<7x16xf32>
    tpu.vector_store %arg10[%c21_179, %c80_180], %175 {strides = array<i32>} : memref<49x144xf32, #tpu.memory_space<vmem>>, vector<7x16xf32>,
    %c145_181 = arith.constant 145 : index
    %c0_182 = arith.constant 0 : index
    %177 = vector.load %arg9[%c145_181, %c0_182] : memref<256x16xf32, #tpu.memory_space<vmem>>, vector<7x16xf32>
    %c28_183 = arith.constant 28 : index
    %c80_184 = arith.constant 80 : index
    %178 = vector.load %arg10[%c28_183, %c80_184] : memref<49x144xf32, #tpu.memory_space<vmem>>, vector<7x16xf32>
    tpu.vector_store %arg10[%c28_183, %c80_184], %177 {strides = array<i32>} : memref<49x144xf32, #tpu.memory_space<vmem>>, vector<7x16xf32>,
    %c177_185 = arith.constant 177 : index
    %c0_186 = arith.constant 0 : index
    %179 = vector.load %arg9[%c177_185, %c0_186] : memref<256x16xf32, #tpu.memory_space<vmem>>, vector<7x16xf32>
    %c35_187 = arith.constant 35 : index
    %c80_188 = arith.constant 80 : index
    %180 = vector.load %arg10[%c35_187, %c80_188] : memref<49x144xf32, #tpu.memory_space<vmem>>, vector<7x16xf32>
    tpu.vector_store %arg10[%c35_187, %c80_188], %179 {strides = array<i32>} : memref<49x144xf32, #tpu.memory_space<vmem>>, vector<7x16xf32>,
    %c209_189 = arith.constant 209 : index
    %c0_190 = arith.constant 0 : index
    %181 = vector.load %arg9[%c209_189, %c0_190] : memref<256x16xf32, #tpu.memory_space<vmem>>, vector<7x16xf32>
    %c42_191 = arith.constant 42 : index
    %c80_192 = arith.constant 80 : index
    %182 = vector.load %arg10[%c42_191, %c80_192] : memref<49x144xf32, #tpu.memory_space<vmem>>, vector<7x16xf32>
    tpu.vector_store %arg10[%c42_191, %c80_192], %181 {strides = array<i32>} : memref<49x144xf32, #tpu.memory_space<vmem>>, vector<7x16xf32>,
    %c32_193 = arith.constant 32 : index
    %c0_194 = arith.constant 0 : index
    %183 = vector.load %arg9[%c32_193, %c0_194] : memref<256x16xf32, #tpu.memory_space<vmem>>, vector<7x16xf32>
    %c0_195 = arith.constant 0 : index
    %c96_196 = arith.constant 96 : index
    %184 = vector.load %arg10[%c0_195, %c96_196] : memref<49x144xf32, #tpu.memory_space<vmem>>, vector<7x16xf32>
    tpu.vector_store %arg10[%c0_195, %c96_196], %183 {strides = array<i32>} : memref<49x144xf32, #tpu.memory_space<vmem>>, vector<7x16xf32>,
    %c64_197 = arith.constant 64 : index
    %c0_198 = arith.constant 0 : index
    %185 = vector.load %arg9[%c64_197, %c0_198] : memref<256x16xf32, #tpu.memory_space<vmem>>, vector<7x16xf32>
    %c7_199 = arith.constant 7 : index
    %c96_200 = arith.constant 96 : index
    %186 = vector.load %arg10[%c7_199, %c96_200] : memref<49x144xf32, #tpu.memory_space<vmem>>, vector<7x16xf32>
    tpu.vector_store %arg10[%c7_199, %c96_200], %185 {strides = array<i32>} : memref<49x144xf32, #tpu.memory_space<vmem>>, vector<7x16xf32>,
    %c96_201 = arith.constant 96 : index
    %c0_202 = arith.constant 0 : index
    %187 = vector.load %arg9[%c96_201, %c0_202] : memref<256x16xf32, #tpu.memory_space<vmem>>, vector<7x16xf32>
    %c14_203 = arith.constant 14 : index
    %c96_204 = arith.constant 96 : index
    %188 = vector.load %arg10[%c14_203, %c96_204] : memref<49x144xf32, #tpu.memory_space<vmem>>, vector<7x16xf32>
    tpu.vector_store %arg10[%c14_203, %c96_204], %187 {strides = array<i32>} : memref<49x144xf32, #tpu.memory_space<vmem>>, vector<7x16xf32>,
    %c128_205 = arith.constant 128 : index
    %c0_206 = arith.constant 0 : index
    %189 = vector.load %arg9[%c128_205, %c0_206] : memref<256x16xf32, #tpu.memory_space<vmem>>, vector<7x16xf32>
    %c21_207 = arith.constant 21 : index
    %c96_208 = arith.constant 96 : index
    %190 = vector.load %arg10[%c21_207, %c96_208] : memref<49x144xf32, #tpu.memory_space<vmem>>, vector<7x16xf32>
    tpu.vector_store %arg10[%c21_207, %c96_208], %189 {strides = array<i32>} : memref<49x144xf32, #tpu.memory_space<vmem>>, vector<7x16xf32>,
    %c160_209 = arith.constant 160 : index
    %c0_210 = arith.constant 0 : index
    %191 = vector.load %arg9[%c160_209, %c0_210] : memref<256x16xf32, #tpu.memory_space<vmem>>, vector<7x16xf32>
    %c28_211 = arith.constant 28 : index
    %c96_212 = arith.constant 96 : index
    %192 = vector.load %arg10[%c28_211, %c96_212] : memref<49x144xf32, #tpu.memory_space<vmem>>, vector<7x16xf32>
    tpu.vector_store %arg10[%c28_211, %c96_212], %191 {strides = array<i32>} : memref<49x144xf32, #tpu.memory_space<vmem>>, vector<7x16xf32>,
    %c192_213 = arith.constant 192 : index
    %c0_214 = arith.constant 0 : index
    %193 = vector.load %arg9[%c192_213, %c0_214] : memref<256x16xf32, #tpu.memory_space<vmem>>, vector<7x16xf32>
    %c35_215 = arith.constant 35 : index
    %c96_216 = arith.constant 96 : index
    %194 = vector.load %arg10[%c35_215, %c96_216] : memref<49x144xf32, #tpu.memory_space<vmem>>, vector<7x16xf32>
    tpu.vector_store %arg10[%c35_215, %c96_216], %193 {strides = array<i32>} : memref<49x144xf32, #tpu.memory_space<vmem>>, vector<7x16xf32>,
    %c224 = arith.constant 224 : index
    %c0_217 = arith.constant 0 : index
    %195 = vector.load %arg9[%c224, %c0_217] : memref<256x16xf32, #tpu.memory_space<vmem>>, vector<7x16xf32>
    %c42_218 = arith.constant 42 : index
    %c96_219 = arith.constant 96 : index
    %196 = vector.load %arg10[%c42_218, %c96_219] : memref<49x144xf32, #tpu.memory_space<vmem>>, vector<7x16xf32>
    tpu.vector_store %arg10[%c42_218, %c96_219], %195 {strides = array<i32>} : memref<49x144xf32, #tpu.memory_space<vmem>>, vector<7x16xf32>,
    %c40_220 = arith.constant 40 : index
    %c0_221 = arith.constant 0 : index
    %197 = vector.load %arg9[%c40_220, %c0_221] : memref<256x16xf32, #tpu.memory_space<vmem>>, vector<7x16xf32>
    %c0_222 = arith.constant 0 : index
    %c112_223 = arith.constant 112 : index
    %198 = vector.load %arg10[%c0_222, %c112_223] : memref<49x144xf32, #tpu.memory_space<vmem>>, vector<7x16xf32>
    tpu.vector_store %arg10[%c0_222, %c112_223], %197 {strides = array<i32>} : memref<49x144xf32, #tpu.memory_space<vmem>>, vector<7x16xf32>,
    %c72_224 = arith.constant 72 : index
    %c0_225 = arith.constant 0 : index
    %199 = vector.load %arg9[%c72_224, %c0_225] : memref<256x16xf32, #tpu.memory_space<vmem>>, vector<7x16xf32>
    %c7_226 = arith.constant 7 : index
    %c112_227 = arith.constant 112 : index
    %200 = vector.load %arg10[%c7_226, %c112_227] : memref<49x144xf32, #tpu.memory_space<vmem>>, vector<7x16xf32>
    tpu.vector_store %arg10[%c7_226, %c112_227], %199 {strides = array<i32>} : memref<49x144xf32, #tpu.memory_space<vmem>>, vector<7x16xf32>,
    %c104_228 = arith.constant 104 : index
    %c0_229 = arith.constant 0 : index
    %201 = vector.load %arg9[%c104_228, %c0_229] : memref<256x16xf32, #tpu.memory_space<vmem>>, vector<7x16xf32>
    %c14_230 = arith.constant 14 : index
    %c112_231 = arith.constant 112 : index
    %202 = vector.load %arg10[%c14_230, %c112_231] : memref<49x144xf32, #tpu.memory_space<vmem>>, vector<7x16xf32>
    tpu.vector_store %arg10[%c14_230, %c112_231], %201 {strides = array<i32>} : memref<49x144xf32, #tpu.memory_space<vmem>>, vector<7x16xf32>,
    %c136_232 = arith.constant 136 : index
    %c0_233 = arith.constant 0 : index
    %203 = vector.load %arg9[%c136_232, %c0_233] : memref<256x16xf32, #tpu.memory_space<vmem>>, vector<7x16xf32>
    %c21_234 = arith.constant 21 : index
    %c112_235 = arith.constant 112 : index
    %204 = vector.load %arg10[%c21_234, %c112_235] : memref<49x144xf32, #tpu.memory_space<vmem>>, vector<7x16xf32>
    tpu.vector_store %arg10[%c21_234, %c112_235], %203 {strides = array<i32>} : memref<49x144xf32, #tpu.memory_space<vmem>>, vector<7x16xf32>,
    %c168_236 = arith.constant 168 : index
    %c0_237 = arith.constant 0 : index
    %205 = vector.load %arg9[%c168_236, %c0_237] : memref<256x16xf32, #tpu.memory_space<vmem>>, vector<7x16xf32>
    %c28_238 = arith.constant 28 : index
    %c112_239 = arith.constant 112 : index
    %206 = vector.load %arg10[%c28_238, %c112_239] : memref<49x144xf32, #tpu.memory_space<vmem>>, vector<7x16xf32>
    tpu.vector_store %arg10[%c28_238, %c112_239], %205 {strides = array<i32>} : memref<49x144xf32, #tpu.memory_space<vmem>>, vector<7x16xf32>,
    %c200_240 = arith.constant 200 : index
    %c0_241 = arith.constant 0 : index
    %207 = vector.load %arg9[%c200_240, %c0_241] : memref<256x16xf32, #tpu.memory_space<vmem>>, vector<7x16xf32>
    %c35_242 = arith.constant 35 : index
    %c112_243 = arith.constant 112 : index
    %208 = vector.load %arg10[%c35_242, %c112_243] : memref<49x144xf32, #tpu.memory_space<vmem>>, vector<7x16xf32>
    tpu.vector_store %arg10[%c35_242, %c112_243], %207 {strides = array<i32>} : memref<49x144xf32, #tpu.memory_space<vmem>>, vector<7x16xf32>,
    %c232 = arith.constant 232 : index
    %c0_244 = arith.constant 0 : index
    %209 = vector.load %arg9[%c232, %c0_244] : memref<256x16xf32, #tpu.memory_space<vmem>>, vector<7x16xf32>
    %c42_245 = arith.constant 42 : index
    %c112_246 = arith.constant 112 : index
    %210 = vector.load %arg10[%c42_245, %c112_246] : memref<49x144xf32, #tpu.memory_space<vmem>>, vector<7x16xf32>
    tpu.vector_store %arg10[%c42_245, %c112_246], %209 {strides = array<i32>} : memref<49x144xf32, #tpu.memory_space<vmem>>, vector<7x16xf32>,
    %c33_247 = arith.constant 33 : index
    %c0_248 = arith.constant 0 : index
    %211 = vector.load %arg9[%c33_247, %c0_248] : memref<256x16xf32, #tpu.memory_space<vmem>>, vector<7x16xf32>
    %c0_249 = arith.constant 0 : index
    %c128_250 = arith.constant 128 : index
    %212 = vector.load %arg10[%c0_249, %c128_250] : memref<49x144xf32, #tpu.memory_space<vmem>>, vector<7x16xf32>
    tpu.vector_store %arg10[%c0_249, %c128_250], %211 {strides = array<i32>} : memref<49x144xf32, #tpu.memory_space<vmem>>, vector<7x16xf32>,
    %c65_251 = arith.constant 65 : index
    %c0_252 = arith.constant 0 : index
    %213 = vector.load %arg9[%c65_251, %c0_252] : memref<256x16xf32, #tpu.memory_space<vmem>>, vector<7x16xf32>
    %c7_253 = arith.constant 7 : index
    %c128_254 = arith.constant 128 : index
    %214 = vector.load %arg10[%c7_253, %c128_254] : memref<49x144xf32, #tpu.memory_space<vmem>>, vector<7x16xf32>
    tpu.vector_store %arg10[%c7_253, %c128_254], %213 {strides = array<i32>} : memref<49x144xf32, #tpu.memory_space<vmem>>, vector<7x16xf32>,
    %c97_255 = arith.constant 97 : index
    %c0_256 = arith.constant 0 : index
    %215 = vector.load %arg9[%c97_255, %c0_256] : memref<256x16xf32, #tpu.memory_space<vmem>>, vector<7x16xf32>
    %c14_257 = arith.constant 14 : index
    %c128_258 = arith.constant 128 : index
    %216 = vector.load %arg10[%c14_257, %c128_258] : memref<49x144xf32, #tpu.memory_space<vmem>>, vector<7x16xf32>
    tpu.vector_store %arg10[%c14_257, %c128_258], %215 {strides = array<i32>} : memref<49x144xf32, #tpu.memory_space<vmem>>, vector<7x16xf32>,
    %c129_259 = arith.constant 129 : index
    %c0_260 = arith.constant 0 : index
    %217 = vector.load %arg9[%c129_259, %c0_260] : memref<256x16xf32, #tpu.memory_space<vmem>>, vector<7x16xf32>
    %c21_261 = arith.constant 21 : index
    %c128_262 = arith.constant 128 : index
    %218 = vector.load %arg10[%c21_261, %c128_262] : memref<49x144xf32, #tpu.memory_space<vmem>>, vector<7x16xf32>
    tpu.vector_store %arg10[%c21_261, %c128_262], %217 {strides = array<i32>} : memref<49x144xf32, #tpu.memory_space<vmem>>, vector<7x16xf32>,
    %c161_263 = arith.constant 161 : index
    %c0_264 = arith.constant 0 : index
    %219 = vector.load %arg9[%c161_263, %c0_264] : memref<256x16xf32, #tpu.memory_space<vmem>>, vector<7x16xf32>
    %c28_265 = arith.constant 28 : index
    %c128_266 = arith.constant 128 : index
    %220 = vector.load %arg10[%c28_265, %c128_266] : memref<49x144xf32, #tpu.memory_space<vmem>>, vector<7x16xf32>
    tpu.vector_store %arg10[%c28_265, %c128_266], %219 {strides = array<i32>} : memref<49x144xf32, #tpu.memory_space<vmem>>, vector<7x16xf32>,
    %c193_267 = arith.constant 193 : index
    %c0_268 = arith.constant 0 : index
    %221 = vector.load %arg9[%c193_267, %c0_268] : memref<256x16xf32, #tpu.memory_space<vmem>>, vector<7x16xf32>
    %c35_269 = arith.constant 35 : index
    %c128_270 = arith.constant 128 : index
    %222 = vector.load %arg10[%c35_269, %c128_270] : memref<49x144xf32, #tpu.memory_space<vmem>>, vector<7x16xf32>
    tpu.vector_store %arg10[%c35_269, %c128_270], %221 {strides = array<i32>} : memref<49x144xf32, #tpu.memory_space<vmem>>, vector<7x16xf32>,
    %c225_271 = arith.constant 225 : index
    %c0_272 = arith.constant 0 : index
    %223 = vector.load %arg9[%c225_271, %c0_272] : memref<256x16xf32, #tpu.memory_space<vmem>>, vector<7x16xf32>
    %c42_273 = arith.constant 42 : index
    %c128_274 = arith.constant 128 : index
    %224 = vector.load %arg10[%c42_273, %c128_274] : memref<49x144xf32, #tpu.memory_space<vmem>>, vector<7x16xf32>
    tpu.vector_store %arg10[%c42_273, %c128_274], %223 {strides = array<i32>} : memref<49x144xf32, #tpu.memory_space<vmem>>, vector<7x16xf32>,
    %c0_275 = arith.constant 0 : index
    %c0_276 = arith.constant 0 : index
    %225 = vector.load %arg10[%c0_275, %c0_276] : memref<49x144xf32, #tpu.memory_space<vmem>>, vector<49x144xf32>
    %226 = arith.truncf %225 : vector<49x144xf32> to vector<49x144xbf16>
    %c0_277 = arith.constant 0 : index
    %c0_278 = arith.constant 0 : index
    %227 = vector.load %arg4[%c0_277, %c0_278] : memref<144x32xbf16, #tpu.memory_space<vmem>>, vector<144x32xbf16>
    %cst_279 = arith.constant dense<0.000000e+00> : vector<49x32xf32>
    %228 = tpu.matmul %226, %227, %cst_279 {dimension_numbers = #tpu.dot_dimension_numbers<[1], [0], [0], [1], [0, 0, 1, 1], [], []>} : vector<49x144xbf16>, vector<144x32xbf16>, vector<49x32xf32> -> vector<49x32xf32>
    %c0_280 = arith.constant 0 : index
    %c0_281 = arith.constant 0 : index
    %229 = vector.load %arg5[%c0_280, %c0_281] : memref<1x32xf32, #tpu.memory_space<vmem>>, vector<1x32xf32>
    %230 = vector.broadcast %229 : vector<1x32xf32> to vector<49x32xf32>
    %231 = arith.addf %228, %230 : vector<49x32xf32>
    %cst_282 = arith.constant 0.000000e+00 : f32
    %232 = vector.broadcast %cst_282 : f32 to vector<49x32xf32>
    %233 = arith.maximumf %231, %232 : vector<49x32xf32>
    %234 = vector.extract_strided_slice %233 {offsets = [0, 0], sizes = [1, 32], strides = [1, 1]} : vector<49x32xf32> to vector<1x32xf32>
    %c0_283 = arith.constant 0 : index
    %c0_284 = arith.constant 0 : index
    %235 = vector.load %arg11[%c0_283, %c0_284] : memref<1x1568xf32, #tpu.memory_space<vmem>>, vector<1x32xf32>
    tpu.vector_store %arg11[%c0_283, %c0_284], %234 {strides = array<i32>} : memref<1x1568xf32, #tpu.memory_space<vmem>>, vector<1x32xf32>,
    %236 = vector.extract_strided_slice %233 {offsets = [1, 0], sizes = [1, 32], strides = [1, 1]} : vector<49x32xf32> to vector<1x32xf32>
    %c0_285 = arith.constant 0 : index
    %c32_286 = arith.constant 32 : index
    %237 = vector.load %arg11[%c0_285, %c32_286] : memref<1x1568xf32, #tpu.memory_space<vmem>>, vector<1x32xf32>
    tpu.vector_store %arg11[%c0_285, %c32_286], %236 {strides = array<i32>} : memref<1x1568xf32, #tpu.memory_space<vmem>>, vector<1x32xf32>,
    %238 = vector.extract_strided_slice %233 {offsets = [2, 0], sizes = [1, 32], strides = [1, 1]} : vector<49x32xf32> to vector<1x32xf32>
    %c0_287 = arith.constant 0 : index
    %c64_288 = arith.constant 64 : index
    %239 = vector.load %arg11[%c0_287, %c64_288] : memref<1x1568xf32, #tpu.memory_space<vmem>>, vector<1x32xf32>
    tpu.vector_store %arg11[%c0_287, %c64_288], %238 {strides = array<i32>} : memref<1x1568xf32, #tpu.memory_space<vmem>>, vector<1x32xf32>,
    %240 = vector.extract_strided_slice %233 {offsets = [3, 0], sizes = [1, 32], strides = [1, 1]} : vector<49x32xf32> to vector<1x32xf32>
    %c0_289 = arith.constant 0 : index
    %c96_290 = arith.constant 96 : index
    %241 = vector.load %arg11[%c0_289, %c96_290] : memref<1x1568xf32, #tpu.memory_space<vmem>>, vector<1x32xf32>
    tpu.vector_store %arg11[%c0_289, %c96_290], %240 {strides = array<i32>} : memref<1x1568xf32, #tpu.memory_space<vmem>>, vector<1x32xf32>,
    %242 = vector.extract_strided_slice %233 {offsets = [4, 0], sizes = [1, 32], strides = [1, 1]} : vector<49x32xf32> to vector<1x32xf32>
    %c0_291 = arith.constant 0 : index
    %c128_292 = arith.constant 128 : index
    %243 = vector.load %arg11[%c0_291, %c128_292] : memref<1x1568xf32, #tpu.memory_space<vmem>>, vector<1x32xf32>
    tpu.vector_store %arg11[%c0_291, %c128_292], %242 {strides = array<i32>} : memref<1x1568xf32, #tpu.memory_space<vmem>>, vector<1x32xf32>,
    %244 = vector.extract_strided_slice %233 {offsets = [5, 0], sizes = [1, 32], strides = [1, 1]} : vector<49x32xf32> to vector<1x32xf32>
    %c0_293 = arith.constant 0 : index
    %c160_294 = arith.constant 160 : index
    %245 = vector.load %arg11[%c0_293, %c160_294] : memref<1x1568xf32, #tpu.memory_space<vmem>>, vector<1x32xf32>
    tpu.vector_store %arg11[%c0_293, %c160_294], %244 {strides = array<i32>} : memref<1x1568xf32, #tpu.memory_space<vmem>>, vector<1x32xf32>,
    %246 = vector.extract_strided_slice %233 {offsets = [6, 0], sizes = [1, 32], strides = [1, 1]} : vector<49x32xf32> to vector<1x32xf32>
    %c0_295 = arith.constant 0 : index
    %c192_296 = arith.constant 192 : index
    %247 = vector.load %arg11[%c0_295, %c192_296] : memref<1x1568xf32, #tpu.memory_space<vmem>>, vector<1x32xf32>
    tpu.vector_store %arg11[%c0_295, %c192_296], %246 {strides = array<i32>} : memref<1x1568xf32, #tpu.memory_space<vmem>>, vector<1x32xf32>,
    %248 = vector.extract_strided_slice %233 {offsets = [7, 0], sizes = [1, 32], strides = [1, 1]} : vector<49x32xf32> to vector<1x32xf32>
    %c0_297 = arith.constant 0 : index
    %c224_298 = arith.constant 224 : index
    %249 = vector.load %arg11[%c0_297, %c224_298] : memref<1x1568xf32, #tpu.memory_space<vmem>>, vector<1x32xf32>
    tpu.vector_store %arg11[%c0_297, %c224_298], %248 {strides = array<i32>} : memref<1x1568xf32, #tpu.memory_space<vmem>>, vector<1x32xf32>,
    %250 = vector.extract_strided_slice %233 {offsets = [8, 0], sizes = [1, 32], strides = [1, 1]} : vector<49x32xf32> to vector<1x32xf32>
    %c0_299 = arith.constant 0 : index
    %c256 = arith.constant 256 : index
    %251 = vector.load %arg11[%c0_299, %c256] : memref<1x1568xf32, #tpu.memory_space<vmem>>, vector<1x32xf32>
    tpu.vector_store %arg11[%c0_299, %c256], %250 {strides = array<i32>} : memref<1x1568xf32, #tpu.memory_space<vmem>>, vector<1x32xf32>,
    %252 = vector.extract_strided_slice %233 {offsets = [9, 0], sizes = [1, 32], strides = [1, 1]} : vector<49x32xf32> to vector<1x32xf32>
    %c0_300 = arith.constant 0 : index
    %c288 = arith.constant 288 : index
    %253 = vector.load %arg11[%c0_300, %c288] : memref<1x1568xf32, #tpu.memory_space<vmem>>, vector<1x32xf32>
    tpu.vector_store %arg11[%c0_300, %c288], %252 {strides = array<i32>} : memref<1x1568xf32, #tpu.memory_space<vmem>>, vector<1x32xf32>,
    %254 = vector.extract_strided_slice %233 {offsets = [10, 0], sizes = [1, 32], strides = [1, 1]} : vector<49x32xf32> to vector<1x32xf32>
    %c0_301 = arith.constant 0 : index
    %c320 = arith.constant 320 : index
    %255 = vector.load %arg11[%c0_301, %c320] : memref<1x1568xf32, #tpu.memory_space<vmem>>, vector<1x32xf32>
    tpu.vector_store %arg11[%c0_301, %c320], %254 {strides = array<i32>} : memref<1x1568xf32, #tpu.memory_space<vmem>>, vector<1x32xf32>,
    %256 = vector.extract_strided_slice %233 {offsets = [11, 0], sizes = [1, 32], strides = [1, 1]} : vector<49x32xf32> to vector<1x32xf32>
    %c0_302 = arith.constant 0 : index
    %c352 = arith.constant 352 : index
    %257 = vector.load %arg11[%c0_302, %c352] : memref<1x1568xf32, #tpu.memory_space<vmem>>, vector<1x32xf32>
    tpu.vector_store %arg11[%c0_302, %c352], %256 {strides = array<i32>} : memref<1x1568xf32, #tpu.memory_space<vmem>>, vector<1x32xf32>,
    %258 = vector.extract_strided_slice %233 {offsets = [12, 0], sizes = [1, 32], strides = [1, 1]} : vector<49x32xf32> to vector<1x32xf32>
    %c0_303 = arith.constant 0 : index
    %c384 = arith.constant 384 : index
    %259 = vector.load %arg11[%c0_303, %c384] : memref<1x1568xf32, #tpu.memory_space<vmem>>, vector<1x32xf32>
    tpu.vector_store %arg11[%c0_303, %c384], %258 {strides = array<i32>} : memref<1x1568xf32, #tpu.memory_space<vmem>>, vector<1x32xf32>,
    %260 = vector.extract_strided_slice %233 {offsets = [13, 0], sizes = [1, 32], strides = [1, 1]} : vector<49x32xf32> to vector<1x32xf32>
    %c0_304 = arith.constant 0 : index
    %c416 = arith.constant 416 : index
    %261 = vector.load %arg11[%c0_304, %c416] : memref<1x1568xf32, #tpu.memory_space<vmem>>, vector<1x32xf32>
    tpu.vector_store %arg11[%c0_304, %c416], %260 {strides = array<i32>} : memref<1x1568xf32, #tpu.memory_space<vmem>>, vector<1x32xf32>,
    %262 = vector.extract_strided_slice %233 {offsets = [14, 0], sizes = [1, 32], strides = [1, 1]} : vector<49x32xf32> to vector<1x32xf32>
    %c0_305 = arith.constant 0 : index
    %c448 = arith.constant 448 : index
    %263 = vector.load %arg11[%c0_305, %c448] : memref<1x1568xf32, #tpu.memory_space<vmem>>, vector<1x32xf32>
    tpu.vector_store %arg11[%c0_305, %c448], %262 {strides = array<i32>} : memref<1x1568xf32, #tpu.memory_space<vmem>>, vector<1x32xf32>,
    %264 = vector.extract_strided_slice %233 {offsets = [15, 0], sizes = [1, 32], strides = [1, 1]} : vector<49x32xf32> to vector<1x32xf32>
    %c0_306 = arith.constant 0 : index
    %c480 = arith.constant 480 : index
    %265 = vector.load %arg11[%c0_306, %c480] : memref<1x1568xf32, #tpu.memory_space<vmem>>, vector<1x32xf32>
    tpu.vector_store %arg11[%c0_306, %c480], %264 {strides = array<i32>} : memref<1x1568xf32, #tpu.memory_space<vmem>>, vector<1x32xf32>,
    %266 = vector.extract_strided_slice %233 {offsets = [16, 0], sizes = [1, 32], strides = [1, 1]} : vector<49x32xf32> to vector<1x32xf32>
    %c0_307 = arith.constant 0 : index
    %c512 = arith.constant 512 : index
    %267 = vector.load %arg11[%c0_307, %c512] : memref<1x1568xf32, #tpu.memory_space<vmem>>, vector<1x32xf32>
    tpu.vector_store %arg11[%c0_307, %c512], %266 {strides = array<i32>} : memref<1x1568xf32, #tpu.memory_space<vmem>>, vector<1x32xf32>,
    %268 = vector.extract_strided_slice %233 {offsets = [17, 0], sizes = [1, 32], strides = [1, 1]} : vector<49x32xf32> to vector<1x32xf32>
    %c0_308 = arith.constant 0 : index
    %c544 = arith.constant 544 : index
    %269 = vector.load %arg11[%c0_308, %c544] : memref<1x1568xf32, #tpu.memory_space<vmem>>, vector<1x32xf32>
    tpu.vector_store %arg11[%c0_308, %c544], %268 {strides = array<i32>} : memref<1x1568xf32, #tpu.memory_space<vmem>>, vector<1x32xf32>,
    %270 = vector.extract_strided_slice %233 {offsets = [18, 0], sizes = [1, 32], strides = [1, 1]} : vector<49x32xf32> to vector<1x32xf32>
    %c0_309 = arith.constant 0 : index
    %c576 = arith.constant 576 : index
    %271 = vector.load %arg11[%c0_309, %c576] : memref<1x1568xf32, #tpu.memory_space<vmem>>, vector<1x32xf32>
    tpu.vector_store %arg11[%c0_309, %c576], %270 {strides = array<i32>} : memref<1x1568xf32, #tpu.memory_space<vmem>>, vector<1x32xf32>,
    %272 = vector.extract_strided_slice %233 {offsets = [19, 0], sizes = [1, 32], strides = [1, 1]} : vector<49x32xf32> to vector<1x32xf32>
    %c0_310 = arith.constant 0 : index
    %c608 = arith.constant 608 : index
    %273 = vector.load %arg11[%c0_310, %c608] : memref<1x1568xf32, #tpu.memory_space<vmem>>, vector<1x32xf32>
    tpu.vector_store %arg11[%c0_310, %c608], %272 {strides = array<i32>} : memref<1x1568xf32, #tpu.memory_space<vmem>>, vector<1x32xf32>,
    %274 = vector.extract_strided_slice %233 {offsets = [20, 0], sizes = [1, 32], strides = [1, 1]} : vector<49x32xf32> to vector<1x32xf32>
    %c0_311 = arith.constant 0 : index
    %c640 = arith.constant 640 : index
    %275 = vector.load %arg11[%c0_311, %c640] : memref<1x1568xf32, #tpu.memory_space<vmem>>, vector<1x32xf32>
    tpu.vector_store %arg11[%c0_311, %c640], %274 {strides = array<i32>} : memref<1x1568xf32, #tpu.memory_space<vmem>>, vector<1x32xf32>,
    %276 = vector.extract_strided_slice %233 {offsets = [21, 0], sizes = [1, 32], strides = [1, 1]} : vector<49x32xf32> to vector<1x32xf32>
    %c0_312 = arith.constant 0 : index
    %c672 = arith.constant 672 : index
    %277 = vector.load %arg11[%c0_312, %c672] : memref<1x1568xf32, #tpu.memory_space<vmem>>, vector<1x32xf32>
    tpu.vector_store %arg11[%c0_312, %c672], %276 {strides = array<i32>} : memref<1x1568xf32, #tpu.memory_space<vmem>>, vector<1x32xf32>,
    %278 = vector.extract_strided_slice %233 {offsets = [22, 0], sizes = [1, 32], strides = [1, 1]} : vector<49x32xf32> to vector<1x32xf32>
    %c0_313 = arith.constant 0 : index
    %c704 = arith.constant 704 : index
    %279 = vector.load %arg11[%c0_313, %c704] : memref<1x1568xf32, #tpu.memory_space<vmem>>, vector<1x32xf32>
    tpu.vector_store %arg11[%c0_313, %c704], %278 {strides = array<i32>} : memref<1x1568xf32, #tpu.memory_space<vmem>>, vector<1x32xf32>,
    %280 = vector.extract_strided_slice %233 {offsets = [23, 0], sizes = [1, 32], strides = [1, 1]} : vector<49x32xf32> to vector<1x32xf32>
    %c0_314 = arith.constant 0 : index
    %c736 = arith.constant 736 : index
    %281 = vector.load %arg11[%c0_314, %c736] : memref<1x1568xf32, #tpu.memory_space<vmem>>, vector<1x32xf32>
    tpu.vector_store %arg11[%c0_314, %c736], %280 {strides = array<i32>} : memref<1x1568xf32, #tpu.memory_space<vmem>>, vector<1x32xf32>,
    %282 = vector.extract_strided_slice %233 {offsets = [24, 0], sizes = [1, 32], strides = [1, 1]} : vector<49x32xf32> to vector<1x32xf32>
    %c0_315 = arith.constant 0 : index
    %c768 = arith.constant 768 : index
    %283 = vector.load %arg11[%c0_315, %c768] : memref<1x1568xf32, #tpu.memory_space<vmem>>, vector<1x32xf32>
    tpu.vector_store %arg11[%c0_315, %c768], %282 {strides = array<i32>} : memref<1x1568xf32, #tpu.memory_space<vmem>>, vector<1x32xf32>,
    %284 = vector.extract_strided_slice %233 {offsets = [25, 0], sizes = [1, 32], strides = [1, 1]} : vector<49x32xf32> to vector<1x32xf32>
    %c0_316 = arith.constant 0 : index
    %c800 = arith.constant 800 : index
    %285 = vector.load %arg11[%c0_316, %c800] : memref<1x1568xf32, #tpu.memory_space<vmem>>, vector<1x32xf32>
    tpu.vector_store %arg11[%c0_316, %c800], %284 {strides = array<i32>} : memref<1x1568xf32, #tpu.memory_space<vmem>>, vector<1x32xf32>,
    %286 = vector.extract_strided_slice %233 {offsets = [26, 0], sizes = [1, 32], strides = [1, 1]} : vector<49x32xf32> to vector<1x32xf32>
    %c0_317 = arith.constant 0 : index
    %c832 = arith.constant 832 : index
    %287 = vector.load %arg11[%c0_317, %c832] : memref<1x1568xf32, #tpu.memory_space<vmem>>, vector<1x32xf32>
    tpu.vector_store %arg11[%c0_317, %c832], %286 {strides = array<i32>} : memref<1x1568xf32, #tpu.memory_space<vmem>>, vector<1x32xf32>,
    %288 = vector.extract_strided_slice %233 {offsets = [27, 0], sizes = [1, 32], strides = [1, 1]} : vector<49x32xf32> to vector<1x32xf32>
    %c0_318 = arith.constant 0 : index
    %c864 = arith.constant 864 : index
    %289 = vector.load %arg11[%c0_318, %c864] : memref<1x1568xf32, #tpu.memory_space<vmem>>, vector<1x32xf32>
    tpu.vector_store %arg11[%c0_318, %c864], %288 {strides = array<i32>} : memref<1x1568xf32, #tpu.memory_space<vmem>>, vector<1x32xf32>,
    %290 = vector.extract_strided_slice %233 {offsets = [28, 0], sizes = [1, 32], strides = [1, 1]} : vector<49x32xf32> to vector<1x32xf32>
    %c0_319 = arith.constant 0 : index
    %c896 = arith.constant 896 : index
    %291 = vector.load %arg11[%c0_319, %c896] : memref<1x1568xf32, #tpu.memory_space<vmem>>, vector<1x32xf32>
    tpu.vector_store %arg11[%c0_319, %c896], %290 {strides = array<i32>} : memref<1x1568xf32, #tpu.memory_space<vmem>>, vector<1x32xf32>,
    %292 = vector.extract_strided_slice %233 {offsets = [29, 0], sizes = [1, 32], strides = [1, 1]} : vector<49x32xf32> to vector<1x32xf32>
    %c0_320 = arith.constant 0 : index
    %c928 = arith.constant 928 : index
    %293 = vector.load %arg11[%c0_320, %c928] : memref<1x1568xf32, #tpu.memory_space<vmem>>, vector<1x32xf32>
    tpu.vector_store %arg11[%c0_320, %c928], %292 {strides = array<i32>} : memref<1x1568xf32, #tpu.memory_space<vmem>>, vector<1x32xf32>,
    %294 = vector.extract_strided_slice %233 {offsets = [30, 0], sizes = [1, 32], strides = [1, 1]} : vector<49x32xf32> to vector<1x32xf32>
    %c0_321 = arith.constant 0 : index
    %c960 = arith.constant 960 : index
    %295 = vector.load %arg11[%c0_321, %c960] : memref<1x1568xf32, #tpu.memory_space<vmem>>, vector<1x32xf32>
    tpu.vector_store %arg11[%c0_321, %c960], %294 {strides = array<i32>} : memref<1x1568xf32, #tpu.memory_space<vmem>>, vector<1x32xf32>,
    %296 = vector.extract_strided_slice %233 {offsets = [31, 0], sizes = [1, 32], strides = [1, 1]} : vector<49x32xf32> to vector<1x32xf32>
    %c0_322 = arith.constant 0 : index
    %c992 = arith.constant 992 : index
    %297 = vector.load %arg11[%c0_322, %c992] : memref<1x1568xf32, #tpu.memory_space<vmem>>, vector<1x32xf32>
    tpu.vector_store %arg11[%c0_322, %c992], %296 {strides = array<i32>} : memref<1x1568xf32, #tpu.memory_space<vmem>>, vector<1x32xf32>,
    %298 = vector.extract_strided_slice %233 {offsets = [32, 0], sizes = [1, 32], strides = [1, 1]} : vector<49x32xf32> to vector<1x32xf32>
    %c0_323 = arith.constant 0 : index
    %c1024 = arith.constant 1024 : index
    %299 = vector.load %arg11[%c0_323, %c1024] : memref<1x1568xf32, #tpu.memory_space<vmem>>, vector<1x32xf32>
    tpu.vector_store %arg11[%c0_323, %c1024], %298 {strides = array<i32>} : memref<1x1568xf32, #tpu.memory_space<vmem>>, vector<1x32xf32>,
    %300 = vector.extract_strided_slice %233 {offsets = [33, 0], sizes = [1, 32], strides = [1, 1]} : vector<49x32xf32> to vector<1x32xf32>
    %c0_324 = arith.constant 0 : index
    %c1056 = arith.constant 1056 : index
    %301 = vector.load %arg11[%c0_324, %c1056] : memref<1x1568xf32, #tpu.memory_space<vmem>>, vector<1x32xf32>
    tpu.vector_store %arg11[%c0_324, %c1056], %300 {strides = array<i32>} : memref<1x1568xf32, #tpu.memory_space<vmem>>, vector<1x32xf32>,
    %302 = vector.extract_strided_slice %233 {offsets = [34, 0], sizes = [1, 32], strides = [1, 1]} : vector<49x32xf32> to vector<1x32xf32>
    %c0_325 = arith.constant 0 : index
    %c1088 = arith.constant 1088 : index
    %303 = vector.load %arg11[%c0_325, %c1088] : memref<1x1568xf32, #tpu.memory_space<vmem>>, vector<1x32xf32>
    tpu.vector_store %arg11[%c0_325, %c1088], %302 {strides = array<i32>} : memref<1x1568xf32, #tpu.memory_space<vmem>>, vector<1x32xf32>,
    %304 = vector.extract_strided_slice %233 {offsets = [35, 0], sizes = [1, 32], strides = [1, 1]} : vector<49x32xf32> to vector<1x32xf32>
    %c0_326 = arith.constant 0 : index
    %c1120 = arith.constant 1120 : index
    %305 = vector.load %arg11[%c0_326, %c1120] : memref<1x1568xf32, #tpu.memory_space<vmem>>, vector<1x32xf32>
    tpu.vector_store %arg11[%c0_326, %c1120], %304 {strides = array<i32>} : memref<1x1568xf32, #tpu.memory_space<vmem>>, vector<1x32xf32>,
    %306 = vector.extract_strided_slice %233 {offsets = [36, 0], sizes = [1, 32], strides = [1, 1]} : vector<49x32xf32> to vector<1x32xf32>
    %c0_327 = arith.constant 0 : index
    %c1152 = arith.constant 1152 : index
    %307 = vector.load %arg11[%c0_327, %c1152] : memref<1x1568xf32, #tpu.memory_space<vmem>>, vector<1x32xf32>
    tpu.vector_store %arg11[%c0_327, %c1152], %306 {strides = array<i32>} : memref<1x1568xf32, #tpu.memory_space<vmem>>, vector<1x32xf32>,
    %308 = vector.extract_strided_slice %233 {offsets = [37, 0], sizes = [1, 32], strides = [1, 1]} : vector<49x32xf32> to vector<1x32xf32>
    %c0_328 = arith.constant 0 : index
    %c1184 = arith.constant 1184 : index
    %309 = vector.load %arg11[%c0_328, %c1184] : memref<1x1568xf32, #tpu.memory_space<vmem>>, vector<1x32xf32>
    tpu.vector_store %arg11[%c0_328, %c1184], %308 {strides = array<i32>} : memref<1x1568xf32, #tpu.memory_space<vmem>>, vector<1x32xf32>,
    %310 = vector.extract_strided_slice %233 {offsets = [38, 0], sizes = [1, 32], strides = [1, 1]} : vector<49x32xf32> to vector<1x32xf32>
    %c0_329 = arith.constant 0 : index
    %c1216 = arith.constant 1216 : index
    %311 = vector.load %arg11[%c0_329, %c1216] : memref<1x1568xf32, #tpu.memory_space<vmem>>, vector<1x32xf32>
    tpu.vector_store %arg11[%c0_329, %c1216], %310 {strides = array<i32>} : memref<1x1568xf32, #tpu.memory_space<vmem>>, vector<1x32xf32>,
    %312 = vector.extract_strided_slice %233 {offsets = [39, 0], sizes = [1, 32], strides = [1, 1]} : vector<49x32xf32> to vector<1x32xf32>
    %c0_330 = arith.constant 0 : index
    %c1248 = arith.constant 1248 : index
    %313 = vector.load %arg11[%c0_330, %c1248] : memref<1x1568xf32, #tpu.memory_space<vmem>>, vector<1x32xf32>
    tpu.vector_store %arg11[%c0_330, %c1248], %312 {strides = array<i32>} : memref<1x1568xf32, #tpu.memory_space<vmem>>, vector<1x32xf32>,
    %314 = vector.extract_strided_slice %233 {offsets = [40, 0], sizes = [1, 32], strides = [1, 1]} : vector<49x32xf32> to vector<1x32xf32>
    %c0_331 = arith.constant 0 : index
    %c1280 = arith.constant 1280 : index
    %315 = vector.load %arg11[%c0_331, %c1280] : memref<1x1568xf32, #tpu.memory_space<vmem>>, vector<1x32xf32>
    tpu.vector_store %arg11[%c0_331, %c1280], %314 {strides = array<i32>} : memref<1x1568xf32, #tpu.memory_space<vmem>>, vector<1x32xf32>,
    %316 = vector.extract_strided_slice %233 {offsets = [41, 0], sizes = [1, 32], strides = [1, 1]} : vector<49x32xf32> to vector<1x32xf32>
    %c0_332 = arith.constant 0 : index
    %c1312 = arith.constant 1312 : index
    %317 = vector.load %arg11[%c0_332, %c1312] : memref<1x1568xf32, #tpu.memory_space<vmem>>, vector<1x32xf32>
    tpu.vector_store %arg11[%c0_332, %c1312], %316 {strides = array<i32>} : memref<1x1568xf32, #tpu.memory_space<vmem>>, vector<1x32xf32>,
    %318 = vector.extract_strided_slice %233 {offsets = [42, 0], sizes = [1, 32], strides = [1, 1]} : vector<49x32xf32> to vector<1x32xf32>
    %c0_333 = arith.constant 0 : index
    %c1344 = arith.constant 1344 : index
    %319 = vector.load %arg11[%c0_333, %c1344] : memref<1x1568xf32, #tpu.memory_space<vmem>>, vector<1x32xf32>
    tpu.vector_store %arg11[%c0_333, %c1344], %318 {strides = array<i32>} : memref<1x1568xf32, #tpu.memory_space<vmem>>, vector<1x32xf32>,
    %320 = vector.extract_strided_slice %233 {offsets = [43, 0], sizes = [1, 32], strides = [1, 1]} : vector<49x32xf32> to vector<1x32xf32>
    %c0_334 = arith.constant 0 : index
    %c1376 = arith.constant 1376 : index
    %321 = vector.load %arg11[%c0_334, %c1376] : memref<1x1568xf32, #tpu.memory_space<vmem>>, vector<1x32xf32>
    tpu.vector_store %arg11[%c0_334, %c1376], %320 {strides = array<i32>} : memref<1x1568xf32, #tpu.memory_space<vmem>>, vector<1x32xf32>,
    %322 = vector.extract_strided_slice %233 {offsets = [44, 0], sizes = [1, 32], strides = [1, 1]} : vector<49x32xf32> to vector<1x32xf32>
    %c0_335 = arith.constant 0 : index
    %c1408 = arith.constant 1408 : index
    %323 = vector.load %arg11[%c0_335, %c1408] : memref<1x1568xf32, #tpu.memory_space<vmem>>, vector<1x32xf32>
    tpu.vector_store %arg11[%c0_335, %c1408], %322 {strides = array<i32>} : memref<1x1568xf32, #tpu.memory_space<vmem>>, vector<1x32xf32>,
    %324 = vector.extract_strided_slice %233 {offsets = [45, 0], sizes = [1, 32], strides = [1, 1]} : vector<49x32xf32> to vector<1x32xf32>
    %c0_336 = arith.constant 0 : index
    %c1440 = arith.constant 1440 : index
    %325 = vector.load %arg11[%c0_336, %c1440] : memref<1x1568xf32, #tpu.memory_space<vmem>>, vector<1x32xf32>
    tpu.vector_store %arg11[%c0_336, %c1440], %324 {strides = array<i32>} : memref<1x1568xf32, #tpu.memory_space<vmem>>, vector<1x32xf32>,
    %326 = vector.extract_strided_slice %233 {offsets = [46, 0], sizes = [1, 32], strides = [1, 1]} : vector<49x32xf32> to vector<1x32xf32>
    %c0_337 = arith.constant 0 : index
    %c1472 = arith.constant 1472 : index
    %327 = vector.load %arg11[%c0_337, %c1472] : memref<1x1568xf32, #tpu.memory_space<vmem>>, vector<1x32xf32>
    tpu.vector_store %arg11[%c0_337, %c1472], %326 {strides = array<i32>} : memref<1x1568xf32, #tpu.memory_space<vmem>>, vector<1x32xf32>,
    %328 = vector.extract_strided_slice %233 {offsets = [47, 0], sizes = [1, 32], strides = [1, 1]} : vector<49x32xf32> to vector<1x32xf32>
    %c0_338 = arith.constant 0 : index
    %c1504 = arith.constant 1504 : index
    %329 = vector.load %arg11[%c0_338, %c1504] : memref<1x1568xf32, #tpu.memory_space<vmem>>, vector<1x32xf32>
    tpu.vector_store %arg11[%c0_338, %c1504], %328 {strides = array<i32>} : memref<1x1568xf32, #tpu.memory_space<vmem>>, vector<1x32xf32>,
    %330 = vector.extract_strided_slice %233 {offsets = [48, 0], sizes = [1, 32], strides = [1, 1]} : vector<49x32xf32> to vector<1x32xf32>
    %c0_339 = arith.constant 0 : index
    %c1536 = arith.constant 1536 : index
    %331 = vector.load %arg11[%c0_339, %c1536] : memref<1x1568xf32, #tpu.memory_space<vmem>>, vector<1x32xf32>
    tpu.vector_store %arg11[%c0_339, %c1536], %330 {strides = array<i32>} : memref<1x1568xf32, #tpu.memory_space<vmem>>, vector<1x32xf32>,
    %c0_340 = arith.constant 0 : index
    %c0_341 = arith.constant 0 : index
    %332 = vector.load %arg11[%c0_340, %c0_341] : memref<1x1568xf32, #tpu.memory_space<vmem>>, vector<1x1568xf32>
    %333 = arith.truncf %332 : vector<1x1568xf32> to vector<1x1568xbf16>
    %c0_342 = arith.constant 0 : index
    %c0_343 = arith.constant 0 : index
    %334 = vector.load %arg6[%c0_342, %c0_343] : memref<1568x128xbf16, #tpu.memory_space<vmem>>, vector<1568x128xbf16>
    %cst_344 = arith.constant dense<0.000000e+00> : vector<1x128xf32>
    %335 = tpu.matmul %333, %334, %cst_344 {dimension_numbers = #tpu.dot_dimension_numbers<[1], [0], [0], [1], [0, 0, 1, 1], [], []>} : vector<1x1568xbf16>, vector<1568x128xbf16>, vector<1x128xf32> -> vector<1x128xf32>
    %c0_345 = arith.constant 0 : index
    %c0_346 = arith.constant 0 : index
    %336 = vector.load %arg7[%c0_345, %c0_346] : memref<1x128xf32, #tpu.memory_space<vmem>>, vector<1x128xf32>
    %337 = arith.addf %335, %336 : vector<1x128xf32>
    %c0_347 = arith.constant 0 : index
    %c0_348 = arith.constant 0 : index
    %c0_349 = arith.constant 0 : index
    %338 = vector.load %arg8[%c0_347, %c0_348, %c0_349] : memref<1x1x128xf32, #tpu.memory_space<vmem>>, vector<1x1x128xf32>
    %339 = vector.shape_cast %338 : vector<1x1x128xf32> to vector<1x128xf32>
    %340 = vector.shape_cast %337 : vector<1x128xf32> to vector<1x1x128xf32>
    tpu.vector_store %arg8[%c0_347, %c0_348, %c0_349], %340 {strides = array<i32>} : memref<1x1x128xf32, #tpu.memory_space<vmem>>, vector<1x1x128xf32>,
    return
  }
  func.func @transform_0(%arg0: i32) -> (i32, i32, i32) {
    %c0_i32 = arith.constant 0 : i32
    %c0_i32_0 = arith.constant 0 : i32
    %c0_i32_1 = arith.constant 0 : i32
    return %arg0, %c0_i32, %c0_i32_0 : i32, i32, i32
  }
  func.func @transform_1(%arg0: i32) -> (i32, i32) {
    %c0_i32 = arith.constant 0 : i32
    %c0_i32_0 = arith.constant 0 : i32
    %c0_i32_1 = arith.constant 0 : i32
    return %c0_i32, %c0_i32_0 : i32, i32
  }
  func.func @transform_2(%arg0: i32) -> (i32, i32) {
    %c0_i32 = arith.constant 0 : i32
    %c0_i32_0 = arith.constant 0 : i32
    %c0_i32_1 = arith.constant 0 : i32
    return %c0_i32, %c0_i32_0 : i32, i32
  }
  func.func @transform_3(%arg0: i32) -> (i32, i32) {
    %c0_i32 = arith.constant 0 : i32
    %c0_i32_0 = arith.constant 0 : i32
    %c0_i32_1 = arith.constant 0 : i32
    return %c0_i32, %c0_i32_0 : i32, i32
  }
  func.func @transform_4(%arg0: i32) -> (i32, i32) {
    %c0_i32 = arith.constant 0 : i32
    %c0_i32_0 = arith.constant 0 : i32
    %c0_i32_1 = arith.constant 0 : i32
    return %c0_i32, %c0_i32_0 : i32, i32
  }
  func.func @transform_5(%arg0: i32) -> (i32, i32) {
    %c0_i32 = arith.constant 0 : i32
    %c0_i32_0 = arith.constant 0 : i32
    %c0_i32_1 = arith.constant 0 : i32
    return %c0_i32, %c0_i32_0 : i32, i32
  }
  func.func @transform_6(%arg0: i32) -> (i32, i32) {
    %c0_i32 = arith.constant 0 : i32
    %c0_i32_0 = arith.constant 0 : i32
    %c0_i32_1 = arith.constant 0 : i32
    return %c0_i32, %c0_i32_0 : i32, i32
  }
  func.func @transform_7(%arg0: i32) -> (i32, i32, i32) {
    %c0_i32 = arith.constant 0 : i32
    %c0_i32_0 = arith.constant 0 : i32
    %c0_i32_1 = arith.constant 0 : i32
    return %arg0, %c0_i32, %c0_i32_0 : i32, i32, i32
  }
}

</mosaic_0001>

<llo_original>
// kernel: encoder_forward.1
$region0: #{encoder_forward.1}
  #allocation0 [shape = 'u32[]', space=smem, size = 0x4, offset = 0x4, fixed_abs, tag = 'smem constant byte address 0x4 - core index']
  #allocation1 [shape = 'u32[144,128]{1,0:T(1,128)}', space=vmem, size = 0x12000, scoped, tag = 'internal scratch']
  #allocation2 [shape = 'f32[256,16]{1,0:T(8,128)}', space=vmem, size = 0x20000, scoped, tag = 'scratch operand']
  #allocation3 [shape = 'f32[49,144]{1,0:T(8,128)}', space=vmem, size = 0xe000, scoped, tag = 'scratch operand']
  #allocation4 [shape = 'f32[1,1568]{1,0:T(1,128)}', space=vmem, size = 0x1a00, scoped, tag = 'scratch operand']
  %s0 = inlined_call_operand.vmem [shape: f32[2,196,9], index: 0, kind: input, shape index: {}]
  %s1 = inlined_call_operand.vmem [shape: f32[9,16], index: 1, kind: input, shape index: {}]
  %s2 = inlined_call_operand.vmem [shape: f32[1,16], index: 2, kind: input, shape index: {}]
  %s3 = inlined_call_operand.vmem [shape: bf16[144,32], index: 3, kind: input, shape index: {}]
  %s4 = inlined_call_operand.vmem [shape: f32[1,32], index: 4, kind: input, shape index: {}]
  %s5 = inlined_call_operand.vmem [shape: bf16[1568,128], index: 5, kind: input, shape index: {}]
  %s6 = inlined_call_operand.vmem [shape: f32[1,128], index: 6, kind: input, shape index: {}]
  %s7 = inlined_call_operand.hbm [shape: f32[2,1,128], index: 7, kind: output, shape index: {}]
  %s8 = sld [smem:[#allocation0]]
  $region61: #{encoder_forward.1} parent=0
    _
  %s10 = ssub.s32 1, %s8
  %s11 = scalar_select 0, %s10, %s8
  $region1: #{encoder_forward.1} parent=0
    #allocation5 [shape = 'u8[1024]{0}', space=vmem, size = 0x400, scoped, tag = 'output window, operand 0']
    #allocation6 [shape = 's32[2]{0}', space=sflag, size = 0x8, scoped, tag = 'scoped memory for encoder_forward.1']
    %12 = vsyncpa [#allocation6], 0
    %s13 = scalar_lea.sflag [#allocation6], 1
    %14 = vsyncpa %s13, 0
    loop: start=0, step=1, limit=4
    $region2: #{encoder_forward.1} parent=1 // loop_pre_header
      _
    $region3: #{encoder_forward.1} parent=1 // loop_header
      %s16 = sphi 0, %s20
      %p17 = scmp.ge.s32.totalorder %s16, 4
      %s26 = sphi 0, %s28
      %s29 = sphi 0, %s26
      %s30 = sphi 0, %s29
      %s46 = sphi 0, %s30
      %s50 = sphi 0, %s50
      %s52 = sphi 0, %s50
      %s53 = sphi 0, %s52
      %s67 = sphi 0, %s53
      %s71 = sphi 0, %s71
      %s73 = sphi 0, %s71
      %s74 = sphi 0, %s73
      %s88 = sphi 0, %s74
      %s92 = sphi 0, %s92
      %s94 = sphi 0, %s92
      %s95 = sphi 0, %s94
      %s109 = sphi 0, %s95
      %s113 = sphi 0, %s113
      %s115 = sphi 0, %s113
      %s116 = sphi 0, %s115
      %s130 = sphi 0, %s116
      %s134 = sphi 0, %s134
      %s136 = sphi 0, %s134
      %s137 = sphi 0, %s136
      %s151 = sphi 0, %s137
      %s155 = sphi 0, %s155
      %s157 = sphi 0, %s155
      %s158 = sphi 0, %s157
      %s172 = sphi 0, %s158
      %s178 = sphi 0, %s180
      %s181 = sphi 0, %s178
      %s182 = sphi 0, %s181
      %s198 = sphi 0, %s182
    $region4: #{encoder_forward.1} parent=1 // loop_header_branch
      %19 = sbr.rel (%p17) target = $region8
    $region5: #{encoder_forward.1} parent=1 // loop_body
      %s21 = ssub.s32 %s16, 1
      %s22 = ssub.s32 %s16, 2
      %s23 = sadd.s32 %s16, 1
      %s24 = ssub.s32 %s16, %s23
      %p25 = scmp.eq.s32.totalorder %s24, 0
      %s27 = sadd.s32 %s26, 1
      %s28 = scalar_select %p25, %s26, %s27
      %p31 = pneg %p25
      %p32 = scmp.eq.s32.totalorder %s16, 1
      %p33 = por %p31, %p32
      %p34 = scmp.ne.s32.totalorder %s26, %s29
      %p35 = scmp.eq.s32.totalorder %s16, 0
      %p36 = por %p34, %p35
      %p37 = scmp.ne.s32.totalorder %s26, %s29
      %p38 = scmp.eq.s32.totalorder %s21, 1
      %p39 = por %p37, %p38
      %p40 = scmp.ne.s32.totalorder %s29, %s30
      %p41 = scmp.eq.s32.totalorder %s21, 0
      %p42 = por %p40, %p41
      %p43 = scmp.ne.s32.totalorder %s29, %s30
      %p44 = scmp.eq.s32.totalorder %s22, 1
      %p45 = por %p43, %p44
      %p47 = scmp.ne.s32.totalorder %s30, %s46
      %p48 = scmp.eq.s32.totalorder %s22, 0
      %p49 = por %p47, %p48
      %s51 = sadd.s32 %s50, 1
      %p54 = scmp.eq.s32.totalorder %s16, 1
      %p55 = scmp.ne.s32.totalorder %s50, %s52
      %p56 = scmp.eq.s32.totalorder %s16, 0
      %p57 = por %p55, %p56
      %p58 = scmp.ne.s32.totalorder %s50, %s52
      %p59 = scmp.eq.s32.totalorder %s21, 1
      %p60 = por %p58, %p59
      %p61 = scmp.ne.s32.totalorder %s52, %s53
      %p62 = scmp.eq.s32.totalorder %s21, 0
      %p63 = por %p61, %p62
      %p64 = scmp.ne.s32.totalorder %s52, %s53
      %p65 = scmp.eq.s32.totalorder %s22, 1
      %p66 = por %p64, %p65
      %p68 = scmp.ne.s32.totalorder %s53, %s67
      %p69 = scmp.eq.s32.totalorder %s22, 0
      %p70 = por %p68, %p69
      %s72 = sadd.s32 %s71, 1
      %p75 = scmp.eq.s32.totalorder %s16, 1
      %p76 = scmp.ne.s32.totalorder %s71, %s73
      %p77 = scmp.eq.s32.totalorder %s16, 0
      %p78 = por %p76, %p77
      %p79 = scmp.ne.s32.totalorder %s71, %s73
      %p80 = scmp.eq.s32.totalorder %s21, 1
      %p81 = por %p79, %p80
      %p82 = scmp.ne.s32.totalorder %s73, %s74
      %p83 = scmp.eq.s32.totalorder %s21, 0
      %p84 = por %p82, %p83
      %p85 = scmp.ne.s32.totalorder %s73, %s74
      %p86 = scmp.eq.s32.totalorder %s22, 1
      %p87 = por %p85, %p86
      %p89 = scmp.ne.s32.totalorder %s74, %s88
      %p90 = scmp.eq.s32.totalorder %s22, 0
      %p91 = por %p89, %p90
      %s93 = sadd.s32 %s92, 1
      %p96 = scmp.eq.s32.totalorder %s16, 1
      %p97 = scmp.ne.s32.totalorder %s92, %s94
      %p98 = scmp.eq.s32.totalorder %s16, 0
      %p99 = por %p97, %p98
      %p100 = scmp.ne.s32.totalorder %s92, %s94
      %p101 = scmp.eq.s32.totalorder %s21, 1
      %p102 = por %p100, %p101
      %p103 = scmp.ne.s32.totalorder %s94, %s95
      %p104 = scmp.eq.s32.totalorder %s21, 0
      %p105 = por %p103, %p104
      %p106 = scmp.ne.s32.totalorder %s94, %s95
      %p107 = scmp.eq.s32.totalorder %s22, 1
      %p108 = por %p106, %p107
      %p110 = scmp.ne.s32.totalorder %s95, %s109
      %p111 = scmp.eq.s32.totalorder %s22, 0
      %p112 = por %p110, %p111
      %s114 = sadd.s32 %s113, 1
      %p117 = scmp.eq.s32.totalorder %s16, 1
      %p118 = scmp.ne.s32.totalorder %s113, %s115
      %p119 = scmp.eq.s32.totalorder %s16, 0
      %p120 = por %p118, %p119
      %p121 = scmp.ne.s32.totalorder %s113, %s115
      %p122 = scmp.eq.s32.totalorder %s21, 1
      %p123 = por %p121, %p122
      %p124 = scmp.ne.s32.totalorder %s115, %s116
      %p125 = scmp.eq.s32.totalorder %s21, 0
      %p126 = por %p124, %p125
      %p127 = scmp.ne.s32.totalorder %s115, %s116
      %p128 = scmp.eq.s32.totalorder %s22, 1
      %p129 = por %p127, %p128
      %p131 = scmp.ne.s32.totalorder %s116, %s130
      %p132 = scmp.eq.s32.totalorder %s22, 0
      %p133 = por %p131, %p132
      %s135 = sadd.s32 %s134, 1
      %p138 = scmp.eq.s32.totalorder %s16, 1
      %p139 = scmp.ne.s32.totalorder %s134, %s136
      %p140 = scmp.eq.s32.totalorder %s16, 0
      %p141 = por %p139, %p140
      %p142 = scmp.ne.s32.totalorder %s134, %s136
      %p143 = scmp.eq.s32.totalorder %s21, 1
      %p144 = por %p142, %p143
      %p145 = scmp.ne.s32.totalorder %s136, %s137
      %p146 = scmp.eq.s32.totalorder %s21, 0
      %p147 = por %p145, %p146
      %p148 = scmp.ne.s32.totalorder %s136, %s137
      %p149 = scmp.eq.s32.totalorder %s22, 1
      %p150 = por %p148, %p149
      %p152 = scmp.ne.s32.totalorder %s137, %s151
      %p153 = scmp.eq.s32.totalorder %s22, 0
      %p154 = por %p152, %p153
      %s156 = sadd.s32 %s155, 1
      %p159 = scmp.eq.s32.totalorder %s16, 1
      %p160 = scmp.ne.s32.totalorder %s155, %s157
      %p161 = scmp.eq.s32.totalorder %s16, 0
      %p162 = por %p160, %p161
      %p163 = scmp.ne.s32.totalorder %s155, %s157
      %p164 = scmp.eq.s32.totalorder %s21, 1
      %p165 = por %p163, %p164
      %p166 = scmp.ne.s32.totalorder %s157, %s158
      %p167 = scmp.eq.s32.totalorder %s21, 0
      %p168 = por %p166, %p167
      %p169 = scmp.ne.s32.totalorder %s157, %s158
      %p170 = scmp.eq.s32.totalorder %s22, 1
      %p171 = por %p169, %p170
      %p173 = scmp.ne.s32.totalorder %s158, %s172
      %p174 = scmp.eq.s32.totalorder %s22, 0
      %p175 = por %p173, %p174
      %s176 = ssub.s32 %s16, %s23
      %p177 = scmp.eq.s32.totalorder %s176, 0
      %s179 = sadd.s32 %s178, 1
      %s180 = scalar_select %p177, %s178, %s179
      %p183 = pneg %p177
      %p184 = scmp.eq.s32.totalorder %s16, 1
      %p185 = por %p183, %p184
      %p186 = scmp.ne.s32.totalorder %s178, %s181
      %p187 = scmp.eq.s32.totalorder %s16, 0
      %p188 = por %p186, %p187
      %p189 = scmp.ne.s32.totalorder %s178, %s181
      %p190 = scmp.eq.s32.totalorder %s21, 1
      %p191 = por %p189, %p190
      %p192 = scmp.ne.s32.totalorder %s181, %s182
      %p193 = scmp.eq.s32.totalorder %s21, 0
      %p194 = por %p192, %p193
      %p195 = scmp.ne.s32.totalorder %s181, %s182
      %p196 = scmp.eq.s32.totalorder %s22, 1
      %p197 = por %p195, %p196
      %p199 = scmp.ne.s32.totalorder %s182, %s198
      %p200 = scmp.eq.s32.totalorder %s22, 0
      %p201 = por %p199, %p200
      %p202 = scmp.le.s32.totalorder 1, %s16
      %p203 = scmp.lt.s32.totalorder %s16, 3
      %p204 = pnand %p202, %p203
      %p205 = pneg %p204
      // Predicated region
      $region9: #{encoder_forward.1} parent=5 // pred_check
        _
      $region10: #{encoder_forward.1} parent=5 // pred_check_branch
        %207 = sbr.rel (%p204) target = $region12
      $region11: #{encoder_forward.1} parent=5 // pred_region
        %s208 = ssub.s32 %s16, 1
        // Predicated region
        $region13: #{encoder_forward.1} parent=11 // pred_check
          %p209 = pneg %p63
        $region14: #{encoder_forward.1} parent=11 // pred_check_branch
          %211 = sbr.rel (%p209) target = $region16
        $region15: #{encoder_forward.1} parent=11 // pred_region
          _
        $region16: #{encoder_forward.1} parent=11 // pred_fallthru
          _
        // Predicated region
        $region17: #{encoder_forward.1} parent=11 // pred_check
          %p212 = pneg %p84
        $region18: #{encoder_forward.1} parent=11 // pred_check_branch
          %214 = sbr.rel (%p212) target = $region20
        $region19: #{encoder_forward.1} parent=11 // pred_region
          _
        $region20: #{encoder_forward.1} parent=11 // pred_fallthru
          _
        // Predicated region
        $region21: #{encoder_forward.1} parent=11 // pred_check
          %p215 = pneg %p105
        $region22: #{encoder_forward.1} parent=11 // pred_check_branch
          %217 = sbr.rel (%p215) target = $region24
        $region23: #{encoder_forward.1} parent=11 // pred_region
          _
        $region24: #{encoder_forward.1} parent=11 // pred_fallthru
          _
        // Predicated region
        $region25: #{encoder_forward.1} parent=11 // pred_check
          %p218 = pneg %p126
        $region26: #{encoder_forward.1} parent=11 // pred_check_branch
          %220 = sbr.rel (%p218) target = $region28
        $region27: #{encoder_forward.1} parent=11 // pred_region
          _
        $region28: #{encoder_forward.1} parent=11 // pred_fallthru
          _
        // Predicated region
        $region29: #{encoder_forward.1} parent=11 // pred_check
          %p221 = pneg %p147
        $region30: #{encoder_forward.1} parent=11 // pred_check_branch
          %223 = sbr.rel (%p221) target = $region32
        $region31: #{encoder_forward.1} parent=11 // pred_region
          _
        $region32: #{encoder_forward.1} parent=11 // pred_fallthru
          _
        // Predicated region
        $region33: #{encoder_forward.1} parent=11 // pred_check
          %p224 = pneg %p168
        $region34: #{encoder_forward.1} parent=11 // pred_check_branch
          %226 = sbr.rel (%p224) target = $region36
        $region35: #{encoder_forward.1} parent=11 // pred_region
          _
        $region36: #{encoder_forward.1} parent=11 // pred_fallthru
          _
      $region12: #{encoder_forward.1} parent=5 // pred_fallthru
        _
      %p227 = scmp.lt.s32.totalorder %s16, 2
      // Predicated region
      $region37: #{encoder_forward.1} parent=5 // pred_check
        %p228 = pneg %p227
      $region38: #{encoder_forward.1} parent=5 // pred_check_branch
        %230 = sbr.rel (%p228) target = $region40
      $region39: #{encoder_forward.1} parent=5 // pred_region
        // Predicated region
        $region41: #{encoder_forward.1} parent=39 // pred_check
          %p231 = pneg %p36
        $region42: #{encoder_forward.1} parent=39 // pred_check_branch
          %233 = sbr.rel (%p231) target = $region44
        $region43: #{encoder_forward.1} parent=39 // pred_region
          %p234 = scmp.lt.s32.totalorder %s16, 1
          %s235 = scalar_select %p234, %s16, 1
          %s236 = smul.addr %s235, 25
          %s237 = smul.addr %s236, 8
          %s238 = scalar_lea.vmem %s0, %s237
        $region44: #{encoder_forward.1} parent=39 // pred_fallthru
          _
      $region40: #{encoder_forward.1} parent=5 // pred_fallthru
        _
      %p239 = scmp.le.s32.totalorder 1, %s16
      %p240 = scmp.lt.s32.totalorder %s16, 3
      %p241 = pnand %p239, %p240
      %p242 = pneg %p241
      // Predicated region
      $region45: #{encoder_forward.1} parent=5 // pred_check
        _
      $region46: #{encoder_forward.1} parent=5 // pred_check_branch
        %244 = sbr.rel (%p241) target = $region48
      $region47: #{encoder_forward.1} parent=5 // pred_region
        %s245 = ssub.s32 %s16, 1
        %p246 = scmp.lt.s32.totalorder %s21, 1
        %s247 = scalar_select %p246, %s21, 1
        %s248 = smul.addr %s247, 25
        %s249 = smul.addr %s248, 8
        %s250 = scalar_lea.vmem %s0, %s249
        %p251 = pneg %p42
        %p252 = pneg %p39
        %p253 = pneg %p63
        %p254 = pneg %p60
        %p255 = pneg %p84
        %p256 = pneg %p81
        %p257 = pneg %p105
        %p258 = pneg %p102
        %p259 = pneg %p126
        %p260 = pneg %p123
        %p261 = pneg %p147
        %p262 = pneg %p144
        %p263 = pneg %p168
        %p264 = pneg %p165
        %p265 = pneg %p194
        %p266 = pneg %p191
        %s267 = sand.u32 %s181, 1
        %s268 = scalar_lea.sflag [#allocation6], %s267
        %s269 = sand.u32 %s181, 1
        %s270 = scalar_lea.vmem [#allocation5], %s269
        %p271 = scmp.lt.s32.totalorder %s21, 1
        %s272 = scalar_select %p271, %s21, 1
        %s273 = smul.addr %s272, 25
        %s274 = smul.addr %s273, 8
        %s275 = scalar_lea.vmem %s0, %s274
        %v277 = vld [vmem:[%s275] sm:$0xff]
        %v278 = vld [vmem:[%s275 + $0x8] sm:$0xff]
        %v279 = vld [vmem:[%s275 + $0x10] sm:$0xff]
        %v280 = vld [vmem:[%s275 + $0x18] sm:$0xff]
        %v281 = vld [vmem:[%s275 + $0x20] sm:$0xff]
        %v282 = vld [vmem:[%s275 + $0x28] sm:$0xff]
        %v283 = vld [vmem:[%s275 + $0x30] sm:$0xff]
        %v284 = vld [vmem:[%s275 + $0x38] sm:$0xff]
        %v285 = vld [vmem:[%s275 + $0x40] sm:$0xff]
        %v286 = vld [vmem:[%s275 + $0x48] sm:$0xff]
        %v287 = vld [vmem:[%s275 + $0x50] sm:$0xff]
        %v288 = vld [vmem:[%s275 + $0x58] sm:$0xff]
        %v289 = vld [vmem:[%s275 + $0x60] sm:$0xff]
        %v290 = vld [vmem:[%s275 + $0x68] sm:$0xff]
        %v291 = vld [vmem:[%s275 + $0x70] sm:$0xff]
        %v292 = vld [vmem:[%s275 + $0x78] sm:$0xff]
        %v293 = vld [vmem:[%s275 + $0x80] sm:$0xff]
        %v294 = vld [vmem:[%s275 + $0x88] sm:$0xff]
        %v295 = vld [vmem:[%s275 + $0x90] sm:$0xff]
        %v296 = vld [vmem:[%s275 + $0x98] sm:$0xff]
        %v297 = vld [vmem:[%s275 + $0xa0] sm:$0xff]
        %v298 = vld [vmem:[%s275 + $0xa8] sm:$0xff]
        %v299 = vld [vmem:[%s275 + $0xb0] sm:$0xff]
        %v300 = vld [vmem:[%s275 + $0xb8] sm:$0xff]
        %v301 = vld [vmem:[%s275 + $0xc0] sm:$0xf]
        %v302 = vld [vmem:[%s1] sm:$0x1]
        %304 = vset.pattern.permute.xlu0 0
        %305 = vperm.xlu0 %304, %v277
        %v306 = vpop.permute.xlu0 %305
        %309 = vset.pattern.permute.xlu0 0
        %310 = vperm.xlu0 %309, %v278
        %v311 = vpop.permute.xlu0 %310
        %314 = vset.pattern.permute.xlu0 0
        %315 = vperm.xlu0 %314, %v279
        %v316 = vpop.permute.xlu0 %315
        %319 = vset.pattern.permute.xlu0 0
        %320 = vperm.xlu0 %319, %v280
        %v321 = vpop.permute.xlu0 %320
        %324 = vset.pattern.permute.xlu0 0
        %325 = vperm.xlu0 %324, %v281
        %v326 = vpop.permute.xlu0 %325
        %329 = vset.pattern.permute.xlu0 0
        %330 = vperm.xlu0 %329, %v282
        %v331 = vpop.permute.xlu0 %330
        %334 = vset.pattern.permute.xlu0 0
        %335 = vperm.xlu0 %334, %v283
        %v336 = vpop.permute.xlu0 %335
        %339 = vset.pattern.permute.xlu0 0
        %340 = vperm.xlu0 %339, %v284
        %v341 = vpop.permute.xlu0 %340
        %344 = vset.pattern.permute.xlu0 0
        %345 = vperm.xlu0 %344, %v285
        %v346 = vpop.permute.xlu0 %345
        %349 = vset.pattern.permute.xlu0 0
        %350 = vperm.xlu0 %349, %v286
        %v351 = vpop.permute.xlu0 %350
        %354 = vset.pattern.permute.xlu0 0
        %355 = vperm.xlu0 %354, %v287
        %v356 = vpop.permute.xlu0 %355
        %359 = vset.pattern.permute.xlu0 0
        %360 = vperm.xlu0 %359, %v288
        %v361 = vpop.permute.xlu0 %360
        %364 = vset.pattern.permute.xlu0 0
        %365 = vperm.xlu0 %364, %v289
        %v366 = vpop.permute.xlu0 %365
        %369 = vset.pattern.permute.xlu0 0
        %370 = vperm.xlu0 %369, %v290
        %v371 = vpop.permute.xlu0 %370
        %374 = vset.pattern.permute.xlu0 0
        %375 = vperm.xlu0 %374, %v291
        %v376 = vpop.permute.xlu0 %375
        %379 = vset.pattern.permute.xlu0 0
        %380 = vperm.xlu0 %379, %v292
        %v381 = vpop.permute.xlu0 %380
        %384 = vset.pattern.permute.xlu0 0
        %385 = vperm.xlu0 %384, %v293
        %v386 = vpop.permute.xlu0 %385
        %389 = vset.pattern.permute.xlu0 0
        %390 = vperm.xlu0 %389, %v294
        %v391 = vpop.permute.xlu0 %390
        %394 = vset.pattern.permute.xlu0 0
        %395 = vperm.xlu0 %394, %v295
        %v396 = vpop.permute.xlu0 %395
        %399 = vset.pattern.permute.xlu0 0
        %400 = vperm.xlu0 %399, %v296
        %v401 = vpop.permute.xlu0 %400
        %404 = vset.pattern.permute.xlu0 0
        %405 = vperm.xlu0 %404, %v297
        %v406 = vpop.permute.xlu0 %405
        %409 = vset.pattern.permute.xlu0 0
        %410 = vperm.xlu0 %409, %v298
        %v411 = vpop.permute.xlu0 %410
        %414 = vset.pattern.permute.xlu0 0
        %415 = vperm.xlu0 %414, %v299
        %v416 = vpop.permute.xlu0 %415
        %419 = vset.pattern.permute.xlu0 0
        %420 = vperm.xlu0 %419, %v300
        %v421 = vpop.permute.xlu0 %420
        %424 = vset.pattern.permute.xlu0 0
        %425 = vperm.xlu0 %424, %v301
        %v426 = vpop.permute.xlu0 %425
        %v428 = vlaneseq
        %v429 = vshrl.u32 %v428, 7
        %v430 = vsub.s32 0, %v429
        %v431 = vrot.slane %v302, %v430
        %v432 = vmul.f32 %v306, %v431
        %v433 = vmul.f32 %v311, %v431
        %v434 = vmul.f32 %v316, %v431
        %v435 = vmul.f32 %v321, %v431
        %v436 = vmul.f32 %v326, %v431
        %v437 = vmul.f32 %v331, %v431
        %v438 = vmul.f32 %v336, %v431
        %v439 = vmul.f32 %v341, %v431
        %v440 = vmul.f32 %v346, %v431
        %v441 = vmul.f32 %v351, %v431
        %v442 = vmul.f32 %v356, %v431
        %v443 = vmul.f32 %v361, %v431
        %v444 = vmul.f32 %v366, %v431
        %v445 = vmul.f32 %v371, %v431
        %v446 = vmul.f32 %v376, %v431
        %v447 = vmul.f32 %v381, %v431
        %v448 = vmul.f32 %v386, %v431
        %v449 = vmul.f32 %v391, %v431
        %v450 = vmul.f32 %v396, %v431
        %v451 = vmul.f32 %v401, %v431
        %v452 = vmul.f32 %v406, %v431
        %v453 = vmul.f32 %v411, %v431
        %v454 = vmul.f32 %v416, %v431
        %v455 = vmul.f32 %v421, %v431
        %v456 = vmul.f32 %v426, %v431
        %v457 = vadd.f32 %v432, 0.0
        %v458 = vadd.f32 %v433, 0.0
        %v459 = vadd.f32 %v434, 0.0
        %v460 = vadd.f32 %v435, 0.0
        %v461 = vadd.f32 %v436, 0.0
        %v462 = vadd.f32 %v437, 0.0
        %v463 = vadd.f32 %v438, 0.0
        %v464 = vadd.f32 %v439, 0.0
        %v465 = vadd.f32 %v440, 0.0
        %v466 = vadd.f32 %v441, 0.0
        %v467 = vadd.f32 %v442, 0.0
        %v468 = vadd.f32 %v443, 0.0
        %v469 = vadd.f32 %v444, 0.0
        %v470 = vadd.f32 %v445, 0.0
        %v471 = vadd.f32 %v446, 0.0
        %v472 = vadd.f32 %v447, 0.0
        %v473 = vadd.f32 %v448, 0.0
        %v474 = vadd.f32 %v449, 0.0
        %v475 = vadd.f32 %v450, 0.0
        %v476 = vadd.f32 %v451, 0.0
        %v477 = vadd.f32 %v452, 0.0
        %v478 = vadd.f32 %v453, 0.0
        %v479 = vadd.f32 %v454, 0.0
        %v480 = vadd.f32 %v455, 0.0
        %v481 = vadd.f32 %v456, 0.0
        %v482 = vld [vmem:[%s1 + $0x1] sm:$0x1]
        %483 = vset.pattern.permute.xlu0 1
        %484 = vperm.xlu0 %483, %v277
        %v485 = vpop.permute.xlu0 %484
        %487 = vset.pattern.permute.xlu0 1
        %488 = vperm.xlu0 %487, %v278
        %v489 = vpop.permute.xlu0 %488
        %491 = vset.pattern.permute.xlu0 1
        %492 = vperm.xlu0 %491, %v279
        %v493 = vpop.permute.xlu0 %492
        %495 = vset.pattern.permute.xlu0 1
        %496 = vperm.xlu0 %495, %v280
        %v497 = vpop.permute.xlu0 %496
        %499 = vset.pattern.permute.xlu0 1
        %500 = vperm.xlu0 %499, %v281
        %v501 = vpop.permute.xlu0 %500
        %503 = vset.pattern.permute.xlu0 1
        %504 = vperm.xlu0 %503, %v282
        %v505 = vpop.permute.xlu0 %504
        %507 = vset.pattern.permute.xlu0 1
        %508 = vperm.xlu0 %507, %v283
        %v509 = vpop.permute.xlu0 %508
        %511 = vset.pattern.permute.xlu0 1
        %512 = vperm.xlu0 %511, %v284
        %v513 = vpop.permute.xlu0 %512
        %515 = vset.pattern.permute.xlu0 1
        %516 = vperm.xlu0 %515, %v285
        %v517 = vpop.permute.xlu0 %516
        %519 = vset.pattern.permute.xlu0 1
        %520 = vperm.xlu0 %519, %v286
        %v521 = vpop.permute.xlu0 %520
        %523 = vset.pattern.permute.xlu0 1
        %524 = vperm.xlu0 %523, %v287
        %v525 = vpop.permute.xlu0 %524
        %527 = vset.pattern.permute.xlu0 1
        %528 = vperm.xlu0 %527, %v288
        %v529 = vpop.permute.xlu0 %528
        %531 = vset.pattern.permute.xlu0 1
        %532 = vperm.xlu0 %531, %v289
        %v533 = vpop.permute.xlu0 %532
        %535 = vset.pattern.permute.xlu0 1
        %536 = vperm.xlu0 %535, %v290
        %v537 = vpop.permute.xlu0 %536
        %539 = vset.pattern.permute.xlu0 1
        %540 = vperm.xlu0 %539, %v291
        %v541 = vpop.permute.xlu0 %540
        %543 = vset.pattern.permute.xlu0 1
        %544 = vperm.xlu0 %543, %v292
        %v545 = vpop.permute.xlu0 %544
        %547 = vset.pattern.permute.xlu0 1
        %548 = vperm.xlu0 %547, %v293
        %v549 = vpop.permute.xlu0 %548
        %551 = vset.pattern.permute.xlu0 1
        %552 = vperm.xlu0 %551, %v294
        %v553 = vpop.permute.xlu0 %552
        %555 = vset.pattern.permute.xlu0 1
        %556 = vperm.xlu0 %555, %v295
        %v557 = vpop.permute.xlu0 %556
        %559 = vset.pattern.permute.xlu0 1
        %560 = vperm.xlu0 %559, %v296
        %v561 = vpop.permute.xlu0 %560
        %563 = vset.pattern.permute.xlu0 1
        %564 = vperm.xlu0 %563, %v297
        %v565 = vpop.permute.xlu0 %564
        %567 = vset.pattern.permute.xlu0 1
        %568 = vperm.xlu0 %567, %v298
        %v569 = vpop.permute.xlu0 %568
        %571 = vset.pattern.permute.xlu0 1
        %572 = vperm.xlu0 %571, %v299
        %v573 = vpop.permute.xlu0 %572
        %575 = vset.pattern.permute.xlu0 1
        %576 = vperm.xlu0 %575, %v300
        %v577 = vpop.permute.xlu0 %576
        %579 = vset.pattern.permute.xlu0 1
        %580 = vperm.xlu0 %579, %v301
        %v581 = vpop.permute.xlu0 %580
        %v583 = vlaneseq
        %v584 = vshrl.u32 %v583, 7
        %v585 = vsub.s32 0, %v584
        %v586 = vrot.slane %v482, %v585
        %v587 = vmul.f32 %v485, %v586
        %v588 = vmul.f32 %v489, %v586
        %v589 = vmul.f32 %v493, %v586
        %v590 = vmul.f32 %v497, %v586
        %v591 = vmul.f32 %v501, %v586
        %v592 = vmul.f32 %v505, %v586
        %v593 = vmul.f32 %v509, %v586
        %v594 = vmul.f32 %v513, %v586
        %v595 = vmul.f32 %v517, %v586
        %v596 = vmul.f32 %v521, %v586
        %v597 = vmul.f32 %v525, %v586
        %v598 = vmul.f32 %v529, %v586
        %v599 = vmul.f32 %v533, %v586
        %v600 = vmul.f32 %v537, %v586
        %v601 = vmul.f32 %v541, %v586
        %v602 = vmul.f32 %v545, %v586
        %v603 = vmul.f32 %v549, %v586
        %v604 = vmul.f32 %v553, %v586
        %v605 = vmul.f32 %v557, %v586
        %v606 = vmul.f32 %v561, %v586
        %v607 = vmul.f32 %v565, %v586
        %v608 = vmul.f32 %v569, %v586
        %v609 = vmul.f32 %v573, %v586
        %v610 = vmul.f32 %v577, %v586
        %v611 = vmul.f32 %v581, %v586
        %v612 = vadd.f32 %v457, %v587
        %v613 = vadd.f32 %v458, %v588
        %v614 = vadd.f32 %v459, %v589
        %v615 = vadd.f32 %v460, %v590
        %v616 = vadd.f32 %v461, %v591
        %v617 = vadd.f32 %v462, %v592
        %v618 = vadd.f32 %v463, %v593
        %v619 = vadd.f32 %v464, %v594
        %v620 = vadd.f32 %v465, %v595
        %v621 = vadd.f32 %v466, %v596
        %v622 = vadd.f32 %v467, %v597
        %v623 = vadd.f32 %v468, %v598
        %v624 = vadd.f32 %v469, %v599
        %v625 = vadd.f32 %v470, %v600
        %v626 = vadd.f32 %v471, %v601
        %v627 = vadd.f32 %v472, %v602
        %v628 = vadd.f32 %v473, %v603
        %v629 = vadd.f32 %v474, %v604
        %v630 = vadd.f32 %v475, %v605
        %v631 = vadd.f32 %v476, %v606
        %v632 = vadd.f32 %v477, %v607
        %v633 = vadd.f32 %v478, %v608
        %v634 = vadd.f32 %v479, %v609
        %v635 = vadd.f32 %v480, %v610
        %v636 = vadd.f32 %v481, %v611
        %v637 = vld [vmem:[%s1 + $0x2] sm:$0x1]
        %638 = vset.pattern.permute.xlu0 2
        %639 = vperm.xlu0 %638, %v277
        %v640 = vpop.permute.xlu0 %639
        %642 = vset.pattern.permute.xlu0 2
        %643 = vperm.xlu0 %642, %v278
        %v644 = vpop.permute.xlu0 %643
        %646 = vset.pattern.permute.xlu0 2
        %647 = vperm.xlu0 %646, %v279
        %v648 = vpop.permute.xlu0 %647
        %650 = vset.pattern.permute.xlu0 2
        %651 = vperm.xlu0 %650, %v280
        %v652 = vpop.permute.xlu0 %651
        %654 = vset.pattern.permute.xlu0 2
        %655 = vperm.xlu0 %654, %v281
        %v656 = vpop.permute.xlu0 %655
        %658 = vset.pattern.permute.xlu0 2
        %659 = vperm.xlu0 %658, %v282
        %v660 = vpop.permute.xlu0 %659
        %662 = vset.pattern.permute.xlu0 2
        %663 = vperm.xlu0 %662, %v283
        %v664 = vpop.permute.xlu0 %663
        %666 = vset.pattern.permute.xlu0 2
        %667 = vperm.xlu0 %666, %v284
        %v668 = vpop.permute.xlu0 %667
        %670 = vset.pattern.permute.xlu0 2
        %671 = vperm.xlu0 %670, %v285
        %v672 = vpop.permute.xlu0 %671
        %674 = vset.pattern.permute.xlu0 2
        %675 = vperm.xlu0 %674, %v286
        %v676 = vpop.permute.xlu0 %675
        %678 = vset.pattern.permute.xlu0 2
        %679 = vperm.xlu0 %678, %v287
        %v680 = vpop.permute.xlu0 %679
        %682 = vset.pattern.permute.xlu0 2
        %683 = vperm.xlu0 %682, %v288
        %v684 = vpop.permute.xlu0 %683
        %686 = vset.pattern.permute.xlu0 2
        %687 = vperm.xlu0 %686, %v289
        %v688 = vpop.permute.xlu0 %687
        %690 = vset.pattern.permute.xlu0 2
        %691 = vperm.xlu0 %690, %v290
        %v692 = vpop.permute.xlu0 %691
        %694 = vset.pattern.permute.xlu0 2
        %695 = vperm.xlu0 %694, %v291
        %v696 = vpop.permute.xlu0 %695
        %698 = vset.pattern.permute.xlu0 2
        %699 = vperm.xlu0 %698, %v292
        %v700 = vpop.permute.xlu0 %699
        %702 = vset.pattern.permute.xlu0 2
        %703 = vperm.xlu0 %702, %v293
        %v704 = vpop.permute.xlu0 %703
        %706 = vset.pattern.permute.xlu0 2
        %707 = vperm.xlu0 %706, %v294
        %v708 = vpop.permute.xlu0 %707
        %710 = vset.pattern.permute.xlu0 2
        %711 = vperm.xlu0 %710, %v295
        %v712 = vpop.permute.xlu0 %711
        %714 = vset.pattern.permute.xlu0 2
        %715 = vperm.xlu0 %714, %v296
        %v716 = vpop.permute.xlu0 %715
        %718 = vset.pattern.permute.xlu0 2
        %719 = vperm.xlu0 %718, %v297
        %v720 = vpop.permute.xlu0 %719
        %722 = vset.pattern.permute.xlu0 2
        %723 = vperm.xlu0 %722, %v298
        %v724 = vpop.permute.xlu0 %723
        %726 = vset.pattern.permute.xlu0 2
        %727 = vperm.xlu0 %726, %v299
        %v728 = vpop.permute.xlu0 %727
        %730 = vset.pattern.permute.xlu0 2
        %731 = vperm.xlu0 %730, %v300
        %v732 = vpop.permute.xlu0 %731
        %734 = vset.pattern.permute.xlu0 2
        %735 = vperm.xlu0 %734, %v301
        %v736 = vpop.permute.xlu0 %735
        %v738 = vlaneseq
        %v739 = vshrl.u32 %v738, 7
        %v740 = vsub.s32 0, %v739
        %v741 = vrot.slane %v637, %v740
        %v742 = vmul.f32 %v640, %v741
        %v743 = vmul.f32 %v644, %v741
        %v744 = vmul.f32 %v648, %v741
        %v745 = vmul.f32 %v652, %v741
        %v746 = vmul.f32 %v656, %v741
        %v747 = vmul.f32 %v660, %v741
        %v748 = vmul.f32 %v664, %v741
        %v749 = vmul.f32 %v668, %v741
        %v750 = vmul.f32 %v672, %v741
        %v751 = vmul.f32 %v676, %v741
        %v752 = vmul.f32 %v680, %v741
        %v753 = vmul.f32 %v684, %v741
        %v754 = vmul.f32 %v688, %v741
        %v755 = vmul.f32 %v692, %v741
        %v756 = vmul.f32 %v696, %v741
        %v757 = vmul.f32 %v700, %v741
        %v758 = vmul.f32 %v704, %v741
        %v759 = vmul.f32 %v708, %v741
        %v760 = vmul.f32 %v712, %v741
        %v761 = vmul.f32 %v716, %v741
        %v762 = vmul.f32 %v720, %v741
        %v763 = vmul.f32 %v724, %v741
        %v764 = vmul.f32 %v728, %v741
        %v765 = vmul.f32 %v732, %v741
        %v766 = vmul.f32 %v736, %v741
        %v767 = vadd.f32 %v612, %v742
        %v768 = vadd.f32 %v613, %v743
        %v769 = vadd.f32 %v614, %v744
        %v770 = vadd.f32 %v615, %v745
        %v771 = vadd.f32 %v616, %v746
        %v772 = vadd.f32 %v617, %v747
        %v773 = vadd.f32 %v618, %v748
        %v774 = vadd.f32 %v619, %v749
        %v775 = vadd.f32 %v620, %v750
        %v776 = vadd.f32 %v621, %v751
        %v777 = vadd.f32 %v622, %v752
        %v778 = vadd.f32 %v623, %v753
        %v779 = vadd.f32 %v624, %v754
        %v780 = vadd.f32 %v625, %v755
        %v781 = vadd.f32 %v626, %v756
        %v782 = vadd.f32 %v627, %v757
        %v783 = vadd.f32 %v628, %v758
        %v784 = vadd.f32 %v629, %v759
        %v785 = vadd.f32 %v630, %v760
        %v786 = vadd.f32 %v631, %v761
        %v787 = vadd.f32 %v632, %v762
        %v788 = vadd.f32 %v633, %v763
        %v789 = vadd.f32 %v634, %v764
        %v790 = vadd.f32 %v635, %v765
        %v791 = vadd.f32 %v636, %v766
        %v792 = vld [vmem:[%s1 + $0x3] sm:$0x1]
        %793 = vset.pattern.permute.xlu0 3
        %794 = vperm.xlu0 %793, %v277
        %v795 = vpop.permute.xlu0 %794
        %797 = vset.pattern.permute.xlu0 3
        %798 = vperm.xlu0 %797, %v278
        %v799 = vpop.permute.xlu0 %798
        %801 = vset.pattern.permute.xlu0 3
        %802 = vperm.xlu0 %801, %v279
        %v803 = vpop.permute.xlu0 %802
        %805 = vset.pattern.permute.xlu0 3
        %806 = vperm.xlu0 %805, %v280
        %v807 = vpop.permute.xlu0 %806
        %809 = vset.pattern.permute.xlu0 3
        %810 = vperm.xlu0 %809, %v281
        %v811 = vpop.permute.xlu0 %810
        %813 = vset.pattern.permute.xlu0 3
        %814 = vperm.xlu0 %813, %v282
        %v815 = vpop.permute.xlu0 %814
        %817 = vset.pattern.permute.xlu0 3
        %818 = vperm.xlu0 %817, %v283
        %v819 = vpop.permute.xlu0 %818
        %821 = vset.pattern.permute.xlu0 3
        %822 = vperm.xlu0 %821, %v284
        %v823 = vpop.permute.xlu0 %822
        %825 = vset.pattern.permute.xlu0 3
        %826 = vperm.xlu0 %825, %v285
        %v827 = vpop.permute.xlu0 %826
        %829 = vset.pattern.permute.xlu0 3
        %830 = vperm.xlu0 %829, %v286
        %v831 = vpop.permute.xlu0 %830
        %833 = vset.pattern.permute.xlu0 3
        %834 = vperm.xlu0 %833, %v287
        %v835 = vpop.permute.xlu0 %834
        %837 = vset.pattern.permute.xlu0 3
        %838 = vperm.xlu0 %837, %v288
        %v839 = vpop.permute.xlu0 %838
        %841 = vset.pattern.permute.xlu0 3
        %842 = vperm.xlu0 %841, %v289
        %v843 = vpop.permute.xlu0 %842
        %845 = vset.pattern.permute.xlu0 3
        %846 = vperm.xlu0 %845, %v290
        %v847 = vpop.permute.xlu0 %846
        %849 = vset.pattern.permute.xlu0 3
        %850 = vperm.xlu0 %849, %v291
        %v851 = vpop.permute.xlu0 %850
        %853 = vset.pattern.permute.xlu0 3
        %854 = vperm.xlu0 %853, %v292
        %v855 = vpop.permute.xlu0 %854
        %857 = vset.pattern.permute.xlu0 3
        %858 = vperm.xlu0 %857, %v293
        %v859 = vpop.permute.xlu0 %858
        %861 = vset.pattern.permute.xlu0 3
        %862 = vperm.xlu0 %861, %v294
        %v863 = vpop.permute.xlu0 %862
        %865 = vset.pattern.permute.xlu0 3
        %866 = vperm.xlu0 %865, %v295
        %v867 = vpop.permute.xlu0 %866
        %869 = vset.pattern.permute.xlu0 3
        %870 = vperm.xlu0 %869, %v296
        %v871 = vpop.permute.xlu0 %870
        %873 = vset.pattern.permute.xlu0 3
        %874 = vperm.xlu0 %873, %v297
        %v875 = vpop.permute.xlu0 %874
        %877 = vset.pattern.permute.xlu0 3
        %878 = vperm.xlu0 %877, %v298
        %v879 = vpop.permute.xlu0 %878
        %881 = vset.pattern.permute.xlu0 3
        %882 = vperm.xlu0 %881, %v299
        %v883 = vpop.permute.xlu0 %882
        %885 = vset.pattern.permute.xlu0 3
        %886 = vperm.xlu0 %885, %v300
        %v887 = vpop.permute.xlu0 %886
        %889 = vset.pattern.permute.xlu0 3
        %890 = vperm.xlu0 %889, %v301
        %v891 = vpop.permute.xlu0 %890
        %v893 = vlaneseq
        %v894 = vshrl.u32 %v893, 7
        %v895 = vsub.s32 0, %v894
        %v896 = vrot.slane %v792, %v895
        %v897 = vmul.f32 %v795, %v896
        %v898 = vmul.f32 %v799, %v896
        %v899 = vmul.f32 %v803, %v896
        %v900 = vmul.f32 %v807, %v896
        %v901 = vmul.f32 %v811, %v896
        %v902 = vmul.f32 %v815, %v896
        %v903 = vmul.f32 %v819, %v896
        %v904 = vmul.f32 %v823, %v896
        %v905 = vmul.f32 %v827, %v896
        %v906 = vmul.f32 %v831, %v896
        %v907 = vmul.f32 %v835, %v896
        %v908 = vmul.f32 %v839, %v896
        %v909 = vmul.f32 %v843, %v896
        %v910 = vmul.f32 %v847, %v896
        %v911 = vmul.f32 %v851, %v896
        %v912 = vmul.f32 %v855, %v896
        %v913 = vmul.f32 %v859, %v896
        %v914 = vmul.f32 %v863, %v896
        %v915 = vmul.f32 %v867, %v896
        %v916 = vmul.f32 %v871, %v896
        %v917 = vmul.f32 %v875, %v896
        %v918 = vmul.f32 %v879, %v896
        %v919 = vmul.f32 %v883, %v896
        %v920 = vmul.f32 %v887, %v896
        %v921 = vmul.f32 %v891, %v896
        %v922 = vadd.f32 %v767, %v897
        %v923 = vadd.f32 %v768, %v898
        %v924 = vadd.f32 %v769, %v899
        %v925 = vadd.f32 %v770, %v900
        %v926 = vadd.f32 %v771, %v901
        %v927 = vadd.f32 %v772, %v902
        %v928 = vadd.f32 %v773, %v903
        %v929 = vadd.f32 %v774, %v904
        %v930 = vadd.f32 %v775, %v905
        %v931 = vadd.f32 %v776, %v906
        %v932 = vadd.f32 %v777, %v907
        %v933 = vadd.f32 %v778, %v908
        %v934 = vadd.f32 %v779, %v909
        %v935 = vadd.f32 %v780, %v910
        %v936 = vadd.f32 %v781, %v911
        %v937 = vadd.f32 %v782, %v912
        %v938 = vadd.f32 %v783, %v913
        %v939 = vadd.f32 %v784, %v914
        %v940 = vadd.f32 %v785, %v915
        %v941 = vadd.f32 %v786, %v916
        %v942 = vadd.f32 %v787, %v917
        %v943 = vadd.f32 %v788, %v918
        %v944 = vadd.f32 %v789, %v919
        %v945 = vadd.f32 %v790, %v920
        %v946 = vadd.f32 %v791, %v921
        %v947 = vld [vmem:[%s1 + $0x4] sm:$0x1]
        %948 = vset.pattern.permute.xlu0 4
        %949 = vperm.xlu0 %948, %v277
        %v950 = vpop.permute.xlu0 %949
        %952 = vset.pattern.permute.xlu0 4
        %953 = vperm.xlu0 %952, %v278
        %v954 = vpop.permute.xlu0 %953
        %956 = vset.pattern.permute.xlu0 4
        %957 = vperm.xlu0 %956, %v279
        %v958 = vpop.permute.xlu0 %957
        %960 = vset.pattern.permute.xlu0 4
        %961 = vperm.xlu0 %960, %v280
        %v962 = vpop.permute.xlu0 %961
        %964 = vset.pattern.permute.xlu0 4
        %965 = vperm.xlu0 %964, %v281
        %v966 = vpop.permute.xlu0 %965
        %968 = vset.pattern.permute.xlu0 4
        %969 = vperm.xlu0 %968, %v282
        %v970 = vpop.permute.xlu0 %969
        %972 = vset.pattern.permute.xlu0 4
        %973 = vperm.xlu0 %972, %v283
        %v974 = vpop.permute.xlu0 %973
        %976 = vset.pattern.permute.xlu0 4
        %977 = vperm.xlu0 %976, %v284
        %v978 = vpop.permute.xlu0 %977
        %980 = vset.pattern.permute.xlu0 4
        %981 = vperm.xlu0 %980, %v285
        %v982 = vpop.permute.xlu0 %981
        %984 = vset.pattern.permute.xlu0 4
        %985 = vperm.xlu0 %984, %v286
        %v986 = vpop.permute.xlu0 %985
        %988 = vset.pattern.permute.xlu0 4
        %989 = vperm.xlu0 %988, %v287
        %v990 = vpop.permute.xlu0 %989
        %992 = vset.pattern.permute.xlu0 4
        %993 = vperm.xlu0 %992, %v288
        %v994 = vpop.permute.xlu0 %993
        %996 = vset.pattern.permute.xlu0 4
        %997 = vperm.xlu0 %996, %v289
        %v998 = vpop.permute.xlu0 %997
        %1000 = vset.pattern.permute.xlu0 4
        %1001 = vperm.xlu0 %1000, %v290
        %v1002 = vpop.permute.xlu0 %1001
        %1004 = vset.pattern.permute.xlu0 4
        %1005 = vperm.xlu0 %1004, %v291
        %v1006 = vpop.permute.xlu0 %1005
        %1008 = vset.pattern.permute.xlu0 4
        %1009 = vperm.xlu0 %1008, %v292
        %v1010 = vpop.permute.xlu0 %1009
        %1012 = vset.pattern.permute.xlu0 4
        %1013 = vperm.xlu0 %1012, %v293
        %v1014 = vpop.permute.xlu0 %1013
        %1016 = vset.pattern.permute.xlu0 4
        %1017 = vperm.xlu0 %1016, %v294
        %v1018 = vpop.permute.xlu0 %1017
        %1020 = vset.pattern.permute.xlu0 4
        %1021 = vperm.xlu0 %1020, %v295
        %v1022 = vpop.permute.xlu0 %1021
        %1024 = vset.pattern.permute.xlu0 4
        %1025 = vperm.xlu0 %1024, %v296
        %v1026 = vpop.permute.xlu0 %1025
        %1028 = vset.pattern.permute.xlu0 4
        %1029 = vperm.xlu0 %1028, %v297
        %v1030 = vpop.permute.xlu0 %1029
        %1032 = vset.pattern.permute.xlu0 4
        %1033 = vperm.xlu0 %1032, %v298
        %v1034 = vpop.permute.xlu0 %1033
        %1036 = vset.pattern.permute.xlu0 4
        %1037 = vperm.xlu0 %1036, %v299
        %v1038 = vpop.permute.xlu0 %1037
        %1040 = vset.pattern.permute.xlu0 4
        %1041 = vperm.xlu0 %1040, %v300
        %v1042 = vpop.permute.xlu0 %1041
        %1044 = vset.pattern.permute.xlu0 4
        %1045 = vperm.xlu0 %1044, %v301
        %v1046 = vpop.permute.xlu0 %1045
        %v1048 = vlaneseq
        %v1049 = vshrl.u32 %v1048, 7
        %v1050 = vsub.s32 0, %v1049
        %v1051 = vrot.slane %v947, %v1050
        %v1052 = vmul.f32 %v950, %v1051
        %v1053 = vmul.f32 %v954, %v1051
        %v1054 = vmul.f32 %v958, %v1051
        %v1055 = vmul.f32 %v962, %v1051
        %v1056 = vmul.f32 %v966, %v1051
        %v1057 = vmul.f32 %v970, %v1051
        %v1058 = vmul.f32 %v974, %v1051
        %v1059 = vmul.f32 %v978, %v1051
        %v1060 = vmul.f32 %v982, %v1051
        %v1061 = vmul.f32 %v986, %v1051
        %v1062 = vmul.f32 %v990, %v1051
        %v1063 = vmul.f32 %v994, %v1051
        %v1064 = vmul.f32 %v998, %v1051
        %v1065 = vmul.f32 %v1002, %v1051
        %v1066 = vmul.f32 %v1006, %v1051
        %v1067 = vmul.f32 %v1010, %v1051
        %v1068 = vmul.f32 %v1014, %v1051
        %v1069 = vmul.f32 %v1018, %v1051
        %v1070 = vmul.f32 %v1022, %v1051
        %v1071 = vmul.f32 %v1026, %v1051
        %v1072 = vmul.f32 %v1030, %v1051
        %v1073 = vmul.f32 %v1034, %v1051
        %v1074 = vmul.f32 %v1038, %v1051
        %v1075 = vmul.f32 %v1042, %v1051
        %v1076 = vmul.f32 %v1046, %v1051
        %v1077 = vadd.f32 %v922, %v1052
        %v1078 = vadd.f32 %v923, %v1053
        %v1079 = vadd.f32 %v924, %v1054
        %v1080 = vadd.f32 %v925, %v1055
        %v1081 = vadd.f32 %v926, %v1056
        %v1082 = vadd.f32 %v927, %v1057
        %v1083 = vadd.f32 %v928, %v1058
        %v1084 = vadd.f32 %v929, %v1059
        %v1085 = vadd.f32 %v930, %v1060
        %v1086 = vadd.f32 %v931, %v1061
        %v1087 = vadd.f32 %v932, %v1062
        %v1088 = vadd.f32 %v933, %v1063
        %v1089 = vadd.f32 %v934, %v1064
        %v1090 = vadd.f32 %v935, %v1065
        %v1091 = vadd.f32 %v936, %v1066
        %v1092 = vadd.f32 %v937, %v1067
        %v1093 = vadd.f32 %v938, %v1068
        %v1094 = vadd.f32 %v939, %v1069
        %v1095 = vadd.f32 %v940, %v1070
        %v1096 = vadd.f32 %v941, %v1071
        %v1097 = vadd.f32 %v942, %v1072
        %v1098 = vadd.f32 %v943, %v1073
        %v1099 = vadd.f32 %v944, %v1074
        %v1100 = vadd.f32 %v945, %v1075
        %v1101 = vadd.f32 %v946, %v1076
        %v1102 = vld [vmem:[%s1 + $0x5] sm:$0x1]
        %1103 = vset.pattern.permute.xlu0 5
        %1104 = vperm.xlu0 %1103, %v277
        %v1105 = vpop.permute.xlu0 %1104
        %1107 = vset.pattern.permute.xlu0 5
        %1108 = vperm.xlu0 %1107, %v278
        %v1109 = vpop.permute.xlu0 %1108
        %1111 = vset.pattern.permute.xlu0 5
        %1112 = vperm.xlu0 %1111, %v279
        %v1113 = vpop.permute.xlu0 %1112
        %1115 = vset.pattern.permute.xlu0 5
        %1116 = vperm.xlu0 %1115, %v280
        %v1117 = vpop.permute.xlu0 %1116
        %1119 = vset.pattern.permute.xlu0 5
        %1120 = vperm.xlu0 %1119, %v281
        %v1121 = vpop.permute.xlu0 %1120
        %1123 = vset.pattern.permute.xlu0 5
        %1124 = vperm.xlu0 %1123, %v282
        %v1125 = vpop.permute.xlu0 %1124
        %1127 = vset.pattern.permute.xlu0 5
        %1128 = vperm.xlu0 %1127, %v283
        %v1129 = vpop.permute.xlu0 %1128
        %1131 = vset.pattern.permute.xlu0 5
        %1132 = vperm.xlu0 %1131, %v284
        %v1133 = vpop.permute.xlu0 %1132
        %1135 = vset.pattern.permute.xlu0 5
        %1136 = vperm.xlu0 %1135, %v285
        %v1137 = vpop.permute.xlu0 %1136
        %1139 = vset.pattern.permute.xlu0 5
        %1140 = vperm.xlu0 %1139, %v286
        %v1141 = vpop.permute.xlu0 %1140
        %1143 = vset.pattern.permute.xlu0 5
        %1144 = vperm.xlu0 %1143, %v287
        %v1145 = vpop.permute.xlu0 %1144
        %1147 = vset.pattern.permute.xlu0 5
        %1148 = vperm.xlu0 %1147, %v288
        %v1149 = vpop.permute.xlu0 %1148
        %1151 = vset.pattern.permute.xlu0 5
        %1152 = vperm.xlu0 %1151, %v289
        %v1153 = vpop.permute.xlu0 %1152
        %1155 = vset.pattern.permute.xlu0 5
        %1156 = vperm.xlu0 %1155, %v290
        %v1157 = vpop.permute.xlu0 %1156
        %1159 = vset.pattern.permute.xlu0 5
        %1160 = vperm.xlu0 %1159, %v291
        %v1161 = vpop.permute.xlu0 %1160
        %1163 = vset.pattern.permute.xlu0 5
        %1164 = vperm.xlu0 %1163, %v292
        %v1165 = vpop.permute.xlu0 %1164
        %1167 = vset.pattern.permute.xlu0 5
        %1168 = vperm.xlu0 %1167, %v293
        %v1169 = vpop.permute.xlu0 %1168
        %1171 = vset.pattern.permute.xlu0 5
        %1172 = vperm.xlu0 %1171, %v294
        %v1173 = vpop.permute.xlu0 %1172
        %1175 = vset.pattern.permute.xlu0 5
        %1176 = vperm.xlu0 %1175, %v295
        %v1177 = vpop.permute.xlu0 %1176
        %1179 = vset.pattern.permute.xlu0 5
        %1180 = vperm.xlu0 %1179, %v296
        %v1181 = vpop.permute.xlu0 %1180
        %1183 = vset.pattern.permute.xlu0 5
        %1184 = vperm.xlu0 %1183, %v297
        %v1185 = vpop.permute.xlu0 %1184
        %1187 = vset.pattern.permute.xlu0 5
        %1188 = vperm.xlu0 %1187, %v298
        %v1189 = vpop.permute.xlu0 %1188
        %1191 = vset.pattern.permute.xlu0 5
        %1192 = vperm.xlu0 %1191, %v299
        %v1193 = vpop.permute.xlu0 %1192
        %1195 = vset.pattern.permute.xlu0 5
        %1196 = vperm.xlu0 %1195, %v300
        %v1197 = vpop.permute.xlu0 %1196
        %1199 = vset.pattern.permute.xlu0 5
        %1200 = vperm.xlu0 %1199, %v301
        %v1201 = vpop.permute.xlu0 %1200
        %v1203 = vlaneseq
        %v1204 = vshrl.u32 %v1203, 7
        %v1205 = vsub.s32 0, %v1204
        %v1206 = vrot.slane %v1102, %v1205
        %v1207 = vmul.f32 %v1105, %v1206
        %v1208 = vmul.f32 %v1109, %v1206
        %v1209 = vmul.f32 %v1113, %v1206
        %v1210 = vmul.f32 %v1117, %v1206
        %v1211 = vmul.f32 %v1121, %v1206
        %v1212 = vmul.f32 %v1125, %v1206
        %v1213 = vmul.f32 %v1129, %v1206
        %v1214 = vmul.f32 %v1133, %v1206
        %v1215 = vmul.f32 %v1137, %v1206
        %v1216 = vmul.f32 %v1141, %v1206
        %v1217 = vmul.f32 %v1145, %v1206
        %v1218 = vmul.f32 %v1149, %v1206
        %v1219 = vmul.f32 %v1153, %v1206
        %v1220 = vmul.f32 %v1157, %v1206
        %v1221 = vmul.f32 %v1161, %v1206
        %v1222 = vmul.f32 %v1165, %v1206
        %v1223 = vmul.f32 %v1169, %v1206
        %v1224 = vmul.f32 %v1173, %v1206
        %v1225 = vmul.f32 %v1177, %v1206
        %v1226 = vmul.f32 %v1181, %v1206
        %v1227 = vmul.f32 %v1185, %v1206
        %v1228 = vmul.f32 %v1189, %v1206
        %v1229 = vmul.f32 %v1193, %v1206
        %v1230 = vmul.f32 %v1197, %v1206
        %v1231 = vmul.f32 %v1201, %v1206
        %v1232 = vadd.f32 %v1077, %v1207
        %v1233 = vadd.f32 %v1078, %v1208
        %v1234 = vadd.f32 %v1079, %v1209
        %v1235 = vadd.f32 %v1080, %v1210
        %v1236 = vadd.f32 %v1081, %v1211
        %v1237 = vadd.f32 %v1082, %v1212
        %v1238 = vadd.f32 %v1083, %v1213
        %v1239 = vadd.f32 %v1084, %v1214
        %v1240 = vadd.f32 %v1085, %v1215
        %v1241 = vadd.f32 %v1086, %v1216
        %v1242 = vadd.f32 %v1087, %v1217
        %v1243 = vadd.f32 %v1088, %v1218
        %v1244 = vadd.f32 %v1089, %v1219
        %v1245 = vadd.f32 %v1090, %v1220
        %v1246 = vadd.f32 %v1091, %v1221
        %v1247 = vadd.f32 %v1092, %v1222
        %v1248 = vadd.f32 %v1093, %v1223
        %v1249 = vadd.f32 %v1094, %v1224
        %v1250 = vadd.f32 %v1095, %v1225
        %v1251 = vadd.f32 %v1096, %v1226
        %v1252 = vadd.f32 %v1097, %v1227
        %v1253 = vadd.f32 %v1098, %v1228
        %v1254 = vadd.f32 %v1099, %v1229
        %v1255 = vadd.f32 %v1100, %v1230
        %v1256 = vadd.f32 %v1101, %v1231
        %v1257 = vld [vmem:[%s1 + $0x6] sm:$0x1]
        %1258 = vset.pattern.permute.xlu0 6
        %1259 = vperm.xlu0 %1258, %v277
        %v1260 = vpop.permute.xlu0 %1259
        %1262 = vset.pattern.permute.xlu0 6
        %1263 = vperm.xlu0 %1262, %v278
        %v1264 = vpop.permute.xlu0 %1263
        %1266 = vset.pattern.permute.xlu0 6
        %1267 = vperm.xlu0 %1266, %v279
        %v1268 = vpop.permute.xlu0 %1267
        %1270 = vset.pattern.permute.xlu0 6
        %1271 = vperm.xlu0 %1270, %v280
        %v1272 = vpop.permute.xlu0 %1271
        %1274 = vset.pattern.permute.xlu0 6
        %1275 = vperm.xlu0 %1274, %v281
        %v1276 = vpop.permute.xlu0 %1275
        %1278 = vset.pattern.permute.xlu0 6
        %1279 = vperm.xlu0 %1278, %v282
        %v1280 = vpop.permute.xlu0 %1279
        %1282 = vset.pattern.permute.xlu0 6
        %1283 = vperm.xlu0 %1282, %v283
        %v1284 = vpop.permute.xlu0 %1283
        %1286 = vset.pattern.permute.xlu0 6
        %1287 = vperm.xlu0 %1286, %v284
        %v1288 = vpop.permute.xlu0 %1287
        %1290 = vset.pattern.permute.xlu0 6
        %1291 = vperm.xlu0 %1290, %v285
        %v1292 = vpop.permute.xlu0 %1291
        %1294 = vset.pattern.permute.xlu0 6
        %1295 = vperm.xlu0 %1294, %v286
        %v1296 = vpop.permute.xlu0 %1295
        %1298 = vset.pattern.permute.xlu0 6
        %1299 = vperm.xlu0 %1298, %v287
        %v1300 = vpop.permute.xlu0 %1299
        %1302 = vset.pattern.permute.xlu0 6
        %1303 = vperm.xlu0 %1302, %v288
        %v1304 = vpop.permute.xlu0 %1303
        %1306 = vset.pattern.permute.xlu0 6
        %1307 = vperm.xlu0 %1306, %v289
        %v1308 = vpop.permute.xlu0 %1307
        %1310 = vset.pattern.permute.xlu0 6
        %1311 = vperm.xlu0 %1310, %v290
        %v1312 = vpop.permute.xlu0 %1311
        %1314 = vset.pattern.permute.xlu0 6
        %1315 = vperm.xlu0 %1314, %v291
        %v1316 = vpop.permute.xlu0 %1315
        %1318 = vset.pattern.permute.xlu0 6
        %1319 = vperm.xlu0 %1318, %v292
        %v1320 = vpop.permute.xlu0 %1319
        %1322 = vset.pattern.permute.xlu0 6
        %1323 = vperm.xlu0 %1322, %v293
        %v1324 = vpop.permute.xlu0 %1323
        %1326 = vset.pattern.permute.xlu0 6
        %1327 = vperm.xlu0 %1326, %v294
        %v1328 = vpop.permute.xlu0 %1327
        %1330 = vset.pattern.permute.xlu0 6
        %1331 = vperm.xlu0 %1330, %v295
        %v1332 = vpop.permute.xlu0 %1331
        %1334 = vset.pattern.permute.xlu0 6
        %1335 = vperm.xlu0 %1334, %v296
        %v1336 = vpop.permute.xlu0 %1335
        %1338 = vset.pattern.permute.xlu0 6
        %1339 = vperm.xlu0 %1338, %v297
        %v1340 = vpop.permute.xlu0 %1339
        %1342 = vset.pattern.permute.xlu0 6
        %1343 = vperm.xlu0 %1342, %v298
        %v1344 = vpop.permute.xlu0 %1343
        %1346 = vset.pattern.permute.xlu0 6
        %1347 = vperm.xlu0 %1346, %v299
        %v1348 = vpop.permute.xlu0 %1347
        %1350 = vset.pattern.permute.xlu0 6
        %1351 = vperm.xlu0 %1350, %v300
        %v1352 = vpop.permute.xlu0 %1351
        %1354 = vset.pattern.permute.xlu0 6
        %1355 = vperm.xlu0 %1354, %v301
        %v1356 = vpop.permute.xlu0 %1355
        %v1358 = vlaneseq
        %v1359 = vshrl.u32 %v1358, 7
        %v1360 = vsub.s32 0, %v1359
        %v1361 = vrot.slane %v1257, %v1360
        %v1362 = vmul.f32 %v1260, %v1361
        %v1363 = vmul.f32 %v1264, %v1361
        %v1364 = vmul.f32 %v1268, %v1361
        %v1365 = vmul.f32 %v1272, %v1361
        %v1366 = vmul.f32 %v1276, %v1361
        %v1367 = vmul.f32 %v1280, %v1361
        %v1368 = vmul.f32 %v1284, %v1361
        %v1369 = vmul.f32 %v1288, %v1361
        %v1370 = vmul.f32 %v1292, %v1361
        %v1371 = vmul.f32 %v1296, %v1361
        %v1372 = vmul.f32 %v1300, %v1361
        %v1373 = vmul.f32 %v1304, %v1361
        %v1374 = vmul.f32 %v1308, %v1361
        %v1375 = vmul.f32 %v1312, %v1361
        %v1376 = vmul.f32 %v1316, %v1361
        %v1377 = vmul.f32 %v1320, %v1361
        %v1378 = vmul.f32 %v1324, %v1361
        %v1379 = vmul.f32 %v1328, %v1361
        %v1380 = vmul.f32 %v1332, %v1361
        %v1381 = vmul.f32 %v1336, %v1361
        %v1382 = vmul.f32 %v1340, %v1361
        %v1383 = vmul.f32 %v1344, %v1361
        %v1384 = vmul.f32 %v1348, %v1361
        %v1385 = vmul.f32 %v1352, %v1361
        %v1386 = vmul.f32 %v1356, %v1361
        %v1387 = vadd.f32 %v1232, %v1362
        %v1388 = vadd.f32 %v1233, %v1363
        %v1389 = vadd.f32 %v1234, %v1364
        %v1390 = vadd.f32 %v1235, %v1365
        %v1391 = vadd.f32 %v1236, %v1366
        %v1392 = vadd.f32 %v1237, %v1367
        %v1393 = vadd.f32 %v1238, %v1368
        %v1394 = vadd.f32 %v1239, %v1369
        %v1395 = vadd.f32 %v1240, %v1370
        %v1396 = vadd.f32 %v1241, %v1371
        %v1397 = vadd.f32 %v1242, %v1372
        %v1398 = vadd.f32 %v1243, %v1373
        %v1399 = vadd.f32 %v1244, %v1374
        %v1400 = vadd.f32 %v1245, %v1375
        %v1401 = vadd.f32 %v1246, %v1376
        %v1402 = vadd.f32 %v1247, %v1377
        %v1403 = vadd.f32 %v1248, %v1378
        %v1404 = vadd.f32 %v1249, %v1379
        %v1405 = vadd.f32 %v1250, %v1380
        %v1406 = vadd.f32 %v1251, %v1381
        %v1407 = vadd.f32 %v1252, %v1382
        %v1408 = vadd.f32 %v1253, %v1383
        %v1409 = vadd.f32 %v1254, %v1384
        %v1410 = vadd.f32 %v1255, %v1385
        %v1411 = vadd.f32 %v1256, %v1386
        %v1412 = vld [vmem:[%s1 + $0x7] sm:$0x1]
        %1413 = vset.pattern.permute.xlu0 7
        %1414 = vperm.xlu0 %1413, %v277
        %v1415 = vpop.permute.xlu0 %1414
        %1417 = vset.pattern.permute.xlu0 7
        %1418 = vperm.xlu0 %1417, %v278
        %v1419 = vpop.permute.xlu0 %1418
        %1421 = vset.pattern.permute.xlu0 7
        %1422 = vperm.xlu0 %1421, %v279
        %v1423 = vpop.permute.xlu0 %1422
        %1425 = vset.pattern.permute.xlu0 7
        %1426 = vperm.xlu0 %1425, %v280
        %v1427 = vpop.permute.xlu0 %1426
        %1429 = vset.pattern.permute.xlu0 7
        %1430 = vperm.xlu0 %1429, %v281
        %v1431 = vpop.permute.xlu0 %1430
        %1433 = vset.pattern.permute.xlu0 7
        %1434 = vperm.xlu0 %1433, %v282
        %v1435 = vpop.permute.xlu0 %1434
        %1437 = vset.pattern.permute.xlu0 7
        %1438 = vperm.xlu0 %1437, %v283
        %v1439 = vpop.permute.xlu0 %1438
        %1441 = vset.pattern.permute.xlu0 7
        %1442 = vperm.xlu0 %1441, %v284
        %v1443 = vpop.permute.xlu0 %1442
        %1445 = vset.pattern.permute.xlu0 7
        %1446 = vperm.xlu0 %1445, %v285
        %v1447 = vpop.permute.xlu0 %1446
        %1449 = vset.pattern.permute.xlu0 7
        %1450 = vperm.xlu0 %1449, %v286
        %v1451 = vpop.permute.xlu0 %1450
        %1453 = vset.pattern.permute.xlu0 7
        %1454 = vperm.xlu0 %1453, %v287
        %v1455 = vpop.permute.xlu0 %1454
        %1457 = vset.pattern.permute.xlu0 7
        %1458 = vperm.xlu0 %1457, %v288
        %v1459 = vpop.permute.xlu0 %1458
        %1461 = vset.pattern.permute.xlu0 7
        %1462 = vperm.xlu0 %1461, %v289
        %v1463 = vpop.permute.xlu0 %1462
        %1465 = vset.pattern.permute.xlu0 7
        %1466 = vperm.xlu0 %1465, %v290
        %v1467 = vpop.permute.xlu0 %1466
        %1469 = vset.pattern.permute.xlu0 7
        %1470 = vperm.xlu0 %1469, %v291
        %v1471 = vpop.permute.xlu0 %1470
        %1473 = vset.pattern.permute.xlu0 7
        %1474 = vperm.xlu0 %1473, %v292
        %v1475 = vpop.permute.xlu0 %1474
        %1477 = vset.pattern.permute.xlu0 7
        %1478 = vperm.xlu0 %1477, %v293
        %v1479 = vpop.permute.xlu0 %1478
        %1481 = vset.pattern.permute.xlu0 7
        %1482 = vperm.xlu0 %1481, %v294
        %v1483 = vpop.permute.xlu0 %1482
        %1485 = vset.pattern.permute.xlu0 7
        %1486 = vperm.xlu0 %1485, %v295
        %v1487 = vpop.permute.xlu0 %1486
        %1489 = vset.pattern.permute.xlu0 7
        %1490 = vperm.xlu0 %1489, %v296
        %v1491 = vpop.permute.xlu0 %1490
        %1493 = vset.pattern.permute.xlu0 7
        %1494 = vperm.xlu0 %1493, %v297
        %v1495 = vpop.permute.xlu0 %1494
        %1497 = vset.pattern.permute.xlu0 7
        %1498 = vperm.xlu0 %1497, %v298
        %v1499 = vpop.permute.xlu0 %1498
        %1501 = vset.pattern.permute.xlu0 7
        %1502 = vperm.xlu0 %1501, %v299
        %v1503 = vpop.permute.xlu0 %1502
        %1505 = vset.pattern.permute.xlu0 7
        %1506 = vperm.xlu0 %1505, %v300
        %v1507 = vpop.permute.xlu0 %1506
        %1509 = vset.pattern.permute.xlu0 7
        %1510 = vperm.xlu0 %1509, %v301
        %v1511 = vpop.permute.xlu0 %1510
        %v1513 = vlaneseq
        %v1514 = vshrl.u32 %v1513, 7
        %v1515 = vsub.s32 0, %v1514
        %v1516 = vrot.slane %v1412, %v1515
        %v1517 = vmul.f32 %v1415, %v1516
        %v1518 = vmul.f32 %v1419, %v1516
        %v1519 = vmul.f32 %v1423, %v1516
        %v1520 = vmul.f32 %v1427, %v1516
        %v1521 = vmul.f32 %v1431, %v1516
        %v1522 = vmul.f32 %v1435, %v1516
        %v1523 = vmul.f32 %v1439, %v1516
        %v1524 = vmul.f32 %v1443, %v1516
        %v1525 = vmul.f32 %v1447, %v1516
        %v1526 = vmul.f32 %v1451, %v1516
        %v1527 = vmul.f32 %v1455, %v1516
        %v1528 = vmul.f32 %v1459, %v1516
        %v1529 = vmul.f32 %v1463, %v1516
        %v1530 = vmul.f32 %v1467, %v1516
        %v1531 = vmul.f32 %v1471, %v1516
        %v1532 = vmul.f32 %v1475, %v1516
        %v1533 = vmul.f32 %v1479, %v1516
        %v1534 = vmul.f32 %v1483, %v1516
        %v1535 = vmul.f32 %v1487, %v1516
        %v1536 = vmul.f32 %v1491, %v1516
        %v1537 = vmul.f32 %v1495, %v1516
        %v1538 = vmul.f32 %v1499, %v1516
        %v1539 = vmul.f32 %v1503, %v1516
        %v1540 = vmul.f32 %v1507, %v1516
        %v1541 = vmul.f32 %v1511, %v1516
        %v1542 = vadd.f32 %v1387, %v1517
        %v1543 = vadd.f32 %v1388, %v1518
        %v1544 = vadd.f32 %v1389, %v1519
        %v1545 = vadd.f32 %v1390, %v1520
        %v1546 = vadd.f32 %v1391, %v1521
        %v1547 = vadd.f32 %v1392, %v1522
        %v1548 = vadd.f32 %v1393, %v1523
        %v1549 = vadd.f32 %v1394, %v1524
        %v1550 = vadd.f32 %v1395, %v1525
        %v1551 = vadd.f32 %v1396, %v1526
        %v1552 = vadd.f32 %v1397, %v1527
        %v1553 = vadd.f32 %v1398, %v1528
        %v1554 = vadd.f32 %v1399, %v1529
        %v1555 = vadd.f32 %v1400, %v1530
        %v1556 = vadd.f32 %v1401, %v1531
        %v1557 = vadd.f32 %v1402, %v1532
        %v1558 = vadd.f32 %v1403, %v1533
        %v1559 = vadd.f32 %v1404, %v1534
        %v1560 = vadd.f32 %v1405, %v1535
        %v1561 = vadd.f32 %v1406, %v1536
        %v1562 = vadd.f32 %v1407, %v1537
        %v1563 = vadd.f32 %v1408, %v1538
        %v1564 = vadd.f32 %v1409, %v1539
        %v1565 = vadd.f32 %v1410, %v1540
        %v1566 = vadd.f32 %v1411, %v1541
        %v1567 = vld [vmem:[%s1 + $0x8] sm:$0x1]
        %1568 = vset.pattern.permute.xlu0 8
        %1569 = vperm.xlu0 %1568, %v277
        %v1570 = vpop.permute.xlu0 %1569
        %1572 = vset.pattern.permute.xlu0 8
        %1573 = vperm.xlu0 %1572, %v278
        %v1574 = vpop.permute.xlu0 %1573
        %1576 = vset.pattern.permute.xlu0 8
        %1577 = vperm.xlu0 %1576, %v279
        %v1578 = vpop.permute.xlu0 %1577
        %1580 = vset.pattern.permute.xlu0 8
        %1581 = vperm.xlu0 %1580, %v280
        %v1582 = vpop.permute.xlu0 %1581
        %1584 = vset.pattern.permute.xlu0 8
        %1585 = vperm.xlu0 %1584, %v281
        %v1586 = vpop.permute.xlu0 %1585
        %1588 = vset.pattern.permute.xlu0 8
        %1589 = vperm.xlu0 %1588, %v282
        %v1590 = vpop.permute.xlu0 %1589
        %1592 = vset.pattern.permute.xlu0 8
        %1593 = vperm.xlu0 %1592, %v283
        %v1594 = vpop.permute.xlu0 %1593
        %1596 = vset.pattern.permute.xlu0 8
        %1597 = vperm.xlu0 %1596, %v284
        %v1598 = vpop.permute.xlu0 %1597
        %1600 = vset.pattern.permute.xlu0 8
        %1601 = vperm.xlu0 %1600, %v285
        %v1602 = vpop.permute.xlu0 %1601
        %1604 = vset.pattern.permute.xlu0 8
        %1605 = vperm.xlu0 %1604, %v286
        %v1606 = vpop.permute.xlu0 %1605
        %1608 = vset.pattern.permute.xlu0 8
        %1609 = vperm.xlu0 %1608, %v287
        %v1610 = vpop.permute.xlu0 %1609
        %1612 = vset.pattern.permute.xlu0 8
        %1613 = vperm.xlu0 %1612, %v288
        %v1614 = vpop.permute.xlu0 %1613
        %1616 = vset.pattern.permute.xlu0 8
        %1617 = vperm.xlu0 %1616, %v289
        %v1618 = vpop.permute.xlu0 %1617
        %1620 = vset.pattern.permute.xlu0 8
        %1621 = vperm.xlu0 %1620, %v290
        %v1622 = vpop.permute.xlu0 %1621
        %1624 = vset.pattern.permute.xlu0 8
        %1625 = vperm.xlu0 %1624, %v291
        %v1626 = vpop.permute.xlu0 %1625
        %1628 = vset.pattern.permute.xlu0 8
        %1629 = vperm.xlu0 %1628, %v292
        %v1630 = vpop.permute.xlu0 %1629
        %1632 = vset.pattern.permute.xlu0 8
        %1633 = vperm.xlu0 %1632, %v293
        %v1634 = vpop.permute.xlu0 %1633
        %1636 = vset.pattern.permute.xlu0 8
        %1637 = vperm.xlu0 %1636, %v294
        %v1638 = vpop.permute.xlu0 %1637
        %1640 = vset.pattern.permute.xlu0 8
        %1641 = vperm.xlu0 %1640, %v295
        %v1642 = vpop.permute.xlu0 %1641
        %1644 = vset.pattern.permute.xlu0 8
        %1645 = vperm.xlu0 %1644, %v296
        %v1646 = vpop.permute.xlu0 %1645
        %1648 = vset.pattern.permute.xlu0 8
        %1649 = vperm.xlu0 %1648, %v297
        %v1650 = vpop.permute.xlu0 %1649
        %1652 = vset.pattern.permute.xlu0 8
        %1653 = vperm.xlu0 %1652, %v298
        %v1654 = vpop.permute.xlu0 %1653
        %1656 = vset.pattern.permute.xlu0 8
        %1657 = vperm.xlu0 %1656, %v299
        %v1658 = vpop.permute.xlu0 %1657
        %1660 = vset.pattern.permute.xlu0 8
        %1661 = vperm.xlu0 %1660, %v300
        %v1662 = vpop.permute.xlu0 %1661
        %1664 = vset.pattern.permute.xlu0 8
        %1665 = vperm.xlu0 %1664, %v301
        %v1666 = vpop.permute.xlu0 %1665
        %v1668 = vlaneseq
        %v1669 = vshrl.u32 %v1668, 7
        %v1670 = vsub.s32 0, %v1669
        %v1671 = vrot.slane %v1567, %v1670
        %v1672 = vmul.f32 %v1570, %v1671
        %v1673 = vmul.f32 %v1574, %v1671
        %v1674 = vmul.f32 %v1578, %v1671
        %v1675 = vmul.f32 %v1582, %v1671
        %v1676 = vmul.f32 %v1586, %v1671
        %v1677 = vmul.f32 %v1590, %v1671
        %v1678 = vmul.f32 %v1594, %v1671
        %v1679 = vmul.f32 %v1598, %v1671
        %v1680 = vmul.f32 %v1602, %v1671
        %v1681 = vmul.f32 %v1606, %v1671
        %v1682 = vmul.f32 %v1610, %v1671
        %v1683 = vmul.f32 %v1614, %v1671
        %v1684 = vmul.f32 %v1618, %v1671
        %v1685 = vmul.f32 %v1622, %v1671
        %v1686 = vmul.f32 %v1626, %v1671
        %v1687 = vmul.f32 %v1630, %v1671
        %v1688 = vmul.f32 %v1634, %v1671
        %v1689 = vmul.f32 %v1638, %v1671
        %v1690 = vmul.f32 %v1642, %v1671
        %v1691 = vmul.f32 %v1646, %v1671
        %v1692 = vmul.f32 %v1650, %v1671
        %v1693 = vmul.f32 %v1654, %v1671
        %v1694 = vmul.f32 %v1658, %v1671
        %v1695 = vmul.f32 %v1662, %v1671
        %v1696 = vmul.f32 %v1666, %v1671
        %v1697 = vadd.f32 %v1542, %v1672
        %v1698 = vadd.f32 %v1543, %v1673
        %v1699 = vadd.f32 %v1544, %v1674
        %v1700 = vadd.f32 %v1545, %v1675
        %v1701 = vadd.f32 %v1546, %v1676
        %v1702 = vadd.f32 %v1547, %v1677
        %v1703 = vadd.f32 %v1548, %v1678
        %v1704 = vadd.f32 %v1549, %v1679
        %v1705 = vadd.f32 %v1550, %v1680
        %v1706 = vadd.f32 %v1551, %v1681
        %v1707 = vadd.f32 %v1552, %v1682
        %v1708 = vadd.f32 %v1553, %v1683
        %v1709 = vadd.f32 %v1554, %v1684
        %v1710 = vadd.f32 %v1555, %v1685
        %v1711 = vadd.f32 %v1556, %v1686
        %v1712 = vadd.f32 %v1557, %v1687
        %v1713 = vadd.f32 %v1558, %v1688
        %v1714 = vadd.f32 %v1559, %v1689
        %v1715 = vadd.f32 %v1560, %v1690
        %v1716 = vadd.f32 %v1561, %v1691
        %v1717 = vadd.f32 %v1562, %v1692
        %v1718 = vadd.f32 %v1563, %v1693
        %v1719 = vadd.f32 %v1564, %v1694
        %v1720 = vadd.f32 %v1565, %v1695
        %v1721 = vadd.f32 %v1566, %v1696
        %v1722 = vld [vmem:[%s2] sm:$0x1]
        %v1724 = vlaneseq
        %v1725 = vshrl.u32 %v1724, 7
        %v1726 = vsub.s32 0, %v1725
        %v1727 = vrot.slane %v1722, %v1726
        %v1729 = vadd.f32 %v1697, %v1727
        %v1730 = vadd.f32 %v1698, %v1727
        %v1731 = vadd.f32 %v1699, %v1727
        %v1732 = vadd.f32 %v1700, %v1727
        %v1733 = vadd.f32 %v1701, %v1727
        %v1734 = vadd.f32 %v1702, %v1727
        %v1735 = vadd.f32 %v1703, %v1727
        %v1736 = vadd.f32 %v1704, %v1727
        %v1737 = vadd.f32 %v1705, %v1727
        %v1738 = vadd.f32 %v1706, %v1727
        %v1739 = vadd.f32 %v1707, %v1727
        %v1740 = vadd.f32 %v1708, %v1727
        %v1741 = vadd.f32 %v1709, %v1727
        %v1742 = vadd.f32 %v1710, %v1727
        %v1743 = vadd.f32 %v1711, %v1727
        %v1744 = vadd.f32 %v1712, %v1727
        %v1745 = vadd.f32 %v1713, %v1727
        %v1746 = vadd.f32 %v1714, %v1727
        %v1747 = vadd.f32 %v1715, %v1727
        %v1748 = vadd.f32 %v1716, %v1727
        %v1749 = vadd.f32 %v1717, %v1727
        %v1750 = vadd.f32 %v1718, %v1727
        %v1751 = vadd.f32 %v1719, %v1727
        %v1752 = vadd.f32 %v1720, %v1727
        %v1753 = vadd.f32 %v1721, %v1727
        %v1754 = vmax.f32 %v1729, 0.0
        %v1755 = vmax.f32 %v1730, 0.0
        %v1756 = vmax.f32 %v1731, 0.0
        %v1757 = vmax.f32 %v1732, 0.0
        %v1758 = vmax.f32 %v1733, 0.0
        %v1759 = vmax.f32 %v1734, 0.0
        %v1760 = vmax.f32 %v1735, 0.0
        %v1761 = vmax.f32 %v1736, 0.0
        %v1762 = vmax.f32 %v1737, 0.0
        %v1763 = vmax.f32 %v1738, 0.0
        %v1764 = vmax.f32 %v1739, 0.0
        %v1765 = vmax.f32 %v1740, 0.0
        %v1766 = vmax.f32 %v1741, 0.0
        %v1767 = vmax.f32 %v1742, 0.0
        %v1768 = vmax.f32 %v1743, 0.0
        %v1769 = vmax.f32 %v1744, 0.0
        %v1770 = vmax.f32 %v1745, 0.0
        %v1771 = vmax.f32 %v1746, 0.0
        %v1772 = vmax.f32 %v1747, 0.0
        %v1773 = vmax.f32 %v1748, 0.0
        %v1774 = vmax.f32 %v1749, 0.0
        %v1775 = vmax.f32 %v1750, 0.0
        %v1776 = vmax.f32 %v1751, 0.0
        %v1777 = vmax.f32 %v1752, 0.0
        %v1778 = vmax.f32 %v1753, 0.0
        %vm1779 = vcmask 130048
        %1780 = vst.msk [vmem:[#allocation2] sm:$0xff] %vm1779, 0.0
        %1781 = vst.msk [vmem:[#allocation2 + $0x8] sm:$0xff] %vm1779, 0.0
        %1782 = vst.msk [vmem:[#allocation2 + $0x10] sm:$0xff] %vm1779, 0.0
        %1783 = vst.msk [vmem:[#allocation2 + $0x18] sm:$0xff] %vm1779, 0.0
        %1784 = vst.msk [vmem:[#allocation2 + $0x20] sm:$0xff] %vm1779, 0.0
        %1785 = vst.msk [vmem:[#allocation2 + $0x28] sm:$0xff] %vm1779, 0.0
        %1786 = vst.msk [vmem:[#allocation2 + $0x30] sm:$0xff] %vm1779, 0.0
        %1787 = vst.msk [vmem:[#allocation2 + $0x38] sm:$0xff] %vm1779, 0.0
        %1788 = vst.msk [vmem:[#allocation2 + $0x40] sm:$0xff] %vm1779, 0.0
        %1789 = vst.msk [vmem:[#allocation2 + $0x48] sm:$0xff] %vm1779, 0.0
        %1790 = vst.msk [vmem:[#allocation2 + $0x50] sm:$0xff] %vm1779, 0.0
        %1791 = vst.msk [vmem:[#allocation2 + $0x58] sm:$0xff] %vm1779, 0.0
        %1792 = vst.msk [vmem:[#allocation2 + $0x60] sm:$0xff] %vm1779, 0.0
        %1793 = vst.msk [vmem:[#allocation2 + $0x68] sm:$0xff] %vm1779, 0.0
        %1794 = vst.msk [vmem:[#allocation2 + $0x70] sm:$0xff] %vm1779, 0.0
        %1795 = vst.msk [vmem:[#allocation2 + $0x78] sm:$0xff] %vm1779, 0.0
        %1796 = vst.msk [vmem:[#allocation2 + $0x80] sm:$0xff] %vm1779, 0.0
        %1797 = vst.msk [vmem:[#allocation2 + $0x88] sm:$0xff] %vm1779, 0.0
        %1798 = vst.msk [vmem:[#allocation2 + $0x90] sm:$0xff] %vm1779, 0.0
        %1799 = vst.msk [vmem:[#allocation2 + $0x98] sm:$0xff] %vm1779, 0.0
        %1800 = vst.msk [vmem:[#allocation2 + $0xa0] sm:$0xff] %vm1779, 0.0
        %1801 = vst.msk [vmem:[#allocation2 + $0xa8] sm:$0xff] %vm1779, 0.0
        %1802 = vst.msk [vmem:[#allocation2 + $0xb0] sm:$0xff] %vm1779, 0.0
        %1803 = vst.msk [vmem:[#allocation2 + $0xb8] sm:$0xff] %vm1779, 0.0
        %1804 = vst.msk [vmem:[#allocation2 + $0xc0] sm:$0xff] %vm1779, 0.0
        %1805 = vst.msk [vmem:[#allocation2 + $0xc8] sm:$0xff] %vm1779, 0.0
        %1806 = vst.msk [vmem:[#allocation2 + $0xd0] sm:$0xff] %vm1779, 0.0
        %1807 = vst.msk [vmem:[#allocation2 + $0xd8] sm:$0xff] %vm1779, 0.0
        %1808 = vst.msk [vmem:[#allocation2 + $0xe0] sm:$0xff] %vm1779, 0.0
        %1809 = vst.msk [vmem:[#allocation2 + $0xe8] sm:$0xff] %vm1779, 0.0
        %1810 = vst.msk [vmem:[#allocation2 + $0xf0] sm:$0xff] %vm1779, 0.0
        %1811 = vst.msk [vmem:[#allocation2 + $0xf8] sm:$0xff] %vm1779, 0.0
        %1812 = vst.msk [vmem:[#allocation2 + $0x11] sm:$0xff] %vm1779, %v1754
        %vm1813 = vcmask 128000
        %1814 = vst.msk [vmem:[#allocation2 + $0x19] sm:$0x3f] %vm1813, %v1755
        %vm1815 = vcmask 130054
        %1816 = vst.msk [vmem:[#allocation2 + $0x1b] sm:$0xc0] %vm1815, %v1755
        %1817 = vst.msk [vmem:[#allocation2 + $0x23] sm:$0xff] %vm1779, %v1756
        %vm1818 = vcmask 125952
        %1819 = vst.msk [vmem:[#allocation2 + $0x2b] sm:$0xf] %vm1818, %v1757
        %vm1820 = vcmask 130052
        %1821 = vst.msk [vmem:[#allocation2 + $0x2d] sm:$0xf0] %vm1820, %v1757
        %1822 = vst.msk [vmem:[#allocation2 + $0x35] sm:$0xff] %vm1779, %v1758
        %vm1823 = vcmask 123904
        %1824 = vst.msk [vmem:[#allocation2 + $0x3d] sm:$0x3] %vm1823, %v1759
        %vm1825 = vcmask 130050
        %1826 = vst.msk [vmem:[#allocation2 + $0x3f] sm:$0xfc] %vm1825, %v1759
        %1827 = vst.msk [vmem:[#allocation2 + $0x47] sm:$0xff] %vm1779, %v1760
        %1828 = vst.msk [vmem:[#allocation2 + $0x51] sm:$0xff] %vm1779, %v1761
        %1829 = vst.msk [vmem:[#allocation2 + $0x59] sm:$0x3f] %vm1813, %v1762
        %1830 = vst.msk [vmem:[#allocation2 + $0x5b] sm:$0xc0] %vm1815, %v1762
        %1831 = vst.msk [vmem:[#allocation2 + $0x63] sm:$0xff] %vm1779, %v1763
        %1832 = vst.msk [vmem:[#allocation2 + $0x6b] sm:$0xf] %vm1818, %v1764
        %1833 = vst.msk [vmem:[#allocation2 + $0x6d] sm:$0xf0] %vm1820, %v1764
        %1834 = vst.msk [vmem:[#allocation2 + $0x75] sm:$0xff] %vm1779, %v1765
        %1835 = vst.msk [vmem:[#allocation2 + $0x7d] sm:$0x3] %vm1823, %v1766
        %1836 = vst.msk [vmem:[#allocation2 + $0x7f] sm:$0xfc] %vm1825, %v1766
        %1837 = vst.msk [vmem:[#allocation2 + $0x87] sm:$0xff] %vm1779, %v1767
        %1838 = vst.msk [vmem:[#allocation2 + $0x91] sm:$0xff] %vm1779, %v1768
        %1839 = vst.msk [vmem:[#allocation2 + $0x99] sm:$0x3f] %vm1813, %v1769
        %1840 = vst.msk [vmem:[#allocation2 + $0x9b] sm:$0xc0] %vm1815, %v1769
        %1841 = vst.msk [vmem:[#allocation2 + $0xa3] sm:$0xff] %vm1779, %v1770
        %1842 = vst.msk [vmem:[#allocation2 + $0xab] sm:$0xf] %vm1818, %v1771
        %1843 = vst.msk [vmem:[#allocation2 + $0xad] sm:$0xf0] %vm1820, %v1771
        %1844 = vst.msk [vmem:[#allocation2 + $0xb5] sm:$0xff] %vm1779, %v1772
        %1845 = vst.msk [vmem:[#allocation2 + $0xbd] sm:$0x3] %vm1823, %v1773
        %1846 = vst.msk [vmem:[#allocation2 + $0xbf] sm:$0xfc] %vm1825, %v1773
        %1847 = vst.msk [vmem:[#allocation2 + $0xc7] sm:$0xff] %vm1779, %v1774
        %1848 = vst.msk [vmem:[#allocation2 + $0xd1] sm:$0xff] %vm1779, %v1775
        %1849 = vst.msk [vmem:[#allocation2 + $0xd9] sm:$0x3f] %vm1813, %v1776
        %1850 = vst.msk [vmem:[#allocation2 + $0xdb] sm:$0xc0] %vm1815, %v1776
        %1851 = vst.msk [vmem:[#allocation2 + $0xe3] sm:$0xff] %vm1779, %v1777
        %1852 = vst.msk [vmem:[#allocation2 + $0xeb] sm:$0xf] %vm1818, %v1778
        %v1853 = vld [vmem:[#allocation2] sm:$0x7f]
        %vm1854 = vcmask 129024
        %1855 = vst.msk [vmem:[#allocation3] sm:$0x7f] %vm1854, %v1853
        %v1856 = vld [vmem:[#allocation2 + $0x20] sm:$0x7f]
        %v1858 = vrot.slane %v1856, 1
        %vm1860 = vcmask 130055
        %1861 = vst.msk [vmem:[#allocation3] sm:$0x80] %vm1860, %v1858
        %1862 = vst.msk [vmem:[#allocation3 + $0x10] sm:$0x3f] %vm1813, %v1858
        %v1863 = vld [vmem:[#allocation2 + $0x40] sm:$0x7f]
        %v1865 = vrot.slane %v1863, 2
        %1867 = vst.msk [vmem:[#allocation3 + $0x10] sm:$0xc0] %vm1815, %v1865
        %vm1868 = vcmask 126976
        %1869 = vst.msk [vmem:[#allocation3 + $0x20] sm:$0x1f] %vm1868, %v1865
        %v1870 = vld [vmem:[#allocation2 + $0x60] sm:$0x7f]
        %v1872 = vrot.slane %v1870, 3
        %vm1874 = vcmask 130053
        %1875 = vst.msk [vmem:[#allocation3 + $0x20] sm:$0xe0] %vm1874, %v1872
        %1876 = vst.msk [vmem:[#allocation3 + $0x30] sm:$0xf] %vm1818, %v1872
        %v1877 = vld [vmem:[#allocation2 + $0x80] sm:$0x7f]
        %v1879 = vrot.slane %v1877, 4
        %1881 = vst.msk [vmem:[#allocation3 + $0x30] sm:$0xf0] %vm1820, %v1879
        %vm1882 = vcmask 124928
        %1883 = vst.msk [vmem:[#allocation3 + $0x40] sm:$0x7] %vm1882, %v1879
        %v1884 = vld [vmem:[#allocation2 + $0xa0] sm:$0x7f]
        %v1886 = vrot.slane %v1884, 5
        %vm1888 = vcmask 130051
        %1889 = vst.msk [vmem:[#allocation3 + $0x40] sm:$0xf8] %vm1888, %v1886
        %1890 = vst.msk [vmem:[#allocation3 + $0x50] sm:$0x3] %vm1823, %v1886
        %v1891 = vld [vmem:[#allocation2 + $0xc0] sm:$0x7f]
        %v1893 = vrot.slane %v1891, 6
        %1895 = vst.msk [vmem:[#allocation3 + $0x50] sm:$0xfc] %vm1825, %v1893
        %vm1896 = vcmask 122880
        %1897 = vst.msk [vmem:[#allocation3 + $0x60] sm:$0x1] %vm1896, %v1893
        %v1898 = vld [vmem:[#allocation2 + $0x8] sm:$0x7f]
        %1900 = vrot.lane.b32.xlu0 %v1898, 16
        %v1901 = vpop.permute.xlu0 %1900
        %vm1903 = vcmask 260224
        %1904 = vst.msk [vmem:[#allocation3] sm:$0x7f] %vm1903, %v1901
        %v1905 = vld [vmem:[#allocation2 + $0x28] sm:$0x7f]
        %v1907 = vrot.slane %v1905, 1
        %1908 = vrot.lane.b32.xlu0 %v1907, 16
        %v1909 = vpop.permute.xlu0 %1908
        %vm1911 = vcmask 261255
        %1912 = vst.msk [vmem:[#allocation3] sm:$0x80] %vm1911, %v1909
        %vm1913 = vcmask 259200
        %1914 = vst.msk [vmem:[#allocation3 + $0x10] sm:$0x3f] %vm1913, %v1909
        %v1915 = vld [vmem:[#allocation2 + $0x48] sm:$0x7f]
        %v1917 = vrot.slane %v1915, 2
        %1918 = vrot.lane.b32.xlu0 %v1917, 16
        %v1919 = vpop.permute.xlu0 %1918
        %vm1921 = vcmask 261254
        %1922 = vst.msk [vmem:[#allocation3 + $0x10] sm:$0xc0] %vm1921, %v1919
        %vm1923 = vcmask 258176
        %1924 = vst.msk [vmem:[#allocation3 + $0x20] sm:$0x1f] %vm1923, %v1919
        %v1925 = vld [vmem:[#allocation2 + $0x68] sm:$0x7f]
        %v1927 = vrot.slane %v1925, 3
        %1928 = vrot.lane.b32.xlu0 %v1927, 16
        %v1929 = vpop.permute.xlu0 %1928
        %vm1931 = vcmask 261253
        %1932 = vst.msk [vmem:[#allocation3 + $0x20] sm:$0xe0] %vm1931, %v1929
        %vm1933 = vcmask 257152
        %1934 = vst.msk [vmem:[#allocation3 + $0x30] sm:$0xf] %vm1933, %v1929
        %v1935 = vld [vmem:[#allocation2 + $0x88] sm:$0x7f]
        %v1937 = vrot.slane %v1935, 4
        %1938 = vrot.lane.b32.xlu0 %v1937, 16
        %v1939 = vpop.permute.xlu0 %1938
        %vm1941 = vcmask 261252
        %1942 = vst.msk [vmem:[#allocation3 + $0x30] sm:$0xf0] %vm1941, %v1939
        %vm1943 = vcmask 256128
        %1944 = vst.msk [vmem:[#allocation3 + $0x40] sm:$0x7] %vm1943, %v1939
        %v1945 = vld [vmem:[#allocation2 + $0xa8] sm:$0x7f]
        %v1947 = vrot.slane %v1945, 5
        %1948 = vrot.lane.b32.xlu0 %v1947, 16
        %v1949 = vpop.permute.xlu0 %1948
        %vm1951 = vcmask 261251
        %1952 = vst.msk [vmem:[#allocation3 + $0x40] sm:$0xf8] %vm1951, %v1949
        %vm1953 = vcmask 255104
        %1954 = vst.msk [vmem:[#allocation3 + $0x50] sm:$0x3] %vm1953, %v1949
        %v1955 = vld [vmem:[#allocation2 + $0xc8] sm:$0x7f]
        %v1957 = vrot.slane %v1955, 6
        %1958 = vrot.lane.b32.xlu0 %v1957, 16
        %v1959 = vpop.permute.xlu0 %1958
        %vm1961 = vcmask 261250
        %1962 = vst.msk [vmem:[#allocation3 + $0x50] sm:$0xfc] %vm1961, %v1959
        %vm1963 = vcmask 254080
        %1964 = vst.msk [vmem:[#allocation3 + $0x60] sm:$0x1] %vm1963, %v1959
        %v1965 = vld [vmem:[#allocation2 + $0x1] sm:$0x7f]
        %1967 = vrot.lane.b32.xlu0 %v1965, 32
        %v1968 = vpop.permute.xlu0 %1967
        %vm1970 = vcmask 391424
        %1971 = vst.msk [vmem:[#allocation3] sm:$0x7f] %vm1970, %v1968
        %v1972 = vld [vmem:[#allocation2 + $0x21] sm:$0x7f]
        %v1974 = vrot.slane %v1972, 1
        %1975 = vrot.lane.b32.xlu0 %v1974, 32
        %v1976 = vpop.permute.xlu0 %1975
        %vm1978 = vcmask 392455
        %1979 = vst.msk [vmem:[#allocation3] sm:$0x80] %vm1978, %v1976
        %vm1980 = vcmask 390400
        %1981 = vst.msk [vmem:[#allocation3 + $0x10] sm:$0x3f] %vm1980, %v1976
        %v1982 = vld [vmem:[#allocation2 + $0x41] sm:$0x7f]
        %v1984 = vrot.slane %v1982, 2
        %1985 = vrot.lane.b32.xlu0 %v1984, 32
        %v1986 = vpop.permute.xlu0 %1985
        %vm1988 = vcmask 392454
        %1989 = vst.msk [vmem:[#allocation3 + $0x10] sm:$0xc0] %vm1988, %v1986
        %vm1990 = vcmask 389376
        %1991 = vst.msk [vmem:[#allocation3 + $0x20] sm:$0x1f] %vm1990, %v1986
        %v1992 = vld [vmem:[#allocation2 + $0x61] sm:$0x7f]
        %v1994 = vrot.slane %v1992, 3
        %1995 = vrot.lane.b32.xlu0 %v1994, 32
        %v1996 = vpop.permute.xlu0 %1995
        %vm1998 = vcmask 392453
        %1999 = vst.msk [vmem:[#allocation3 + $0x20] sm:$0xe0] %vm1998, %v1996
        %vm2000 = vcmask 388352
        %2001 = vst.msk [vmem:[#allocation3 + $0x30] sm:$0xf] %vm2000, %v1996
        %v2002 = vld [vmem:[#allocation2 + $0x81] sm:$0x7f]
        %v2004 = vrot.slane %v2002, 4
        %2005 = vrot.lane.b32.xlu0 %v2004, 32
        %v2006 = vpop.permute.xlu0 %2005
        %vm2008 = vcmask 392452
        %2009 = vst.msk [vmem:[#allocation3 + $0x30] sm:$0xf0] %vm2008, %v2006
        %vm2010 = vcmask 387328
        %2011 = vst.msk [vmem:[#allocation3 + $0x40] sm:$0x7] %vm2010, %v2006
        %v2012 = vld [vmem:[#allocation2 + $0xa1] sm:$0x7f]
        %v2014 = vrot.slane %v2012, 5
        %2015 = vrot.lane.b32.xlu0 %v2014, 32
        %v2016 = vpop.permute.xlu0 %2015
        %vm2018 = vcmask 392451
        %2019 = vst.msk [vmem:[#allocation3 + $0x40] sm:$0xf8] %vm2018, %v2016
        %vm2020 = vcmask 386304
        %2021 = vst.msk [vmem:[#allocation3 + $0x50] sm:$0x3] %vm2020, %v2016
        %v2022 = vld [vmem:[#allocation2 + $0xc1] sm:$0x7f]
        %v2024 = vrot.slane %v2022, 6
        %2025 = vrot.lane.b32.xlu0 %v2024, 32
        %v2026 = vpop.permute.xlu0 %2025
        %vm2028 = vcmask 392450
        %2029 = vst.msk [vmem:[#allocation3 + $0x50] sm:$0xfc] %vm2028, %v2026
        %vm2030 = vcmask 385280
        %2031 = vst.msk [vmem:[#allocation3 + $0x60] sm:$0x1] %vm2030, %v2026
        %v2032 = vld [vmem:[#allocation2 + $0x10] sm:$0x7f]
        %2034 = vrot.lane.b32.xlu0 %v2032, 48
        %v2035 = vpop.permute.xlu0 %2034
        %vm2037 = vcmask 522624
        %2038 = vst.msk [vmem:[#allocation3] sm:$0x7f] %vm2037, %v2035
        %v2039 = vld [vmem:[#allocation2 + $0x30] sm:$0x7f]
        %v2041 = vrot.slane %v2039, 1
        %2042 = vrot.lane.b32.xlu0 %v2041, 48
        %v2043 = vpop.permute.xlu0 %2042
        %vm2045 = vcmask 523655
        %2046 = vst.msk [vmem:[#allocation3] sm:$0x80] %vm2045, %v2043
        %vm2047 = vcmask 521600
        %2048 = vst.msk [vmem:[#allocation3 + $0x10] sm:$0x3f] %vm2047, %v2043
        %v2049 = vld [vmem:[#allocation2 + $0x50] sm:$0x7f]
        %v2051 = vrot.slane %v2049, 2
        %2052 = vrot.lane.b32.xlu0 %v2051, 48
        %v2053 = vpop.permute.xlu0 %2052
        %vm2055 = vcmask 523654
        %2056 = vst.msk [vmem:[#allocation3 + $0x10] sm:$0xc0] %vm2055, %v2053
        %vm2057 = vcmask 520576
        %2058 = vst.msk [vmem:[#allocation3 + $0x20] sm:$0x1f] %vm2057, %v2053
        %v2059 = vld [vmem:[#allocation2 + $0x70] sm:$0x7f]
        %v2061 = vrot.slane %v2059, 3
        %2062 = vrot.lane.b32.xlu0 %v2061, 48
        %v2063 = vpop.permute.xlu0 %2062
        %vm2065 = vcmask 523653
        %2066 = vst.msk [vmem:[#allocation3 + $0x20] sm:$0xe0] %vm2065, %v2063
        %vm2067 = vcmask 519552
        %2068 = vst.msk [vmem:[#allocation3 + $0x30] sm:$0xf] %vm2067, %v2063
        %v2069 = vld [vmem:[#allocation2 + $0x90] sm:$0x7f]
        %v2071 = vrot.slane %v2069, 4
        %2072 = vrot.lane.b32.xlu0 %v2071, 48
        %v2073 = vpop.permute.xlu0 %2072
        %vm2075 = vcmask 523652
        %2076 = vst.msk [vmem:[#allocation3 + $0x30] sm:$0xf0] %vm2075, %v2073
        %vm2077 = vcmask 518528
        %2078 = vst.msk [vmem:[#allocation3 + $0x40] sm:$0x7] %vm2077, %v2073
        %v2079 = vld [vmem:[#allocation2 + $0xb0] sm:$0x7f]
        %v2081 = vrot.slane %v2079, 5
        %2082 = vrot.lane.b32.xlu0 %v2081, 48
        %v2083 = vpop.permute.xlu0 %2082
        %vm2085 = vcmask 523651
        %2086 = vst.msk [vmem:[#allocation3 + $0x40] sm:$0xf8] %vm2085, %v2083
        %vm2087 = vcmask 517504
        %2088 = vst.msk [vmem:[#allocation3 + $0x50] sm:$0x3] %vm2087, %v2083
        %v2089 = vld [vmem:[#allocation2 + $0xd0] sm:$0x7f]
        %v2091 = vrot.slane %v2089, 6
        %2092 = vrot.lane.b32.xlu0 %v2091, 48
        %v2093 = vpop.permute.xlu0 %2092
        %vm2095 = vcmask 523650
        %2096 = vst.msk [vmem:[#allocation3 + $0x50] sm:$0xfc] %vm2095, %v2093
        %vm2097 = vcmask 516480
        %2098 = vst.msk [vmem:[#allocation3 + $0x60] sm:$0x1] %vm2097, %v2093
        %v2099 = vld [vmem:[#allocation2 + $0x18] sm:$0x7f]
        %2101 = vrot.lane.b32.xlu0 %v2099, 64
        %v2102 = vpop.permute.xlu0 %2101
        %vm2104 = vcmask 653824
        %2105 = vst.msk [vmem:[#allocation3] sm:$0x7f] %vm2104, %v2102
        %v2106 = vld [vmem:[#allocation2 + $0x38] sm:$0x7f]
        %v2108 = vrot.slane %v2106, 1
        %2109 = vrot.lane.b32.xlu0 %v2108, 64
        %v2110 = vpop.permute.xlu0 %2109
        %vm2112 = vcmask 654855
        %2113 = vst.msk [vmem:[#allocation3] sm:$0x80] %vm2112, %v2110
        %vm2114 = vcmask 652800
        %2115 = vst.msk [vmem:[#allocation3 + $0x10] sm:$0x3f] %vm2114, %v2110
        %v2116 = vld [vmem:[#allocation2 + $0x58] sm:$0x7f]
        %v2118 = vrot.slane %v2116, 2
        %2119 = vrot.lane.b32.xlu0 %v2118, 64
        %v2120 = vpop.permute.xlu0 %2119
        %vm2122 = vcmask 654854
        %2123 = vst.msk [vmem:[#allocation3 + $0x10] sm:$0xc0] %vm2122, %v2120
        %vm2124 = vcmask 651776
        %2125 = vst.msk [vmem:[#allocation3 + $0x20] sm:$0x1f] %vm2124, %v2120
        %v2126 = vld [vmem:[#allocation2 + $0x78] sm:$0x7f]
        %v2128 = vrot.slane %v2126, 3
        %2129 = vrot.lane.b32.xlu0 %v2128, 64
        %v2130 = vpop.permute.xlu0 %2129
        %vm2132 = vcmask 654853
        %2133 = vst.msk [vmem:[#allocation3 + $0x20] sm:$0xe0] %vm2132, %v2130
        %vm2134 = vcmask 650752
        %2135 = vst.msk [vmem:[#allocation3 + $0x30] sm:$0xf] %vm2134, %v2130
        %v2136 = vld [vmem:[#allocation2 + $0x98] sm:$0x7f]
        %v2138 = vrot.slane %v2136, 4
        %2139 = vrot.lane.b32.xlu0 %v2138, 64
        %v2140 = vpop.permute.xlu0 %2139
        %vm2142 = vcmask 654852
        %2143 = vst.msk [vmem:[#allocation3 + $0x30] sm:$0xf0] %vm2142, %v2140
        %vm2144 = vcmask 649728
        %2145 = vst.msk [vmem:[#allocation3 + $0x40] sm:$0x7] %vm2144, %v2140
        %v2146 = vld [vmem:[#allocation2 + $0xb8] sm:$0x7f]
        %v2148 = vrot.slane %v2146, 5
        %2149 = vrot.lane.b32.xlu0 %v2148, 64
        %v2150 = vpop.permute.xlu0 %2149
        %vm2152 = vcmask 654851
        %2153 = vst.msk [vmem:[#allocation3 + $0x40] sm:$0xf8] %vm2152, %v2150
        %vm2154 = vcmask 648704
        %2155 = vst.msk [vmem:[#allocation3 + $0x50] sm:$0x3] %vm2154, %v2150
        %v2156 = vld [vmem:[#allocation2 + $0xd8] sm:$0x7f]
        %v2158 = vrot.slane %v2156, 6
        %2159 = vrot.lane.b32.xlu0 %v2158, 64
        %v2160 = vpop.permute.xlu0 %2159
        %vm2162 = vcmask 654850
        %2163 = vst.msk [vmem:[#allocation3 + $0x50] sm:$0xfc] %vm2162, %v2160
        %vm2164 = vcmask 647680
        %2165 = vst.msk [vmem:[#allocation3 + $0x60] sm:$0x1] %vm2164, %v2160
        %v2166 = vld [vmem:[#allocation2 + $0x11] sm:$0x7f]
        %2168 = vrot.lane.b32.xlu0 %v2166, 80
        %v2169 = vpop.permute.xlu0 %2168
        %vm2171 = vcmask 785024
        %2172 = vst.msk [vmem:[#allocation3] sm:$0x7f] %vm2171, %v2169
        %v2173 = vld [vmem:[#allocation2 + $0x31] sm:$0x7f]
        %v2175 = vrot.slane %v2173, 1
        %2176 = vrot.lane.b32.xlu0 %v2175, 80
        %v2177 = vpop.permute.xlu0 %2176
        %vm2179 = vcmask 786055
        %2180 = vst.msk [vmem:[#allocation3] sm:$0x80] %vm2179, %v2177
        %vm2181 = vcmask 784000
        %2182 = vst.msk [vmem:[#allocation3 + $0x10] sm:$0x3f] %vm2181, %v2177
        %v2183 = vld [vmem:[#allocation2 + $0x51] sm:$0x7f]
        %v2185 = vrot.slane %v2183, 2
        %2186 = vrot.lane.b32.xlu0 %v2185, 80
        %v2187 = vpop.permute.xlu0 %2186
        %vm2189 = vcmask 786054
        %2190 = vst.msk [vmem:[#allocation3 + $0x10] sm:$0xc0] %vm2189, %v2187
        %vm2191 = vcmask 782976
        %2192 = vst.msk [vmem:[#allocation3 + $0x20] sm:$0x1f] %vm2191, %v2187
        %v2193 = vld [vmem:[#allocation2 + $0x71] sm:$0x7f]
        %v2195 = vrot.slane %v2193, 3
        %2196 = vrot.lane.b32.xlu0 %v2195, 80
        %v2197 = vpop.permute.xlu0 %2196
        %vm2199 = vcmask 786053
        %2200 = vst.msk [vmem:[#allocation3 + $0x20] sm:$0xe0] %vm2199, %v2197
        %vm2201 = vcmask 781952
        %2202 = vst.msk [vmem:[#allocation3 + $0x30] sm:$0xf] %vm2201, %v2197
        %v2203 = vld [vmem:[#allocation2 + $0x91] sm:$0x7f]
        %v2205 = vrot.slane %v2203, 4
        %2206 = vrot.lane.b32.xlu0 %v2205, 80
        %v2207 = vpop.permute.xlu0 %2206
        %vm2209 = vcmask 786052
        %2210 = vst.msk [vmem:[#allocation3 + $0x30] sm:$0xf0] %vm2209, %v2207
        %vm2211 = vcmask 780928
        %2212 = vst.msk [vmem:[#allocation3 + $0x40] sm:$0x7] %vm2211, %v2207
        %v2213 = vld [vmem:[#allocation2 + $0xb1] sm:$0x7f]
        %v2215 = vrot.slane %v2213, 5
        %2216 = vrot.lane.b32.xlu0 %v2215, 80
        %v2217 = vpop.permute.xlu0 %2216
        %vm2219 = vcmask 786051
        %2220 = vst.msk [vmem:[#allocation3 + $0x40] sm:$0xf8] %vm2219, %v2217
        %vm2221 = vcmask 779904
        %2222 = vst.msk [vmem:[#allocation3 + $0x50] sm:$0x3] %vm2221, %v2217
        %v2223 = vld [vmem:[#allocation2 + $0xd1] sm:$0x7f]
        %v2225 = vrot.slane %v2223, 6
        %2226 = vrot.lane.b32.xlu0 %v2225, 80
        %v2227 = vpop.permute.xlu0 %2226
        %vm2229 = vcmask 786050
        %2230 = vst.msk [vmem:[#allocation3 + $0x50] sm:$0xfc] %vm2229, %v2227
        %vm2231 = vcmask 778880
        %2232 = vst.msk [vmem:[#allocation3 + $0x60] sm:$0x1] %vm2231, %v2227
        %v2233 = vld [vmem:[#allocation2 + $0x20] sm:$0x7f]
        %2235 = vrot.lane.b32.xlu0 %v2233, 96
        %v2236 = vpop.permute.xlu0 %2235
        %vm2238 = vcmask 916224
        %2239 = vst.msk [vmem:[#allocation3] sm:$0x7f] %vm2238, %v2236
        %v2240 = vld [vmem:[#allocation2 + $0x40] sm:$0x7f]
        %v2242 = vrot.slane %v2240, 1
        %2243 = vrot.lane.b32.xlu0 %v2242, 96
        %v2244 = vpop.permute.xlu0 %2243
        %vm2246 = vcmask 917255
        %2247 = vst.msk [vmem:[#allocation3] sm:$0x80] %vm2246, %v2244
        %vm2248 = vcmask 915200
        %2249 = vst.msk [vmem:[#allocation3 + $0x10] sm:$0x3f] %vm2248, %v2244
        %v2250 = vld [vmem:[#allocation2 + $0x60] sm:$0x7f]
        %v2252 = vrot.slane %v2250, 2
        %2253 = vrot.lane.b32.xlu0 %v2252, 96
        %v2254 = vpop.permute.xlu0 %2253
        %vm2256 = vcmask 917254
        %2257 = vst.msk [vmem:[#allocation3 + $0x10] sm:$0xc0] %vm2256, %v2254
        %vm2258 = vcmask 914176
        %2259 = vst.msk [vmem:[#allocation3 + $0x20] sm:$0x1f] %vm2258, %v2254
        %v2260 = vld [vmem:[#allocation2 + $0x80] sm:$0x7f]
        %v2262 = vrot.slane %v2260, 3
        %2263 = vrot.lane.b32.xlu0 %v2262, 96
        %v2264 = vpop.permute.xlu0 %2263
        %vm2266 = vcmask 917253
        %2267 = vst.msk [vmem:[#allocation3 + $0x20] sm:$0xe0] %vm2266, %v2264
        %vm2268 = vcmask 913152
        %2269 = vst.msk [vmem:[#allocation3 + $0x30] sm:$0xf] %vm2268, %v2264
        %v2270 = vld [vmem:[#allocation2 + $0xa0] sm:$0x7f]
        %v2272 = vrot.slane %v2270, 4
        %2273 = vrot.lane.b32.xlu0 %v2272, 96
        %v2274 = vpop.permute.xlu0 %2273
        %vm2276 = vcmask 917252
        %2277 = vst.msk [vmem:[#allocation3 + $0x30] sm:$0xf0] %vm2276, %v2274
        %vm2278 = vcmask 912128
        %2279 = vst.msk [vmem:[#allocation3 + $0x40] sm:$0x7] %vm2278, %v2274
        %v2280 = vld [vmem:[#allocation2 + $0xc0] sm:$0x7f]
        %v2282 = vrot.slane %v2280, 5
        %2283 = vrot.lane.b32.xlu0 %v2282, 96
        %v2284 = vpop.permute.xlu0 %2283
        %vm2286 = vcmask 917251
        %2287 = vst.msk [vmem:[#allocation3 + $0x40] sm:$0xf8] %vm2286, %v2284
        %vm2288 = vcmask 911104
        %2289 = vst.msk [vmem:[#allocation3 + $0x50] sm:$0x3] %vm2288, %v2284
        %v2290 = vld [vmem:[#allocation2 + $0xe0] sm:$0x7f]
        %v2292 = vrot.slane %v2290, 6
        %2293 = vrot.lane.b32.xlu0 %v2292, 96
        %v2294 = vpop.permute.xlu0 %2293
        %vm2296 = vcmask 917250
        %2297 = vst.msk [vmem:[#allocation3 + $0x50] sm:$0xfc] %vm2296, %v2294
        %vm2298 = vcmask 910080
        %2299 = vst.msk [vmem:[#allocation3 + $0x60] sm:$0x1] %vm2298, %v2294
        %v2300 = vld [vmem:[#allocation2 + $0x28] sm:$0x7f]
        %2302 = vrot.lane.b32.xlu0 %v2300, 112
        %v2303 = vpop.permute.xlu0 %2302
        %vm2305 = vcmask 1047424
        %2306 = vst.msk [vmem:[#allocation3] sm:$0x7f] %vm2305, %v2303
        %v2307 = vld [vmem:[#allocation2 + $0x48] sm:$0x7f]
        %v2309 = vrot.slane %v2307, 1
        %2310 = vrot.lane.b32.xlu0 %v2309, 112
        %v2311 = vpop.permute.xlu0 %2310
        %vm2313 = vcmask 1048455
        %2314 = vst.msk [vmem:[#allocation3] sm:$0x80] %vm2313, %v2311
        %vm2315 = vcmask 1046400
        %2316 = vst.msk [vmem:[#allocation3 + $0x10] sm:$0x3f] %vm2315, %v2311
        %v2317 = vld [vmem:[#allocation2 + $0x68] sm:$0x7f]
        %v2319 = vrot.slane %v2317, 2
        %2320 = vrot.lane.b32.xlu0 %v2319, 112
        %v2321 = vpop.permute.xlu0 %2320
        %vm2323 = vcmask 1048454
        %2324 = vst.msk [vmem:[#allocation3 + $0x10] sm:$0xc0] %vm2323, %v2321
        %vm2325 = vcmask 1045376
        %2326 = vst.msk [vmem:[#allocation3 + $0x20] sm:$0x1f] %vm2325, %v2321
        %v2327 = vld [vmem:[#allocation2 + $0x88] sm:$0x7f]
        %v2329 = vrot.slane %v2327, 3
        %2330 = vrot.lane.b32.xlu0 %v2329, 112
        %v2331 = vpop.permute.xlu0 %2330
        %vm2333 = vcmask 1048453
        %2334 = vst.msk [vmem:[#allocation3 + $0x20] sm:$0xe0] %vm2333, %v2331
        %vm2335 = vcmask 1044352
        %2336 = vst.msk [vmem:[#allocation3 + $0x30] sm:$0xf] %vm2335, %v2331
        %v2337 = vld [vmem:[#allocation2 + $0xa8] sm:$0x7f]
        %v2339 = vrot.slane %v2337, 4
        %2340 = vrot.lane.b32.xlu0 %v2339, 112
        %v2341 = vpop.permute.xlu0 %2340
        %vm2343 = vcmask 1048452
        %2344 = vst.msk [vmem:[#allocation3 + $0x30] sm:$0xf0] %vm2343, %v2341
        %vm2345 = vcmask 1043328
        %2346 = vst.msk [vmem:[#allocation3 + $0x40] sm:$0x7] %vm2345, %v2341
        %v2347 = vld [vmem:[#allocation2 + $0xc8] sm:$0x7f]
        %v2349 = vrot.slane %v2347, 5
        %2350 = vrot.lane.b32.xlu0 %v2349, 112
        %v2351 = vpop.permute.xlu0 %2350
        %vm2353 = vcmask 1048451
        %2354 = vst.msk [vmem:[#allocation3 + $0x40] sm:$0xf8] %vm2353, %v2351
        %vm2355 = vcmask 1042304
        %2356 = vst.msk [vmem:[#allocation3 + $0x50] sm:$0x3] %vm2355, %v2351
        %v2357 = vld [vmem:[#allocation2 + $0xe8] sm:$0x7f]
        %v2359 = vrot.slane %v2357, 6
        %2360 = vrot.lane.b32.xlu0 %v2359, 112
        %v2361 = vpop.permute.xlu0 %2360
        %vm2363 = vcmask 1048450
        %2364 = vst.msk [vmem:[#allocation3 + $0x50] sm:$0xfc] %vm2363, %v2361
        %vm2365 = vcmask 1041280
        %2366 = vst.msk [vmem:[#allocation3 + $0x60] sm:$0x1] %vm2365, %v2361
        %v2367 = vld [vmem:[#allocation2 + $0x21] sm:$0x7f]
        %2368 = vst.msk [vmem:[#allocation3 + $0x8] sm:$0x7f] %vm1854, %v2367
        %v2369 = vld [vmem:[#allocation2 + $0x41] sm:$0x7f]
        %v2371 = vrot.slane %v2369, 1
        %2373 = vst.msk [vmem:[#allocation3 + $0x8] sm:$0x80] %vm1860, %v2371
        %2374 = vst.msk [vmem:[#allocation3 + $0x18] sm:$0x3f] %vm1813, %v2371
        %v2375 = vld [vmem:[#allocation2 + $0x61] sm:$0x7f]
        %v2377 = vrot.slane %v2375, 2
        %2379 = vst.msk [vmem:[#allocation3 + $0x18] sm:$0xc0] %vm1815, %v2377
        %2380 = vst.msk [vmem:[#allocation3 + $0x28] sm:$0x1f] %vm1868, %v2377
        %v2381 = vld [vmem:[#allocation2 + $0x81] sm:$0x7f]
        %v2383 = vrot.slane %v2381, 3
        %2385 = vst.msk [vmem:[#allocation3 + $0x28] sm:$0xe0] %vm1874, %v2383
        %2386 = vst.msk [vmem:[#allocation3 + $0x38] sm:$0xf] %vm1818, %v2383
        %v2387 = vld [vmem:[#allocation2 + $0xa1] sm:$0x7f]
        %v2389 = vrot.slane %v2387, 4
        %2391 = vst.msk [vmem:[#allocation3 + $0x38] sm:$0xf0] %vm1820, %v2389
        %2392 = vst.msk [vmem:[#allocation3 + $0x48] sm:$0x7] %vm1882, %v2389
        %v2393 = vld [vmem:[#allocation2 + $0xc1] sm:$0x7f]
        %v2395 = vrot.slane %v2393, 5
        %2397 = vst.msk [vmem:[#allocation3 + $0x48] sm:$0xf8] %vm1888, %v2395
        %2398 = vst.msk [vmem:[#allocation3 + $0x58] sm:$0x3] %vm1823, %v2395
        %v2399 = vld [vmem:[#allocation2 + $0xe1] sm:$0x7f]
        %v2401 = vrot.slane %v2399, 6
        %2403 = vst.msk [vmem:[#allocation3 + $0x58] sm:$0xfc] %vm1825, %v2401
        %2404 = vst.msk [vmem:[#allocation3 + $0x68] sm:$0x1] %vm1896, %v2401
        %v2405 = vld [vmem:[#allocation3] sm:$0xff]
        %v2406 = vld [vmem:[#allocation3 + $0x8] sm:$0xff]
        %v2407 = vld [vmem:[#allocation3 + $0x10] sm:$0xff]
        %v2408 = vld [vmem:[#allocation3 + $0x18] sm:$0xff]
        %v2409 = vld [vmem:[#allocation3 + $0x20] sm:$0xff]
        %v2410 = vld [vmem:[#allocation3 + $0x28] sm:$0xff]
        %v2411 = vld [vmem:[#allocation3 + $0x30] sm:$0xff]
        %v2412 = vld [vmem:[#allocation3 + $0x38] sm:$0xff]
        %v2413 = vld [vmem:[#allocation3 + $0x40] sm:$0xff]
        %v2414 = vld [vmem:[#allocation3 + $0x48] sm:$0xff]
        %v2415 = vld [vmem:[#allocation3 + $0x50] sm:$0xff]
        %v2416 = vld [vmem:[#allocation3 + $0x58] sm:$0xff]
        %v2417 = vld [vmem:[#allocation3 + $0x60] sm:$0x1]
        %v2418 = vld [vmem:[#allocation3 + $0x68] sm:$0x1]
        %v2419 = vpack.c.bf16 %v2407, %v2405
        %v2420 = vpack.c.bf16 %v2408, %v2406
        %v2421 = vpack.c.bf16 %v2411, %v2409
        %v2422 = vpack.c.bf16 %v2412, %v2410
        %v2423 = vpack.c.bf16 %v2415, %v2413
        %v2424 = vpack.c.bf16 %v2416, %v2414
        %v2425 = vpack.c.bf16 %v2417, %v2417
        %v2426 = vpack.c.bf16 %v2418, %v2418
        %v2427 = vld [vmem:[%s3] sm:$0xf]
        %v2428 = vld [vmem:[%s3 + $0x4] sm:$0xf]
        %v2429 = vld [vmem:[%s3 + $0x8] sm:$0xf]
        %v2430 = vld [vmem:[%s3 + $0xc] sm:$0xf]
        %v2431 = vld [vmem:[%s3 + $0x10] sm:$0xf]
        %v2432 = vld [vmem:[%s3 + $0x14] sm:$0xf]
        %v2433 = vld [vmem:[%s3 + $0x18] sm:$0xf]
        %v2434 = vld [vmem:[%s3 + $0x1c] sm:$0xf]
        %v2435 = vld [vmem:[%s3 + $0x20] sm:$0xf]
        %v2436 = vld [vmem:[%s3 + $0x24] sm:$0xf]
        %v2437 = vld [vmem:[%s3 + $0x28] sm:$0xf]
        %v2438 = vld [vmem:[%s3 + $0x2c] sm:$0xf]
        %v2439 = vld [vmem:[%s3 + $0x30] sm:$0xf]
        %v2440 = vld [vmem:[%s3 + $0x34] sm:$0xf]
        %v2441 = vld [vmem:[%s3 + $0x38] sm:$0xf]
        %v2442 = vld [vmem:[%s3 + $0x3c] sm:$0xf]
        %v2443 = vld [vmem:[%s3 + $0x40] sm:$0xf]
        %v2444 = vld [vmem:[%s3 + $0x44] sm:$0xf]
        %v2445 = vld [vmem:[%s4] sm:$0x1]
        %v2447 = vlaneseq
        %v2448 = vshrl.u32 %v2447, 7
        %v2449 = vsub.s32 0, %v2448
        %v2450 = vrot.slane %v2445, %v2449
        %v2470 = vunpack.c.l.b16 %v2427
        %v2471 = vunpack.c.l.b16 %v2428
        %v2472 = vunpack.c.l.b16 %v2429
        %v2473 = vunpack.c.l.b16 %v2430
        %v2474 = vunpack.c.l.b16 %v2431
        %v2475 = vunpack.c.l.b16 %v2432
        %v2476 = vunpack.c.l.b16 %v2433
        %v2477 = vunpack.c.l.b16 %v2434
        %v2478 = vunpack.c.l.b16 %v2435
        %v2479 = vunpack.c.l.b16 %v2436
        %v2480 = vunpack.c.l.b16 %v2437
        %v2481 = vunpack.c.l.b16 %v2438
        %v2482 = vunpack.c.l.b16 %v2439
        %v2483 = vunpack.c.l.b16 %v2440
        %v2484 = vunpack.c.l.b16 %v2441
        %v2485 = vunpack.c.l.b16 %v2442
        %v2486 = vunpack.c.l.b16 %v2443
        %v2487 = vunpack.c.l.b16 %v2444
        %v2488 = vpack.c.b16 %v2471, %v2470
        %v2489 = vpack.c.b16 %v2473, %v2472
        %v2490 = vpack.c.b16 %v2475, %v2474
        %v2491 = vpack.c.b16 %v2477, %v2476
        %v2492 = vpack.c.b16 %v2479, %v2478
        %v2493 = vpack.c.b16 %v2481, %v2480
        %v2494 = vpack.c.b16 %v2483, %v2482
        %v2495 = vpack.c.b16 %v2485, %v2484
        %v2496 = vpack.c.b16 %v2487, %v2486
        %v2507 = vsel %vm1779, %v2420, 0
        %v2510 = vsel %vm1779, %v2422, 0
        %v2513 = vsel %vm1779, %v2424, 0
        %v2516 = vsel %vm1779, %v2426, 0
        %2518 = vmatprep.subr.bf16.mxu0 0
        %2519 = vmatpush1.bf16.msra.mxu0 %v2488
        %2520 = vmatprep.subr.bf16.mxu0 0
        %2521 = vmatpush1.bf16.msra.mxu0 %v2489
        %2522 = vmatprep.subr.bf16.mxu0 0
        %2523 = vmatpush1.bf16.msra.mxu0 %v2490
        %2524 = vmatprep.subr.bf16.mxu0 0
        %2525 = vmatpush1.bf16.msra.mxu0 %v2491
        %2526 = vmatprep.subr.bf16.mxu0 0
        %2527 = vmatpush1.bf16.msra.mxu0 %v2492
        %2528 = vmatprep.subr.bf16.mxu0 0
        %2529 = vmatpush1.bf16.msra.mxu0 %v2493
        %2530 = vmatprep.subr.bf16.mxu0 0
        %2531 = vmatpush1.bf16.msra.mxu0 %v2494
        %2532 = vmatprep.subr.bf16.mxu0 0
        %2533 = vmatpush1.bf16.msra.mxu0 %v2495
        %2534 = vmatprep.subr.bf16.mxu0 0
        %2535 = vmatpush1.bf16.msra.mxu0 %v2496
        %2536 = vmatprep.subr.bf16.mxu0 0
        %2537 = vmatpush1.bf16.msra.mxu0 0
        %2538 = vmatprep.subr.bf16.mxu0 0
        %2539 = vmatpush1.bf16.msra.mxu0 0
        %2540 = vmatprep.subr.bf16.mxu0 0
        %2541 = vmatpush1.bf16.msra.mxu0 0
        %2542 = vmatprep.subr.bf16.mxu0 0
        %2543 = vmatpush1.bf16.msra.mxu0 0
        %2544 = vmatprep.subr.bf16.mxu0 0
        %2545 = vmatpush1.bf16.msra.mxu0 0
        %2546 = vmatprep.subr.bf16.mxu0 0
        %2547 = vmatpush1.bf16.msra.mxu0 0
        %2548 = vmatprep.subr.bf16.mxu0 0
        %2549 = vmatpush1.bf16.msra.mxu0 0
        %2550 = vmatprep.mubr.bf16.mxu0 %v2507
        %2551 = vmatmul.mubr.bf16.gmra.mrb[0].mxu0 %v2419
        %v2552 = vpop.f32.mrb[0].mxu0
        %v2553 = vadd.f32 %v2450, %v2552
        %v2554 = vpop.f32.mrb[0].mxu0
        %v2555 = vpop.f32.mrb[0].mxu0
        %v2556 = vadd.f32 %v2450, %v2555
        %v2557 = vpop.f32.mrb[0].mxu0
        %2558 = vmatprep.mubr.bf16.mxu0 %v2510
        %2559 = vmatmul.mubr.bf16.gmra.mrb[0].mxu0 %v2421
        %v2560 = vpop.f32.mrb[0].mxu0
        %v2561 = vadd.f32 %v2450, %v2560
        %v2562 = vpop.f32.mrb[0].mxu0
        %v2563 = vpop.f32.mrb[0].mxu0
        %v2564 = vadd.f32 %v2450, %v2563
        %v2565 = vpop.f32.mrb[0].mxu0
        %2566 = vmatprep.mubr.bf16.mxu0 %v2513
        %2567 = vmatmul.mubr.bf16.gmra.mrb[0].mxu0 %v2423
        %v2568 = vpop.f32.mrb[0].mxu0
        %v2569 = vadd.f32 %v2450, %v2568
        %v2570 = vpop.f32.mrb[0].mxu0
        %v2571 = vpop.f32.mrb[0].mxu0
        %v2572 = vadd.f32 %v2450, %v2571
        %v2573 = vpop.f32.mrb[0].mxu0
        %2574 = vmatprep.mubr.bf16.mxu0 %v2516
        %2575 = vmatmul.mubr.bf16.gmra.mrb[0].mxu0 %v2425
        %v2576 = vpop.f32.mrb[0].mxu0
        %v2577 = vadd.f32 %v2450, %v2576
        %v2578 = vpop.f32.mrb[0].mxu0
        %v2579 = vpop.f32.mrb[0].mxu0
        %v2580 = vpop.f32.mrb[0].mxu0
        %2581 = vdwg.mxu0
        %v2582 = vmax.f32 %v2553, 0.0
        %v2583 = vmax.f32 %v2556, 0.0
        %v2584 = vmax.f32 %v2561, 0.0
        %v2585 = vmax.f32 %v2564, 0.0
        %v2586 = vmax.f32 %v2569, 0.0
        %v2587 = vmax.f32 %v2572, 0.0
        %v2588 = vmax.f32 %v2577, 0.0
        %v2589 = vlaneseq
        %vm2590 = vcmp.ge.s32.totalorder %v2589, 0
        %vm2591 = vcmp.lt.s32.totalorder %v2589, 32
        %vm2592 = vmand %vm2590, %vm2591
        %2593 = vst.msk [vmem:[#allocation4] sm:$0x1] %vm2592, %v2582
        %v2596 = vunpack.c.l.s4 1966171168
        %v2597 = vunpack.c.0.s8 %v2596
        %v2598 = vlaneseq
        %v2599 = vshrl.u32 %v2598, 7
        %v2600 = vsub.s32 %v2597, %v2599
        %v2601 = vrot.slane %v2582, %v2600
        %v2602 = vcombine.high %v2601, %v2601
        %v2604 = vunpack.c.l.s4 1966171168
        %v2605 = vunpack.c.0.s8 %v2604
        %v2606 = vlaneseq
        %v2607 = vshrl.u32 %v2606, 7
        %v2608 = vsub.s32 %v2605, %v2607
        %v2609 = vrot.slane %v2601, %v2608
        %v2611 = vunpack.c.l.s4 1966171168
        %v2612 = vunpack.c.0.s8 %v2611
        %v2613 = vlaneseq
        %v2614 = vshrl.u32 %v2613, 7
        %v2615 = vsub.s32 %v2612, %v2614
        %v2616 = vrot.slane %v2602, %v2615
        %2617 = vrot.lane.b32.xlu0 %v2616, 32
        %v2618 = vpop.permute.xlu0 %2617
        %vm2620 = vcmp.ge.s32.totalorder %v2589, 32
        %vm2621 = vcmp.lt.s32.totalorder %v2589, 64
        %vm2622 = vmand %vm2620, %vm2621
        %2623 = vst.msk [vmem:[#allocation4] sm:$0x1] %vm2622, %v2618
        %v2624 = vcombine.high %v2609, %v2609
        %2625 = vrot.lane.b32.xlu0 %v2624, 64
        %v2626 = vpop.permute.xlu0 %2625
        %vm2628 = vcmp.ge.s32.totalorder %v2589, 64
        %vm2629 = vcmp.lt.s32.totalorder %v2589, 96
        %vm2630 = vmand %vm2628, %vm2629
        %2631 = vst.msk [vmem:[#allocation4] sm:$0x1] %vm2630, %v2626
        %v2632 = vcombine.high %v2616, %v2616
        %2633 = vrot.lane.b32.xlu0 %v2632, 96
        %v2634 = vpop.permute.xlu0 %2633
        %vm2636 = vcmp.ge.s32.totalorder %v2589, 96
        %vm2637 = vcmp.lt.s32.totalorder %v2589, 128
        %vm2638 = vmand %vm2636, %vm2637
        %2639 = vst.msk [vmem:[#allocation4] sm:$0x1] %vm2638, %v2634
        %v2640 = vcombine.high %v2582, %v2582
        %v2642 = vunpack.c.l.s4 1966171168
        %v2643 = vunpack.c.0.s8 %v2642
        %v2644 = vlaneseq
        %v2645 = vshrl.u32 %v2644, 7
        %v2646 = vsub.s32 %v2643, %v2645
        %v2647 = vrot.slane %v2640, %v2646
        %v2649 = vunpack.c.l.s4 1966171168
        %v2650 = vunpack.c.0.s8 %v2649
        %v2651 = vlaneseq
        %v2652 = vshrl.u32 %v2651, 7
        %v2653 = vsub.s32 %v2650, %v2652
        %v2654 = vrot.slane %v2647, %v2653
        %2656 = vst.msk [vmem:[#allocation4 + $0x1] sm:$0x1] %vm2592, %v2654
        %v2657 = vcombine.high %v2647, %v2647
        %v2659 = vunpack.c.l.s4 1966171168
        %v2660 = vunpack.c.0.s8 %v2659
        %v2661 = vlaneseq
        %v2662 = vshrl.u32 %v2661, 7
        %v2663 = vsub.s32 %v2660, %v2662
        %v2664 = vrot.slane %v2657, %v2663
        %2665 = vrot.lane.b32.xlu0 %v2664, 32
        %v2666 = vpop.permute.xlu0 %2665
        %2668 = vst.msk [vmem:[#allocation4 + $0x1] sm:$0x1] %vm2622, %v2666
        %v2669 = vcombine.high %v2654, %v2654
        %2670 = vrot.lane.b32.xlu0 %v2669, 64
        %v2671 = vpop.permute.xlu0 %2670
        %2673 = vst.msk [vmem:[#allocation4 + $0x1] sm:$0x1] %vm2630, %v2671
        %v2674 = vcombine.high %v2664, %v2664
        %2675 = vrot.lane.b32.xlu0 %v2674, 96
        %v2676 = vpop.permute.xlu0 %2675
        %2678 = vst.msk [vmem:[#allocation4 + $0x1] sm:$0x1] %vm2638, %v2676
        %2679 = vst.msk [vmem:[#allocation4 + $0x2] sm:$0x1] %vm2592, %v2583
        %v2682 = vunpack.c.l.s4 1966171168
        %v2683 = vunpack.c.0.s8 %v2682
        %v2684 = vlaneseq
        %v2685 = vshrl.u32 %v2684, 7
        %v2686 = vsub.s32 %v2683, %v2685
        %v2687 = vrot.slane %v2583, %v2686
        %v2688 = vcombine.high %v2687, %v2687
        %v2690 = vunpack.c.l.s4 1966171168
        %v2691 = vunpack.c.0.s8 %v2690
        %v2692 = vlaneseq
        %v2693 = vshrl.u32 %v2692, 7
        %v2694 = vsub.s32 %v2691, %v2693
        %v2695 = vrot.slane %v2687, %v2694
        %v2697 = vunpack.c.l.s4 1966171168
        %v2698 = vunpack.c.0.s8 %v2697
        %v2699 = vlaneseq
        %v2700 = vshrl.u32 %v2699, 7
        %v2701 = vsub.s32 %v2698, %v2700
        %v2702 = vrot.slane %v2688, %v2701
        %2703 = vrot.lane.b32.xlu0 %v2702, 32
        %v2704 = vpop.permute.xlu0 %2703
        %2706 = vst.msk [vmem:[#allocation4 + $0x2] sm:$0x1] %vm2622, %v2704
        %v2707 = vcombine.high %v2695, %v2695
        %2708 = vrot.lane.b32.xlu0 %v2707, 64
        %v2709 = vpop.permute.xlu0 %2708
        %2711 = vst.msk [vmem:[#allocation4 + $0x2] sm:$0x1] %vm2630, %v2709
        %v2712 = vcombine.high %v2702, %v2702
        %2713 = vrot.lane.b32.xlu0 %v2712, 96
        %v2714 = vpop.permute.xlu0 %2713
        %2716 = vst.msk [vmem:[#allocation4 + $0x2] sm:$0x1] %vm2638, %v2714
        %v2717 = vcombine.high %v2583, %v2583
        %v2719 = vunpack.c.l.s4 1966171168
        %v2720 = vunpack.c.0.s8 %v2719
        %v2721 = vlaneseq
        %v2722 = vshrl.u32 %v2721, 7
        %v2723 = vsub.s32 %v2720, %v2722
        %v2724 = vrot.slane %v2717, %v2723
        %v2726 = vunpack.c.l.s4 1966171168
        %v2727 = vunpack.c.0.s8 %v2726
        %v2728 = vlaneseq
        %v2729 = vshrl.u32 %v2728, 7
        %v2730 = vsub.s32 %v2727, %v2729
        %v2731 = vrot.slane %v2724, %v2730
        %2733 = vst.msk [vmem:[#allocation4 + $0x3] sm:$0x1] %vm2592, %v2731
        %v2734 = vcombine.high %v2724, %v2724
        %v2736 = vunpack.c.l.s4 1966171168
        %v2737 = vunpack.c.0.s8 %v2736
        %v2738 = vlaneseq
        %v2739 = vshrl.u32 %v2738, 7
        %v2740 = vsub.s32 %v2737, %v2739
        %v2741 = vrot.slane %v2734, %v2740
        %2742 = vrot.lane.b32.xlu0 %v2741, 32
        %v2743 = vpop.permute.xlu0 %2742
        %2745 = vst.msk [vmem:[#allocation4 + $0x3] sm:$0x1] %vm2622, %v2743
        %v2746 = vcombine.high %v2731, %v2731
        %2747 = vrot.lane.b32.xlu0 %v2746, 64
        %v2748 = vpop.permute.xlu0 %2747
        %2750 = vst.msk [vmem:[#allocation4 + $0x3] sm:$0x1] %vm2630, %v2748
        %v2751 = vcombine.high %v2741, %v2741
        %2752 = vrot.lane.b32.xlu0 %v2751, 96
        %v2753 = vpop.permute.xlu0 %2752
        %2755 = vst.msk [vmem:[#allocation4 + $0x3] sm:$0x1] %vm2638, %v2753
        %2756 = vst.msk [vmem:[#allocation4 + $0x4] sm:$0x1] %vm2592, %v2584
        %v2759 = vunpack.c.l.s4 1966171168
        %v2760 = vunpack.c.0.s8 %v2759
        %v2761 = vlaneseq
        %v2762 = vshrl.u32 %v2761, 7
        %v2763 = vsub.s32 %v2760, %v2762
        %v2764 = vrot.slane %v2584, %v2763
        %v2765 = vcombine.high %v2764, %v2764
        %v2767 = vunpack.c.l.s4 1966171168
        %v2768 = vunpack.c.0.s8 %v2767
        %v2769 = vlaneseq
        %v2770 = vshrl.u32 %v2769, 7
        %v2771 = vsub.s32 %v2768, %v2770
        %v2772 = vrot.slane %v2764, %v2771
        %v2774 = vunpack.c.l.s4 1966171168
        %v2775 = vunpack.c.0.s8 %v2774
        %v2776 = vlaneseq
        %v2777 = vshrl.u32 %v2776, 7
        %v2778 = vsub.s32 %v2775, %v2777
        %v2779 = vrot.slane %v2765, %v2778
        %2780 = vrot.lane.b32.xlu0 %v2779, 32
        %v2781 = vpop.permute.xlu0 %2780
        %2783 = vst.msk [vmem:[#allocation4 + $0x4] sm:$0x1] %vm2622, %v2781
        %v2784 = vcombine.high %v2772, %v2772
        %2785 = vrot.lane.b32.xlu0 %v2784, 64
        %v2786 = vpop.permute.xlu0 %2785
        %2788 = vst.msk [vmem:[#allocation4 + $0x4] sm:$0x1] %vm2630, %v2786
        %v2789 = vcombine.high %v2779, %v2779
        %2790 = vrot.lane.b32.xlu0 %v2789, 96
        %v2791 = vpop.permute.xlu0 %2790
        %2793 = vst.msk [vmem:[#allocation4 + $0x4] sm:$0x1] %vm2638, %v2791
        %v2794 = vcombine.high %v2584, %v2584
        %v2796 = vunpack.c.l.s4 1966171168
        %v2797 = vunpack.c.0.s8 %v2796
        %v2798 = vlaneseq
        %v2799 = vshrl.u32 %v2798, 7
        %v2800 = vsub.s32 %v2797, %v2799
        %v2801 = vrot.slane %v2794, %v2800
        %v2803 = vunpack.c.l.s4 1966171168
        %v2804 = vunpack.c.0.s8 %v2803
        %v2805 = vlaneseq
        %v2806 = vshrl.u32 %v2805, 7
        %v2807 = vsub.s32 %v2804, %v2806
        %v2808 = vrot.slane %v2801, %v2807
        %2810 = vst.msk [vmem:[#allocation4 + $0x5] sm:$0x1] %vm2592, %v2808
        %v2811 = vcombine.high %v2801, %v2801
        %v2813 = vunpack.c.l.s4 1966171168
        %v2814 = vunpack.c.0.s8 %v2813
        %v2815 = vlaneseq
        %v2816 = vshrl.u32 %v2815, 7
        %v2817 = vsub.s32 %v2814, %v2816
        %v2818 = vrot.slane %v2811, %v2817
        %2819 = vrot.lane.b32.xlu0 %v2818, 32
        %v2820 = vpop.permute.xlu0 %2819
        %2822 = vst.msk [vmem:[#allocation4 + $0x5] sm:$0x1] %vm2622, %v2820
        %v2823 = vcombine.high %v2808, %v2808
        %2824 = vrot.lane.b32.xlu0 %v2823, 64
        %v2825 = vpop.permute.xlu0 %2824
        %2827 = vst.msk [vmem:[#allocation4 + $0x5] sm:$0x1] %vm2630, %v2825
        %v2828 = vcombine.high %v2818, %v2818
        %2829 = vrot.lane.b32.xlu0 %v2828, 96
        %v2830 = vpop.permute.xlu0 %2829
        %2832 = vst.msk [vmem:[#allocation4 + $0x5] sm:$0x1] %vm2638, %v2830
        %2833 = vst.msk [vmem:[#allocation4 + $0x6] sm:$0x1] %vm2592, %v2585
        %v2836 = vunpack.c.l.s4 1966171168
        %v2837 = vunpack.c.0.s8 %v2836
        %v2838 = vlaneseq
        %v2839 = vshrl.u32 %v2838, 7
        %v2840 = vsub.s32 %v2837, %v2839
        %v2841 = vrot.slane %v2585, %v2840
        %v2842 = vcombine.high %v2841, %v2841
        %v2844 = vunpack.c.l.s4 1966171168
        %v2845 = vunpack.c.0.s8 %v2844
        %v2846 = vlaneseq
        %v2847 = vshrl.u32 %v2846, 7
        %v2848 = vsub.s32 %v2845, %v2847
        %v2849 = vrot.slane %v2841, %v2848
        %v2851 = vunpack.c.l.s4 1966171168
        %v2852 = vunpack.c.0.s8 %v2851
        %v2853 = vlaneseq
        %v2854 = vshrl.u32 %v2853, 7
        %v2855 = vsub.s32 %v2852, %v2854
        %v2856 = vrot.slane %v2842, %v2855
        %2857 = vrot.lane.b32.xlu0 %v2856, 32
        %v2858 = vpop.permute.xlu0 %2857
        %2860 = vst.msk [vmem:[#allocation4 + $0x6] sm:$0x1] %vm2622, %v2858
        %v2861 = vcombine.high %v2849, %v2849
        %2862 = vrot.lane.b32.xlu0 %v2861, 64
        %v2863 = vpop.permute.xlu0 %2862
        %2865 = vst.msk [vmem:[#allocation4 + $0x6] sm:$0x1] %vm2630, %v2863
        %v2866 = vcombine.high %v2856, %v2856
        %2867 = vrot.lane.b32.xlu0 %v2866, 96
        %v2868 = vpop.permute.xlu0 %2867
        %2870 = vst.msk [vmem:[#allocation4 + $0x6] sm:$0x1] %vm2638, %v2868
        %v2871 = vcombine.high %v2585, %v2585
        %v2873 = vunpack.c.l.s4 1966171168
        %v2874 = vunpack.c.0.s8 %v2873
        %v2875 = vlaneseq
        %v2876 = vshrl.u32 %v2875, 7
        %v2877 = vsub.s32 %v2874, %v2876
        %v2878 = vrot.slane %v2871, %v2877
        %v2880 = vunpack.c.l.s4 1966171168
        %v2881 = vunpack.c.0.s8 %v2880
        %v2882 = vlaneseq
        %v2883 = vshrl.u32 %v2882, 7
        %v2884 = vsub.s32 %v2881, %v2883
        %v2885 = vrot.slane %v2878, %v2884
        %2887 = vst.msk [vmem:[#allocation4 + $0x7] sm:$0x1] %vm2592, %v2885
        %v2888 = vcombine.high %v2878, %v2878
        %v2890 = vunpack.c.l.s4 1966171168
        %v2891 = vunpack.c.0.s8 %v2890
        %v2892 = vlaneseq
        %v2893 = vshrl.u32 %v2892, 7
        %v2894 = vsub.s32 %v2891, %v2893
        %v2895 = vrot.slane %v2888, %v2894
        %2896 = vrot.lane.b32.xlu0 %v2895, 32
        %v2897 = vpop.permute.xlu0 %2896
        %2899 = vst.msk [vmem:[#allocation4 + $0x7] sm:$0x1] %vm2622, %v2897
        %v2900 = vcombine.high %v2885, %v2885
        %2901 = vrot.lane.b32.xlu0 %v2900, 64
        %v2902 = vpop.permute.xlu0 %2901
        %2904 = vst.msk [vmem:[#allocation4 + $0x7] sm:$0x1] %vm2630, %v2902
        %v2905 = vcombine.high %v2895, %v2895
        %2906 = vrot.lane.b32.xlu0 %v2905, 96
        %v2907 = vpop.permute.xlu0 %2906
        %2909 = vst.msk [vmem:[#allocation4 + $0x7] sm:$0x1] %vm2638, %v2907
        %2910 = vst.msk [vmem:[#allocation4 + $0x8] sm:$0x1] %vm2592, %v2586
        %v2913 = vunpack.c.l.s4 1966171168
        %v2914 = vunpack.c.0.s8 %v2913
        %v2915 = vlaneseq
        %v2916 = vshrl.u32 %v2915, 7
        %v2917 = vsub.s32 %v2914, %v2916
        %v2918 = vrot.slane %v2586, %v2917
        %v2919 = vcombine.high %v2918, %v2918
        %v2921 = vunpack.c.l.s4 1966171168
        %v2922 = vunpack.c.0.s8 %v2921
        %v2923 = vlaneseq
        %v2924 = vshrl.u32 %v2923, 7
        %v2925 = vsub.s32 %v2922, %v2924
        %v2926 = vrot.slane %v2918, %v2925
        %v2928 = vunpack.c.l.s4 1966171168
        %v2929 = vunpack.c.0.s8 %v2928
        %v2930 = vlaneseq
        %v2931 = vshrl.u32 %v2930, 7
        %v2932 = vsub.s32 %v2929, %v2931
        %v2933 = vrot.slane %v2919, %v2932
        %2934 = vrot.lane.b32.xlu0 %v2933, 32
        %v2935 = vpop.permute.xlu0 %2934
        %2937 = vst.msk [vmem:[#allocation4 + $0x8] sm:$0x1] %vm2622, %v2935
        %v2938 = vcombine.high %v2926, %v2926
        %2939 = vrot.lane.b32.xlu0 %v2938, 64
        %v2940 = vpop.permute.xlu0 %2939
        %2942 = vst.msk [vmem:[#allocation4 + $0x8] sm:$0x1] %vm2630, %v2940
        %v2943 = vcombine.high %v2933, %v2933
        %2944 = vrot.lane.b32.xlu0 %v2943, 96
        %v2945 = vpop.permute.xlu0 %2944
        %2947 = vst.msk [vmem:[#allocation4 + $0x8] sm:$0x1] %vm2638, %v2945
        %v2948 = vcombine.high %v2586, %v2586
        %v2950 = vunpack.c.l.s4 1966171168
        %v2951 = vunpack.c.0.s8 %v2950
        %v2952 = vlaneseq
        %v2953 = vshrl.u32 %v2952, 7
        %v2954 = vsub.s32 %v2951, %v2953
        %v2955 = vrot.slane %v2948, %v2954
        %v2957 = vunpack.c.l.s4 1966171168
        %v2958 = vunpack.c.0.s8 %v2957
        %v2959 = vlaneseq
        %v2960 = vshrl.u32 %v2959, 7
        %v2961 = vsub.s32 %v2958, %v2960
        %v2962 = vrot.slane %v2955, %v2961
        %2964 = vst.msk [vmem:[#allocation4 + $0x9] sm:$0x1] %vm2592, %v2962
        %v2965 = vcombine.high %v2955, %v2955
        %v2967 = vunpack.c.l.s4 1966171168
        %v2968 = vunpack.c.0.s8 %v2967
        %v2969 = vlaneseq
        %v2970 = vshrl.u32 %v2969, 7
        %v2971 = vsub.s32 %v2968, %v2970
        %v2972 = vrot.slane %v2965, %v2971
        %2973 = vrot.lane.b32.xlu0 %v2972, 32
        %v2974 = vpop.permute.xlu0 %2973
        %2976 = vst.msk [vmem:[#allocation4 + $0x9] sm:$0x1] %vm2622, %v2974
        %v2977 = vcombine.high %v2962, %v2962
        %2978 = vrot.lane.b32.xlu0 %v2977, 64
        %v2979 = vpop.permute.xlu0 %2978
        %2981 = vst.msk [vmem:[#allocation4 + $0x9] sm:$0x1] %vm2630, %v2979
        %v2982 = vcombine.high %v2972, %v2972
        %2983 = vrot.lane.b32.xlu0 %v2982, 96
        %v2984 = vpop.permute.xlu0 %2983
        %2986 = vst.msk [vmem:[#allocation4 + $0x9] sm:$0x1] %vm2638, %v2984
        %2987 = vst.msk [vmem:[#allocation4 + $0xa] sm:$0x1] %vm2592, %v2587
        %v2990 = vunpack.c.l.s4 1966171168
        %v2991 = vunpack.c.0.s8 %v2990
        %v2992 = vlaneseq
        %v2993 = vshrl.u32 %v2992, 7
        %v2994 = vsub.s32 %v2991, %v2993
        %v2995 = vrot.slane %v2587, %v2994
        %v2996 = vcombine.high %v2995, %v2995
        %v2998 = vunpack.c.l.s4 1966171168
        %v2999 = vunpack.c.0.s8 %v2998
        %v3000 = vlaneseq
        %v3001 = vshrl.u32 %v3000, 7
        %v3002 = vsub.s32 %v2999, %v3001
        %v3003 = vrot.slane %v2995, %v3002
        %v3005 = vunpack.c.l.s4 1966171168
        %v3006 = vunpack.c.0.s8 %v3005
        %v3007 = vlaneseq
        %v3008 = vshrl.u32 %v3007, 7
        %v3009 = vsub.s32 %v3006, %v3008
        %v3010 = vrot.slane %v2996, %v3009
        %3011 = vrot.lane.b32.xlu0 %v3010, 32
        %v3012 = vpop.permute.xlu0 %3011
        %3014 = vst.msk [vmem:[#allocation4 + $0xa] sm:$0x1] %vm2622, %v3012
        %v3015 = vcombine.high %v3003, %v3003
        %3016 = vrot.lane.b32.xlu0 %v3015, 64
        %v3017 = vpop.permute.xlu0 %3016
        %3019 = vst.msk [vmem:[#allocation4 + $0xa] sm:$0x1] %vm2630, %v3017
        %v3020 = vcombine.high %v3010, %v3010
        %3021 = vrot.lane.b32.xlu0 %v3020, 96
        %v3022 = vpop.permute.xlu0 %3021
        %3024 = vst.msk [vmem:[#allocation4 + $0xa] sm:$0x1] %vm2638, %v3022
        %v3025 = vcombine.high %v2587, %v2587
        %v3027 = vunpack.c.l.s4 1966171168
        %v3028 = vunpack.c.0.s8 %v3027
        %v3029 = vlaneseq
        %v3030 = vshrl.u32 %v3029, 7
        %v3031 = vsub.s32 %v3028, %v3030
        %v3032 = vrot.slane %v3025, %v3031
        %v3034 = vunpack.c.l.s4 1966171168
        %v3035 = vunpack.c.0.s8 %v3034
        %v3036 = vlaneseq
        %v3037 = vshrl.u32 %v3036, 7
        %v3038 = vsub.s32 %v3035, %v3037
        %v3039 = vrot.slane %v3032, %v3038
        %3041 = vst.msk [vmem:[#allocation4 + $0xb] sm:$0x1] %vm2592, %v3039
        %v3042 = vcombine.high %v3032, %v3032
        %v3044 = vunpack.c.l.s4 1966171168
        %v3045 = vunpack.c.0.s8 %v3044
        %v3046 = vlaneseq
        %v3047 = vshrl.u32 %v3046, 7
        %v3048 = vsub.s32 %v3045, %v3047
        %v3049 = vrot.slane %v3042, %v3048
        %3050 = vrot.lane.b32.xlu0 %v3049, 32
        %v3051 = vpop.permute.xlu0 %3050
        %3053 = vst.msk [vmem:[#allocation4 + $0xb] sm:$0x1] %vm2622, %v3051
        %v3054 = vcombine.high %v3039, %v3039
        %3055 = vrot.lane.b32.xlu0 %v3054, 64
        %v3056 = vpop.permute.xlu0 %3055
        %3058 = vst.msk [vmem:[#allocation4 + $0xb] sm:$0x1] %vm2630, %v3056
        %v3059 = vcombine.high %v3049, %v3049
        %3060 = vrot.lane.b32.xlu0 %v3059, 96
        %v3061 = vpop.permute.xlu0 %3060
        %3063 = vst.msk [vmem:[#allocation4 + $0xb] sm:$0x1] %vm2638, %v3061
        %3064 = vst.msk [vmem:[#allocation4 + $0xc] sm:$0x1] %vm2592, %v2588
        %v3065 = vld [vmem:[#allocation4] sm:$0xff]
        %v3066 = vld [vmem:[#allocation4 + $0x8] sm:$0x1f]
        %v3069 = vlaneseq
        %v3070 = vshrl.u32 %v3069, 7
        %v3071 = vsub.s32 0, %v3070
        %v3072 = vrot.slane %v3065, %v3071
        %v3073 = vlaneseq
        %v3074 = vshrl.u32 %v3073, 7
        %v3075 = vsub.s32 1, %v3074
        %v3076 = vrot.slane %v3065, %v3075
        %v3077 = vlaneseq
        %v3078 = vshrl.u32 %v3077, 7
        %v3079 = vsub.s32 2, %v3078
        %v3080 = vrot.slane %v3065, %v3079
        %v3081 = vlaneseq
        %v3082 = vshrl.u32 %v3081, 7
        %v3083 = vsub.s32 3, %v3082
        %v3084 = vrot.slane %v3065, %v3083
        %v3085 = vlaneseq
        %v3086 = vshrl.u32 %v3085, 7
        %v3087 = vsub.s32 4, %v3086
        %v3088 = vrot.slane %v3065, %v3087
        %v3089 = vlaneseq
        %v3090 = vshrl.u32 %v3089, 7
        %v3091 = vsub.s32 5, %v3090
        %v3092 = vrot.slane %v3065, %v3091
        %v3093 = vlaneseq
        %v3094 = vshrl.u32 %v3093, 7
        %v3095 = vsub.s32 6, %v3094
        %v3096 = vrot.slane %v3065, %v3095
        %v3097 = vlaneseq
        %v3098 = vshrl.u32 %v3097, 7
        %v3099 = vsub.s32 7, %v3098
        %v3100 = vrot.slane %v3065, %v3099
        %v3101 = vlaneseq
        %v3102 = vshrl.u32 %v3101, 7
        %v3103 = vsub.s32 0, %v3102
        %v3104 = vrot.slane %v3066, %v3103
        %v3105 = vlaneseq
        %v3106 = vshrl.u32 %v3105, 7
        %v3107 = vsub.s32 1, %v3106
        %v3108 = vrot.slane %v3066, %v3107
        %v3109 = vlaneseq
        %v3110 = vshrl.u32 %v3109, 7
        %v3111 = vsub.s32 2, %v3110
        %v3112 = vrot.slane %v3066, %v3111
        %v3113 = vlaneseq
        %v3114 = vshrl.u32 %v3113, 7
        %v3115 = vsub.s32 3, %v3114
        %v3116 = vrot.slane %v3066, %v3115
        %v3117 = vlaneseq
        %v3118 = vshrl.u32 %v3117, 7
        %v3119 = vsub.s32 4, %v3118
        %v3120 = vrot.slane %v3066, %v3119
        %v3134 = vpack.c.bf16 %v3072, %v3072
        %v3135 = vpack.c.bf16 %v3076, %v3076
        %v3136 = vpack.c.bf16 %v3080, %v3080
        %v3137 = vpack.c.bf16 %v3084, %v3084
        %v3138 = vpack.c.bf16 %v3088, %v3088
        %v3139 = vpack.c.bf16 %v3092, %v3092
        %v3140 = vpack.c.bf16 %v3096, %v3096
        %v3141 = vpack.c.bf16 %v3100, %v3100
        %v3142 = vpack.c.bf16 %v3104, %v3104
        %v3143 = vpack.c.bf16 %v3108, %v3108
        %v3144 = vpack.c.bf16 %v3112, %v3112
        %v3145 = vpack.c.bf16 %v3116, %v3116
        %v3146 = vpack.c.bf16 %v3120, %v3120
        %v3147 = vld [vmem:[%s5] sm:$0xf]
        %v3148 = vld [vmem:[%s5 + $0x4] sm:$0xf]
        %v3149 = vld [vmem:[%s5 + $0x8] sm:$0xf]
        %v3150 = vld [vmem:[%s5 + $0xc] sm:$0xf]
        %v3151 = vld [vmem:[%s5 + $0x10] sm:$0xf]
        %v3152 = vld [vmem:[%s5 + $0x14] sm:$0xf]
        %v3153 = vld [vmem:[%s5 + $0x18] sm:$0xf]
        %v3154 = vld [vmem:[%s5 + $0x1c] sm:$0xf]
        %v3155 = vld [vmem:[%s5 + $0x20] sm:$0xf]
        %v3156 = vld [vmem:[%s5 + $0x24] sm:$0xf]
        %v3157 = vld [vmem:[%s5 + $0x28] sm:$0xf]
        %v3158 = vld [vmem:[%s5 + $0x2c] sm:$0xf]
        %v3159 = vld [vmem:[%s5 + $0x30] sm:$0xf]
        %v3160 = vld [vmem:[%s5 + $0x34] sm:$0xf]
        %v3161 = vld [vmem:[%s5 + $0x38] sm:$0xf]
        %v3162 = vld [vmem:[%s5 + $0x3c] sm:$0xf]
        %v3163 = vld [vmem:[%s5 + $0x40] sm:$0xf]
        %v3164 = vld [vmem:[%s5 + $0x44] sm:$0xf]
        %v3165 = vld [vmem:[%s5 + $0x48] sm:$0xf]
        %v3166 = vld [vmem:[%s5 + $0x4c] sm:$0xf]
        %v3167 = vld [vmem:[%s5 + $0x50] sm:$0xf]
        %v3168 = vld [vmem:[%s5 + $0x54] sm:$0xf]
        %v3169 = vld [vmem:[%s5 + $0x58] sm:$0xf]
        %v3170 = vld [vmem:[%s5 + $0x5c] sm:$0xf]
        %v3171 = vld [vmem:[%s5 + $0x60] sm:$0xf]
        %v3172 = vld [vmem:[%s5 + $0x64] sm:$0xf]
        %v3173 = vld [vmem:[%s5 + $0x68] sm:$0xf]
        %v3174 = vld [vmem:[%s5 + $0x6c] sm:$0xf]
        %v3175 = vld [vmem:[%s5 + $0x70] sm:$0xf]
        %v3176 = vld [vmem:[%s5 + $0x74] sm:$0xf]
        %v3177 = vld [vmem:[%s5 + $0x78] sm:$0xf]
        %v3178 = vld [vmem:[%s5 + $0x7c] sm:$0xf]
        %v3179 = vld [vmem:[%s5 + $0x80] sm:$0xf]
        %v3180 = vld [vmem:[%s5 + $0x84] sm:$0xf]
        %v3181 = vld [vmem:[%s5 + $0x88] sm:$0xf]
        %v3182 = vld [vmem:[%s5 + $0x8c] sm:$0xf]
        %v3183 = vld [vmem:[%s5 + $0x90] sm:$0xf]
        %v3184 = vld [vmem:[%s5 + $0x94] sm:$0xf]
        %v3185 = vld [vmem:[%s5 + $0x98] sm:$0xf]
        %v3186 = vld [vmem:[%s5 + $0x9c] sm:$0xf]
        %v3187 = vld [vmem:[%s5 + $0xa0] sm:$0xf]
        %v3188 = vld [vmem:[%s5 + $0xa4] sm:$0xf]
        %v3189 = vld [vmem:[%s5 + $0xa8] sm:$0xf]
        %v3190 = vld [vmem:[%s5 + $0xac] sm:$0xf]
        %v3191 = vld [vmem:[%s5 + $0xb0] sm:$0xf]
        %v3192 = vld [vmem:[%s5 + $0xb4] sm:$0xf]
        %v3193 = vld [vmem:[%s5 + $0xb8] sm:$0xf]
        %v3194 = vld [vmem:[%s5 + $0xbc] sm:$0xf]
        %v3195 = vld [vmem:[%s5 + $0xc0] sm:$0xf]
        %v3196 = vld [vmem:[%s5 + $0xc4] sm:$0xf]
        %v3197 = vld [vmem:[%s5 + $0xc8] sm:$0xf]
        %v3198 = vld [vmem:[%s5 + $0xcc] sm:$0xf]
        %v3199 = vld [vmem:[%s5 + $0xd0] sm:$0xf]
        %v3200 = vld [vmem:[%s5 + $0xd4] sm:$0xf]
        %v3201 = vld [vmem:[%s5 + $0xd8] sm:$0xf]
        %v3202 = vld [vmem:[%s5 + $0xdc] sm:$0xf]
        %v3203 = vld [vmem:[%s5 + $0xe0] sm:$0xf]
        %v3204 = vld [vmem:[%s5 + $0xe4] sm:$0xf]
        %v3205 = vld [vmem:[%s5 + $0xe8] sm:$0xf]
        %v3206 = vld [vmem:[%s5 + $0xec] sm:$0xf]
        %v3207 = vld [vmem:[%s5 + $0xf0] sm:$0xf]
        %v3208 = vld [vmem:[%s5 + $0xf4] sm:$0xf]
        %v3209 = vld [vmem:[%s5 + $0xf8] sm:$0xf]
        %v3210 = vld [vmem:[%s5 + $0xfc] sm:$0xf]
        %v3211 = vld [vmem:[%s5 + $0x100] sm:$0xf]
        %v3212 = vld [vmem:[%s5 + $0x104] sm:$0xf]
        %v3213 = vld [vmem:[%s5 + $0x108] sm:$0xf]
        %v3214 = vld [vmem:[%s5 + $0x10c] sm:$0xf]
        %v3215 = vld [vmem:[%s5 + $0x110] sm:$0xf]
        %v3216 = vld [vmem:[%s5 + $0x114] sm:$0xf]
        %v3217 = vld [vmem:[%s5 + $0x118] sm:$0xf]
        %v3218 = vld [vmem:[%s5 + $0x11c] sm:$0xf]
        %v3219 = vld [vmem:[%s5 + $0x120] sm:$0xf]
        %v3220 = vld [vmem:[%s5 + $0x124] sm:$0xf]
        %v3221 = vld [vmem:[%s5 + $0x128] sm:$0xf]
        %v3222 = vld [vmem:[%s5 + $0x12c] sm:$0xf]
        %v3223 = vld [vmem:[%s5 + $0x130] sm:$0xf]
        %v3224 = vld [vmem:[%s5 + $0x134] sm:$0xf]
        %v3225 = vld [vmem:[%s5 + $0x138] sm:$0xf]
        %v3226 = vld [vmem:[%s5 + $0x13c] sm:$0xf]
        %v3227 = vld [vmem:[%s5 + $0x140] sm:$0xf]
        %v3228 = vld [vmem:[%s5 + $0x144] sm:$0xf]
        %v3229 = vld [vmem:[%s5 + $0x148] sm:$0xf]
        %v3230 = vld [vmem:[%s5 + $0x14c] sm:$0xf]
        %v3231 = vld [vmem:[%s5 + $0x150] sm:$0xf]
        %v3232 = vld [vmem:[%s5 + $0x154] sm:$0xf]
        %v3233 = vld [vmem:[%s5 + $0x158] sm:$0xf]
        %v3234 = vld [vmem:[%s5 + $0x15c] sm:$0xf]
        %v3235 = vld [vmem:[%s5 + $0x160] sm:$0xf]
        %v3236 = vld [vmem:[%s5 + $0x164] sm:$0xf]
        %v3237 = vld [vmem:[%s5 + $0x168] sm:$0xf]
        %v3238 = vld [vmem:[%s5 + $0x16c] sm:$0xf]
        %v3239 = vld [vmem:[%s5 + $0x170] sm:$0xf]
        %v3240 = vld [vmem:[%s5 + $0x174] sm:$0xf]
        %v3241 = vld [vmem:[%s5 + $0x178] sm:$0xf]
        %v3242 = vld [vmem:[%s5 + $0x17c] sm:$0xf]
        %v3243 = vld [vmem:[%s5 + $0x180] sm:$0xf]
        %v3244 = vld [vmem:[%s5 + $0x184] sm:$0xf]
        %v3245 = vld [vmem:[%s5 + $0x188] sm:$0xf]
        %v3246 = vld [vmem:[%s5 + $0x18c] sm:$0xf]
        %v3247 = vld [vmem:[%s5 + $0x190] sm:$0xf]
        %v3248 = vld [vmem:[%s5 + $0x194] sm:$0xf]
        %v3249 = vld [vmem:[%s5 + $0x198] sm:$0xf]
        %v3250 = vld [vmem:[%s5 + $0x19c] sm:$0xf]
        %v3251 = vld [vmem:[%s5 + $0x1a0] sm:$0xf]
        %v3252 = vld [vmem:[%s5 + $0x1a4] sm:$0xf]
        %v3253 = vld [vmem:[%s5 + $0x1a8] sm:$0xf]
        %v3254 = vld [vmem:[%s5 + $0x1ac] sm:$0xf]
        %v3255 = vld [vmem:[%s5 + $0x1b0] sm:$0xf]
        %v3256 = vld [vmem:[%s5 + $0x1b4] sm:$0xf]
        %v3257 = vld [vmem:[%s5 + $0x1b8] sm:$0xf]
        %v3258 = vld [vmem:[%s5 + $0x1bc] sm:$0xf]
        %v3259 = vld [vmem:[%s5 + $0x1c0] sm:$0xf]
        %v3260 = vld [vmem:[%s5 + $0x1c4] sm:$0xf]
        %v3261 = vld [vmem:[%s5 + $0x1c8] sm:$0xf]
        %v3262 = vld [vmem:[%s5 + $0x1cc] sm:$0xf]
        %v3263 = vld [vmem:[%s5 + $0x1d0] sm:$0xf]
        %v3264 = vld [vmem:[%s5 + $0x1d4] sm:$0xf]
        %v3265 = vld [vmem:[%s5 + $0x1d8] sm:$0xf]
        %v3266 = vld [vmem:[%s5 + $0x1dc] sm:$0xf]
        %v3267 = vld [vmem:[%s5 + $0x1e0] sm:$0xf]
        %v3268 = vld [vmem:[%s5 + $0x1e4] sm:$0xf]
        %v3269 = vld [vmem:[%s5 + $0x1e8] sm:$0xf]
        %v3270 = vld [vmem:[%s5 + $0x1ec] sm:$0xf]
        %v3271 = vld [vmem:[%s5 + $0x1f0] sm:$0xf]
        %v3272 = vld [vmem:[%s5 + $0x1f4] sm:$0xf]
        %v3273 = vld [vmem:[%s5 + $0x1f8] sm:$0xf]
        %v3274 = vld [vmem:[%s5 + $0x1fc] sm:$0xf]
        %v3275 = vld [vmem:[%s5 + $0x200] sm:$0xf]
        %v3276 = vld [vmem:[%s5 + $0x204] sm:$0xf]
        %v3277 = vld [vmem:[%s5 + $0x208] sm:$0xf]
        %v3278 = vld [vmem:[%s5 + $0x20c] sm:$0xf]
        %v3279 = vld [vmem:[%s5 + $0x210] sm:$0xf]
        %v3280 = vld [vmem:[%s5 + $0x214] sm:$0xf]
        %v3281 = vld [vmem:[%s5 + $0x218] sm:$0xf]
        %v3282 = vld [vmem:[%s5 + $0x21c] sm:$0xf]
        %v3283 = vld [vmem:[%s5 + $0x220] sm:$0xf]
        %v3284 = vld [vmem:[%s5 + $0x224] sm:$0xf]
        %v3285 = vld [vmem:[%s5 + $0x228] sm:$0xf]
        %v3286 = vld [vmem:[%s5 + $0x22c] sm:$0xf]
        %v3287 = vld [vmem:[%s5 + $0x230] sm:$0xf]
        %v3288 = vld [vmem:[%s5 + $0x234] sm:$0xf]
        %v3289 = vld [vmem:[%s5 + $0x238] sm:$0xf]
        %v3290 = vld [vmem:[%s5 + $0x23c] sm:$0xf]
        %v3291 = vld [vmem:[%s5 + $0x240] sm:$0xf]
        %v3292 = vld [vmem:[%s5 + $0x244] sm:$0xf]
        %v3293 = vld [vmem:[%s5 + $0x248] sm:$0xf]
        %v3294 = vld [vmem:[%s5 + $0x24c] sm:$0xf]
        %v3295 = vld [vmem:[%s5 + $0x250] sm:$0xf]
        %v3296 = vld [vmem:[%s5 + $0x254] sm:$0xf]
        %v3297 = vld [vmem:[%s5 + $0x258] sm:$0xf]
        %v3298 = vld [vmem:[%s5 + $0x25c] sm:$0xf]
        %v3299 = vld [vmem:[%s5 + $0x260] sm:$0xf]
        %v3300 = vld [vmem:[%s5 + $0x264] sm:$0xf]
        %v3301 = vld [vmem:[%s5 + $0x268] sm:$0xf]
        %v3302 = vld [vmem:[%s5 + $0x26c] sm:$0xf]
        %v3303 = vld [vmem:[%s5 + $0x270] sm:$0xf]
        %v3304 = vld [vmem:[%s5 + $0x274] sm:$0xf]
        %v3305 = vld [vmem:[%s5 + $0x278] sm:$0xf]
        %v3306 = vld [vmem:[%s5 + $0x27c] sm:$0xf]
        %v3307 = vld [vmem:[%s5 + $0x280] sm:$0xf]
        %v3308 = vld [vmem:[%s5 + $0x284] sm:$0xf]
        %v3309 = vld [vmem:[%s5 + $0x288] sm:$0xf]
        %v3310 = vld [vmem:[%s5 + $0x28c] sm:$0xf]
        %v3311 = vld [vmem:[%s5 + $0x290] sm:$0xf]
        %v3312 = vld [vmem:[%s5 + $0x294] sm:$0xf]
        %v3313 = vld [vmem:[%s5 + $0x298] sm:$0xf]
        %v3314 = vld [vmem:[%s5 + $0x29c] sm:$0xf]
        %v3315 = vld [vmem:[%s5 + $0x2a0] sm:$0xf]
        %v3316 = vld [vmem:[%s5 + $0x2a4] sm:$0xf]
        %v3317 = vld [vmem:[%s5 + $0x2a8] sm:$0xf]
        %v3318 = vld [vmem:[%s5 + $0x2ac] sm:$0xf]
        %v3319 = vld [vmem:[%s5 + $0x2b0] sm:$0xf]
        %v3320 = vld [vmem:[%s5 + $0x2b4] sm:$0xf]
        %v3321 = vld [vmem:[%s5 + $0x2b8] sm:$0xf]
        %v3322 = vld [vmem:[%s5 + $0x2bc] sm:$0xf]
        %v3323 = vld [vmem:[%s5 + $0x2c0] sm:$0xf]
        %v3324 = vld [vmem:[%s5 + $0x2c4] sm:$0xf]
        %v3325 = vld [vmem:[%s5 + $0x2c8] sm:$0xf]
        %v3326 = vld [vmem:[%s5 + $0x2cc] sm:$0xf]
        %v3327 = vld [vmem:[%s5 + $0x2d0] sm:$0xf]
        %v3328 = vld [vmem:[%s5 + $0x2d4] sm:$0xf]
        %v3329 = vld [vmem:[%s5 + $0x2d8] sm:$0xf]
        %v3330 = vld [vmem:[%s5 + $0x2dc] sm:$0xf]
        %v3331 = vld [vmem:[%s5 + $0x2e0] sm:$0xf]
        %v3332 = vld [vmem:[%s5 + $0x2e4] sm:$0xf]
        %v3333 = vld [vmem:[%s5 + $0x2e8] sm:$0xf]
        %v3334 = vld [vmem:[%s5 + $0x2ec] sm:$0xf]
        %v3335 = vld [vmem:[%s5 + $0x2f0] sm:$0xf]
        %v3336 = vld [vmem:[%s5 + $0x2f4] sm:$0xf]
        %v3337 = vld [vmem:[%s5 + $0x2f8] sm:$0xf]
        %v3338 = vld [vmem:[%s5 + $0x2fc] sm:$0xf]
        %v3339 = vld [vmem:[%s5 + $0x300] sm:$0xf]
        %v3340 = vld [vmem:[%s5 + $0x304] sm:$0xf]
        %v3341 = vld [vmem:[%s5 + $0x308] sm:$0xf]
        %v3342 = vld [vmem:[%s5 + $0x30c] sm:$0xf]
        %v3343 = vld [vmem:[%s6] sm:$0x1]
        %v3540 = vunpack.c.l.b16 %v3147
        %v3541 = vunpack.c.l.b16 %v3148
        %v3542 = vunpack.c.l.b16 %v3149
        %v3543 = vunpack.c.l.b16 %v3150
        %v3544 = vunpack.c.l.b16 %v3151
        %v3545 = vunpack.c.l.b16 %v3152
        %v3546 = vunpack.c.l.b16 %v3153
        %v3547 = vunpack.c.l.b16 %v3154
        %v3548 = vunpack.c.l.b16 %v3155
        %v3549 = vunpack.c.l.b16 %v3156
        %v3550 = vunpack.c.l.b16 %v3157
        %v3551 = vunpack.c.l.b16 %v3158
        %v3552 = vunpack.c.l.b16 %v3159
        %v3553 = vunpack.c.l.b16 %v3160
        %v3554 = vunpack.c.l.b16 %v3161
        %v3555 = vunpack.c.l.b16 %v3162
        %v3556 = vunpack.c.l.b16 %v3163
        %v3557 = vunpack.c.l.b16 %v3164
        %v3558 = vunpack.c.l.b16 %v3165
        %v3559 = vunpack.c.l.b16 %v3166
        %v3560 = vunpack.c.l.b16 %v3167
        %v3561 = vunpack.c.l.b16 %v3168
        %v3562 = vunpack.c.l.b16 %v3169
        %v3563 = vunpack.c.l.b16 %v3170
        %v3564 = vunpack.c.l.b16 %v3171
        %v3565 = vunpack.c.l.b16 %v3172
        %v3566 = vunpack.c.l.b16 %v3173
        %v3567 = vunpack.c.l.b16 %v3174
        %v3568 = vunpack.c.l.b16 %v3175
        %v3569 = vunpack.c.l.b16 %v3176
        %v3570 = vunpack.c.l.b16 %v3177
        %v3571 = vunpack.c.l.b16 %v3178
        %v3572 = vunpack.c.l.b16 %v3179
        %v3573 = vunpack.c.l.b16 %v3180
        %v3574 = vunpack.c.l.b16 %v3181
        %v3575 = vunpack.c.l.b16 %v3182
        %v3576 = vunpack.c.l.b16 %v3183
        %v3577 = vunpack.c.l.b16 %v3184
        %v3578 = vunpack.c.l.b16 %v3185
        %v3579 = vunpack.c.l.b16 %v3186
        %v3580 = vunpack.c.l.b16 %v3187
        %v3581 = vunpack.c.l.b16 %v3188
        %v3582 = vunpack.c.l.b16 %v3189
        %v3583 = vunpack.c.l.b16 %v3190
        %v3584 = vunpack.c.l.b16 %v3191
        %v3585 = vunpack.c.l.b16 %v3192
        %v3586 = vunpack.c.l.b16 %v3193
        %v3587 = vunpack.c.l.b16 %v3194
        %v3588 = vunpack.c.l.b16 %v3195
        %v3589 = vunpack.c.l.b16 %v3196
        %v3590 = vunpack.c.l.b16 %v3197
        %v3591 = vunpack.c.l.b16 %v3198
        %v3592 = vunpack.c.l.b16 %v3199
        %v3593 = vunpack.c.l.b16 %v3200
        %v3594 = vunpack.c.l.b16 %v3201
        %v3595 = vunpack.c.l.b16 %v3202
        %v3596 = vunpack.c.l.b16 %v3203
        %v3597 = vunpack.c.l.b16 %v3204
        %v3598 = vunpack.c.l.b16 %v3205
        %v3599 = vunpack.c.l.b16 %v3206
        %v3600 = vunpack.c.l.b16 %v3207
        %v3601 = vunpack.c.l.b16 %v3208
        %v3602 = vunpack.c.l.b16 %v3209
        %v3603 = vunpack.c.l.b16 %v3210
        %v3604 = vunpack.c.l.b16 %v3211
        %v3605 = vunpack.c.l.b16 %v3212
        %v3606 = vunpack.c.l.b16 %v3213
        %v3607 = vunpack.c.l.b16 %v3214
        %v3608 = vunpack.c.l.b16 %v3215
        %v3609 = vunpack.c.l.b16 %v3216
        %v3610 = vunpack.c.l.b16 %v3217
        %v3611 = vunpack.c.l.b16 %v3218
        %v3612 = vunpack.c.l.b16 %v3219
        %v3613 = vunpack.c.l.b16 %v3220
        %v3614 = vunpack.c.l.b16 %v3221
        %v3615 = vunpack.c.l.b16 %v3222
        %v3616 = vunpack.c.l.b16 %v3223
        %v3617 = vunpack.c.l.b16 %v3224
        %v3618 = vunpack.c.l.b16 %v3225
        %v3619 = vunpack.c.l.b16 %v3226
        %v3620 = vunpack.c.l.b16 %v3227
        %v3621 = vunpack.c.l.b16 %v3228
        %v3622 = vunpack.c.l.b16 %v3229
        %v3623 = vunpack.c.l.b16 %v3230
        %v3624 = vunpack.c.l.b16 %v3231
        %v3625 = vunpack.c.l.b16 %v3232
        %v3626 = vunpack.c.l.b16 %v3233
        %v3627 = vunpack.c.l.b16 %v3234
        %v3628 = vunpack.c.l.b16 %v3235
        %v3629 = vunpack.c.l.b16 %v3236
        %v3630 = vunpack.c.l.b16 %v3237
        %v3631 = vunpack.c.l.b16 %v3238
        %v3632 = vunpack.c.l.b16 %v3239
        %v3633 = vunpack.c.l.b16 %v3240
        %v3634 = vunpack.c.l.b16 %v3241
        %v3635 = vunpack.c.l.b16 %v3242
        %v3636 = vunpack.c.l.b16 %v3243
        %v3637 = vunpack.c.l.b16 %v3244
        %v3638 = vunpack.c.l.b16 %v3245
        %v3639 = vunpack.c.l.b16 %v3246
        %v3640 = vunpack.c.l.b16 %v3247
        %v3641 = vunpack.c.l.b16 %v3248
        %v3642 = vunpack.c.l.b16 %v3249
        %v3643 = vunpack.c.l.b16 %v3250
        %v3644 = vunpack.c.l.b16 %v3251
        %v3645 = vunpack.c.l.b16 %v3252
        %v3646 = vunpack.c.l.b16 %v3253
        %v3647 = vunpack.c.l.b16 %v3254
        %v3648 = vunpack.c.l.b16 %v3255
        %v3649 = vunpack.c.l.b16 %v3256
        %v3650 = vunpack.c.l.b16 %v3257
        %v3651 = vunpack.c.l.b16 %v3258
        %v3652 = vunpack.c.l.b16 %v3259
        %v3653 = vunpack.c.l.b16 %v3260
        %v3654 = vunpack.c.l.b16 %v3261
        %v3655 = vunpack.c.l.b16 %v3262
        %v3656 = vunpack.c.l.b16 %v3263
        %v3657 = vunpack.c.l.b16 %v3264
        %v3658 = vunpack.c.l.b16 %v3265
        %v3659 = vunpack.c.l.b16 %v3266
        %v3660 = vunpack.c.l.b16 %v3267
        %v3661 = vunpack.c.l.b16 %v3268
        %v3662 = vunpack.c.l.b16 %v3269
        %v3663 = vunpack.c.l.b16 %v3270
        %v3664 = vunpack.c.l.b16 %v3271
        %v3665 = vunpack.c.l.b16 %v3272
        %v3666 = vunpack.c.l.b16 %v3273
        %v3667 = vunpack.c.l.b16 %v3274
        %v3668 = vunpack.c.l.b16 %v3275
        %v3669 = vunpack.c.l.b16 %v3276
        %v3670 = vunpack.c.l.b16 %v3277
        %v3671 = vunpack.c.l.b16 %v3278
        %v3672 = vunpack.c.l.b16 %v3279
        %v3673 = vunpack.c.l.b16 %v3280
        %v3674 = vunpack.c.l.b16 %v3281
        %v3675 = vunpack.c.l.b16 %v3282
        %v3676 = vunpack.c.l.b16 %v3283
        %v3677 = vunpack.c.l.b16 %v3284
        %v3678 = vunpack.c.l.b16 %v3285
        %v3679 = vunpack.c.l.b16 %v3286
        %v3680 = vunpack.c.l.b16 %v3287
        %v3681 = vunpack.c.l.b16 %v3288
        %v3682 = vunpack.c.l.b16 %v3289
        %v3683 = vunpack.c.l.b16 %v3290
        %v3684 = vunpack.c.l.b16 %v3291
        %v3685 = vunpack.c.l.b16 %v3292
        %v3686 = vunpack.c.l.b16 %v3293
        %v3687 = vunpack.c.l.b16 %v3294
        %v3688 = vunpack.c.l.b16 %v3295
        %v3689 = vunpack.c.l.b16 %v3296
        %v3690 = vunpack.c.l.b16 %v3297
        %v3691 = vunpack.c.l.b16 %v3298
        %v3692 = vunpack.c.l.b16 %v3299
        %v3693 = vunpack.c.l.b16 %v3300
        %v3694 = vunpack.c.l.b16 %v3301
        %v3695 = vunpack.c.l.b16 %v3302
        %v3696 = vunpack.c.l.b16 %v3303
        %v3697 = vunpack.c.l.b16 %v3304
        %v3698 = vunpack.c.l.b16 %v3305
        %v3699 = vunpack.c.l.b16 %v3306
        %v3700 = vunpack.c.l.b16 %v3307
        %v3701 = vunpack.c.l.b16 %v3308
        %v3702 = vunpack.c.l.b16 %v3309
        %v3703 = vunpack.c.l.b16 %v3310
        %v3704 = vunpack.c.l.b16 %v3311
        %v3705 = vunpack.c.l.b16 %v3312
        %v3706 = vunpack.c.l.b16 %v3313
        %v3707 = vunpack.c.l.b16 %v3314
        %v3708 = vunpack.c.l.b16 %v3315
        %v3709 = vunpack.c.l.b16 %v3316
        %v3710 = vunpack.c.l.b16 %v3317
        %v3711 = vunpack.c.l.b16 %v3318
        %v3712 = vunpack.c.l.b16 %v3319
        %v3713 = vunpack.c.l.b16 %v3320
        %v3714 = vunpack.c.l.b16 %v3321
        %v3715 = vunpack.c.l.b16 %v3322
        %v3716 = vunpack.c.l.b16 %v3323
        %v3717 = vunpack.c.l.b16 %v3324
        %v3718 = vunpack.c.l.b16 %v3325
        %v3719 = vunpack.c.l.b16 %v3326
        %v3720 = vunpack.c.l.b16 %v3327
        %v3721 = vunpack.c.l.b16 %v3328
        %v3722 = vunpack.c.l.b16 %v3329
        %v3723 = vunpack.c.l.b16 %v3330
        %v3724 = vunpack.c.l.b16 %v3331
        %v3725 = vunpack.c.l.b16 %v3332
        %v3726 = vunpack.c.l.b16 %v3333
        %v3727 = vunpack.c.l.b16 %v3334
        %v3728 = vunpack.c.l.b16 %v3335
        %v3729 = vunpack.c.l.b16 %v3336
        %v3730 = vunpack.c.l.b16 %v3337
        %v3731 = vunpack.c.l.b16 %v3338
        %v3732 = vunpack.c.l.b16 %v3339
        %v3733 = vunpack.c.l.b16 %v3340
        %v3734 = vunpack.c.l.b16 %v3341
        %v3735 = vunpack.c.l.b16 %v3342
        %v3736 = vpack.c.b16 %v3541, %v3540
        %v3737 = vpack.c.b16 %v3543, %v3542
        %v3738 = vpack.c.b16 %v3545, %v3544
        %v3739 = vpack.c.b16 %v3547, %v3546
        %v3740 = vpack.c.b16 %v3549, %v3548
        %v3741 = vpack.c.b16 %v3551, %v3550
        %v3742 = vpack.c.b16 %v3553, %v3552
        %v3743 = vpack.c.b16 %v3555, %v3554
        %v3744 = vpack.c.b16 %v3557, %v3556
        %v3745 = vpack.c.b16 %v3559, %v3558
        %v3746 = vpack.c.b16 %v3561, %v3560
        %v3747 = vpack.c.b16 %v3563, %v3562
        %v3748 = vpack.c.b16 %v3565, %v3564
        %v3749 = vpack.c.b16 %v3567, %v3566
        %v3750 = vpack.c.b16 %v3569, %v3568
        %v3751 = vpack.c.b16 %v3571, %v3570
        %v3752 = vpack.c.b16 %v3573, %v3572
        %v3753 = vpack.c.b16 %v3575, %v3574
        %v3754 = vpack.c.b16 %v3577, %v3576
        %v3755 = vpack.c.b16 %v3579, %v3578
        %v3756 = vpack.c.b16 %v3581, %v3580
        %v3757 = vpack.c.b16 %v3583, %v3582
        %v3758 = vpack.c.b16 %v3585, %v3584
        %v3759 = vpack.c.b16 %v3587, %v3586
        %v3760 = vpack.c.b16 %v3589, %v3588
        %v3761 = vpack.c.b16 %v3591, %v3590
        %v3762 = vpack.c.b16 %v3593, %v3592
        %v3763 = vpack.c.b16 %v3595, %v3594
        %v3764 = vpack.c.b16 %v3597, %v3596
        %v3765 = vpack.c.b16 %v3599, %v3598
        %v3766 = vpack.c.b16 %v3601, %v3600
        %v3767 = vpack.c.b16 %v3603, %v3602
        %v3768 = vpack.c.b16 %v3605, %v3604
        %v3769 = vpack.c.b16 %v3607, %v3606
        %v3770 = vpack.c.b16 %v3609, %v3608
        %v3771 = vpack.c.b16 %v3611, %v3610
        %v3772 = vpack.c.b16 %v3613, %v3612
        %v3773 = vpack.c.b16 %v3615, %v3614
        %v3774 = vpack.c.b16 %v3617, %v3616
        %v3775 = vpack.c.b16 %v3619, %v3618
        %v3776 = vpack.c.b16 %v3621, %v3620
        %v3777 = vpack.c.b16 %v3623, %v3622
        %v3778 = vpack.c.b16 %v3625, %v3624
        %v3779 = vpack.c.b16 %v3627, %v3626
        %v3780 = vpack.c.b16 %v3629, %v3628
        %v3781 = vpack.c.b16 %v3631, %v3630
        %v3782 = vpack.c.b16 %v3633, %v3632
        %v3783 = vpack.c.b16 %v3635, %v3634
        %v3784 = vpack.c.b16 %v3637, %v3636
        %v3785 = vpack.c.b16 %v3639, %v3638
        %v3786 = vpack.c.b16 %v3641, %v3640
        %v3787 = vpack.c.b16 %v3643, %v3642
        %v3788 = vpack.c.b16 %v3645, %v3644
        %v3789 = vpack.c.b16 %v3647, %v3646
        %v3790 = vpack.c.b16 %v3649, %v3648
        %v3791 = vpack.c.b16 %v3651, %v3650
        %v3792 = vpack.c.b16 %v3653, %v3652
        %v3793 = vpack.c.b16 %v3655, %v3654
        %v3794 = vpack.c.b16 %v3657, %v3656
        %v3795 = vpack.c.b16 %v3659, %v3658
        %v3796 = vpack.c.b16 %v3661, %v3660
        %v3797 = vpack.c.b16 %v3663, %v3662
        %v3798 = vpack.c.b16 %v3665, %v3664
        %v3799 = vpack.c.b16 %v3667, %v3666
        %v3800 = vpack.c.b16 %v3669, %v3668
        %v3801 = vpack.c.b16 %v3671, %v3670
        %v3802 = vpack.c.b16 %v3673, %v3672
        %v3803 = vpack.c.b16 %v3675, %v3674
        %v3804 = vpack.c.b16 %v3677, %v3676
        %v3805 = vpack.c.b16 %v3679, %v3678
        %v3806 = vpack.c.b16 %v3681, %v3680
        %v3807 = vpack.c.b16 %v3683, %v3682
        %v3808 = vpack.c.b16 %v3685, %v3684
        %v3809 = vpack.c.b16 %v3687, %v3686
        %v3810 = vpack.c.b16 %v3689, %v3688
        %v3811 = vpack.c.b16 %v3691, %v3690
        %v3812 = vpack.c.b16 %v3693, %v3692
        %v3813 = vpack.c.b16 %v3695, %v3694
        %v3814 = vpack.c.b16 %v3697, %v3696
        %v3815 = vpack.c.b16 %v3699, %v3698
        %v3816 = vpack.c.b16 %v3701, %v3700
        %v3817 = vpack.c.b16 %v3703, %v3702
        %v3818 = vpack.c.b16 %v3705, %v3704
        %v3819 = vpack.c.b16 %v3707, %v3706
        %v3820 = vpack.c.b16 %v3709, %v3708
        %v3821 = vpack.c.b16 %v3711, %v3710
        %v3822 = vpack.c.b16 %v3713, %v3712
        %v3823 = vpack.c.b16 %v3715, %v3714
        %v3824 = vpack.c.b16 %v3717, %v3716
        %v3825 = vpack.c.b16 %v3719, %v3718
        %v3826 = vpack.c.b16 %v3721, %v3720
        %v3827 = vpack.c.b16 %v3723, %v3722
        %v3828 = vpack.c.b16 %v3725, %v3724
        %v3829 = vpack.c.b16 %v3727, %v3726
        %v3830 = vpack.c.b16 %v3729, %v3728
        %v3831 = vpack.c.b16 %v3731, %v3730
        %v3832 = vpack.c.b16 %v3733, %v3732
        %v3833 = vpack.c.b16 %v3735, %v3734
        %vm3932 = vcmask 261120
        %v3934 = vsel %vm3932, %v3146, 0
        %3936 = vmatprep.subr.bf16.mxu0 0
        %3937 = vmatpush1.bf16.msra.mxu0 %v3736
        %3938 = vmatprep.subr.bf16.mxu0 0
        %3939 = vmatpush1.bf16.msra.mxu0 %v3737
        %3940 = vmatprep.subr.bf16.mxu0 0
        %3941 = vmatpush1.bf16.msra.mxu0 %v3738
        %3942 = vmatprep.subr.bf16.mxu0 0
        %3943 = vmatpush1.bf16.msra.mxu0 %v3739
        %3944 = vmatprep.subr.bf16.mxu0 0
        %3945 = vmatpush1.bf16.msra.mxu0 %v3740
        %3946 = vmatprep.subr.bf16.mxu0 0
        %3947 = vmatpush1.bf16.msra.mxu0 %v3741
        %3948 = vmatprep.subr.bf16.mxu0 0
        %3949 = vmatpush1.bf16.msra.mxu0 %v3742
        %3950 = vmatprep.subr.bf16.mxu0 0
        %3951 = vmatpush1.bf16.msra.mxu0 %v3743
        %3952 = vmatprep.subr.bf16.mxu0 0
        %3953 = vmatpush1.bf16.msra.mxu0 %v3744
        %3954 = vmatprep.subr.bf16.mxu0 0
        %3955 = vmatpush1.bf16.msra.mxu0 %v3745
        %3956 = vmatprep.subr.bf16.mxu0 0
        %3957 = vmatpush1.bf16.msra.mxu0 %v3746
        %3958 = vmatprep.subr.bf16.mxu0 0
        %3959 = vmatpush1.bf16.msra.mxu0 %v3747
        %3960 = vmatprep.subr.bf16.mxu0 0
        %3961 = vmatpush1.bf16.msra.mxu0 %v3748
        %3962 = vmatprep.subr.bf16.mxu0 0
        %3963 = vmatpush1.bf16.msra.mxu0 %v3749
        %3964 = vmatprep.subr.bf16.mxu0 0
        %3965 = vmatpush1.bf16.msra.mxu0 %v3750
        %3966 = vmatprep.subr.bf16.mxu0 0
        %3967 = vmatpush1.bf16.msra.mxu0 %v3751
        %3968 = vmatprep.mubr.bf16.mxu0 %v3135
        %3969 = vmatmul.mubr.bf16.gmra.mrb[0].mxu0 %v3134
        %v3970 = vpop.f32.mrb[0].mxu0
        %v3971 = vadd.f32 %v3343, %v3970
        %v3972 = vpop.f32.mrb[0].mxu0
        %v3973 = vpop.f32.mrb[0].mxu0
        %v3974 = vpop.f32.mrb[0].mxu0
        %3975 = vdwg.mxu0
        %3976 = vmatprep.subr.bf16.mxu0 0
        %3977 = vmatpush1.bf16.msra.mxu0 %v3752
        %3978 = vmatprep.subr.bf16.mxu0 0
        %3979 = vmatpush1.bf16.msra.mxu0 %v3753
        %3980 = vmatprep.subr.bf16.mxu0 0
        %3981 = vmatpush1.bf16.msra.mxu0 %v3754
        %3982 = vmatprep.subr.bf16.mxu0 0
        %3983 = vmatpush1.bf16.msra.mxu0 %v3755
        %3984 = vmatprep.subr.bf16.mxu0 0
        %3985 = vmatpush1.bf16.msra.mxu0 %v3756
        %3986 = vmatprep.subr.bf16.mxu0 0
        %3987 = vmatpush1.bf16.msra.mxu0 %v3757
        %3988 = vmatprep.subr.bf16.mxu0 0
        %3989 = vmatpush1.bf16.msra.mxu0 %v3758
        %3990 = vmatprep.subr.bf16.mxu0 0
        %3991 = vmatpush1.bf16.msra.mxu0 %v3759
        %3992 = vmatprep.subr.bf16.mxu0 0
        %3993 = vmatpush1.bf16.msra.mxu0 %v3760
        %3994 = vmatprep.subr.bf16.mxu0 0
        %3995 = vmatpush1.bf16.msra.mxu0 %v3761
        %3996 = vmatprep.subr.bf16.mxu0 0
        %3997 = vmatpush1.bf16.msra.mxu0 %v3762
        %3998 = vmatprep.subr.bf16.mxu0 0
        %3999 = vmatpush1.bf16.msra.mxu0 %v3763
        %4000 = vmatprep.subr.bf16.mxu0 0
        %4001 = vmatpush1.bf16.msra.mxu0 %v3764
        %4002 = vmatprep.subr.bf16.mxu0 0
        %4003 = vmatpush1.bf16.msra.mxu0 %v3765
        %4004 = vmatprep.subr.bf16.mxu0 0
        %4005 = vmatpush1.bf16.msra.mxu0 %v3766
        %4006 = vmatprep.subr.bf16.mxu0 0
        %4007 = vmatpush1.bf16.msra.mxu0 %v3767
        %4008 = vmatprep.mubr.bf16.mxu0 %v3137
        %4009 = vmatmul.mubr.bf16.gmra.mrb[0].mxu0 %v3136
        %v4010 = vpop.f32.mrb[0].mxu0
        %v4011 = vadd.f32 %v3971, %v4010
        %v4012 = vpop.f32.mrb[0].mxu0
        %v4013 = vpop.f32.mrb[0].mxu0
        %v4014 = vpop.f32.mrb[0].mxu0
        %4015 = vdwg.mxu0
        %4016 = vmatprep.subr.bf16.mxu0 0
        %4017 = vmatpush1.bf16.msra.mxu0 %v3768
        %4018 = vmatprep.subr.bf16.mxu0 0
        %4019 = vmatpush1.bf16.msra.mxu0 %v3769
        %4020 = vmatprep.subr.bf16.mxu0 0
        %4021 = vmatpush1.bf16.msra.mxu0 %v3770
        %4022 = vmatprep.subr.bf16.mxu0 0
        %4023 = vmatpush1.bf16.msra.mxu0 %v3771
        %4024 = vmatprep.subr.bf16.mxu0 0
        %4025 = vmatpush1.bf16.msra.mxu0 %v3772
        %4026 = vmatprep.subr.bf16.mxu0 0
        %4027 = vmatpush1.bf16.msra.mxu0 %v3773
        %4028 = vmatprep.subr.bf16.mxu0 0
        %4029 = vmatpush1.bf16.msra.mxu0 %v3774
        %4030 = vmatprep.subr.bf16.mxu0 0
        %4031 = vmatpush1.bf16.msra.mxu0 %v3775
        %4032 = vmatprep.subr.bf16.mxu0 0
        %4033 = vmatpush1.bf16.msra.mxu0 %v3776
        %4034 = vmatprep.subr.bf16.mxu0 0
        %4035 = vmatpush1.bf16.msra.mxu0 %v3777
        %4036 = vmatprep.subr.bf16.mxu0 0
        %4037 = vmatpush1.bf16.msra.mxu0 %v3778
        %4038 = vmatprep.subr.bf16.mxu0 0
        %4039 = vmatpush1.bf16.msra.mxu0 %v3779
        %4040 = vmatprep.subr.bf16.mxu0 0
        %4041 = vmatpush1.bf16.msra.mxu0 %v3780
        %4042 = vmatprep.subr.bf16.mxu0 0
        %4043 = vmatpush1.bf16.msra.mxu0 %v3781
        %4044 = vmatprep.subr.bf16.mxu0 0
        %4045 = vmatpush1.bf16.msra.mxu0 %v3782
        %4046 = vmatprep.subr.bf16.mxu0 0
        %4047 = vmatpush1.bf16.msra.mxu0 %v3783
        %4048 = vmatprep.mubr.bf16.mxu0 %v3139
        %4049 = vmatmul.mubr.bf16.gmra.mrb[0].mxu0 %v3138
        %v4050 = vpop.f32.mrb[0].mxu0
        %v4051 = vadd.f32 %v4011, %v4050
        %v4052 = vpop.f32.mrb[0].mxu0
        %v4053 = vpop.f32.mrb[0].mxu0
        %v4054 = vpop.f32.mrb[0].mxu0
        %4055 = vdwg.mxu0
        %4056 = vmatprep.subr.bf16.mxu0 0
        %4057 = vmatpush1.bf16.msra.mxu0 %v3784
        %4058 = vmatprep.subr.bf16.mxu0 0
        %4059 = vmatpush1.bf16.msra.mxu0 %v3785
        %4060 = vmatprep.subr.bf16.mxu0 0
        %4061 = vmatpush1.bf16.msra.mxu0 %v3786
        %4062 = vmatprep.subr.bf16.mxu0 0
        %4063 = vmatpush1.bf16.msra.mxu0 %v3787
        %4064 = vmatprep.subr.bf16.mxu0 0
        %4065 = vmatpush1.bf16.msra.mxu0 %v3788
        %4066 = vmatprep.subr.bf16.mxu0 0
        %4067 = vmatpush1.bf16.msra.mxu0 %v3789
        %4068 = vmatprep.subr.bf16.mxu0 0
        %4069 = vmatpush1.bf16.msra.mxu0 %v3790
        %4070 = vmatprep.subr.bf16.mxu0 0
        %4071 = vmatpush1.bf16.msra.mxu0 %v3791
        %4072 = vmatprep.subr.bf16.mxu0 0
        %4073 = vmatpush1.bf16.msra.mxu0 %v3792
        %4074 = vmatprep.subr.bf16.mxu0 0
        %4075 = vmatpush1.bf16.msra.mxu0 %v3793
        %4076 = vmatprep.subr.bf16.mxu0 0
        %4077 = vmatpush1.bf16.msra.mxu0 %v3794
        %4078 = vmatprep.subr.bf16.mxu0 0
        %4079 = vmatpush1.bf16.msra.mxu0 %v3795
        %4080 = vmatprep.subr.bf16.mxu0 0
        %4081 = vmatpush1.bf16.msra.mxu0 %v3796
        %4082 = vmatprep.subr.bf16.mxu0 0
        %4083 = vmatpush1.bf16.msra.mxu0 %v3797
        %4084 = vmatprep.subr.bf16.mxu0 0
        %4085 = vmatpush1.bf16.msra.mxu0 %v3798
        %4086 = vmatprep.subr.bf16.mxu0 0
        %4087 = vmatpush1.bf16.msra.mxu0 %v3799
        %4088 = vmatprep.mubr.bf16.mxu0 %v3141
        %4089 = vmatmul.mubr.bf16.gmra.mrb[0].mxu0 %v3140
        %v4090 = vpop.f32.mrb[0].mxu0
        %v4091 = vadd.f32 %v4051, %v4090
        %v4092 = vpop.f32.mrb[0].mxu0
        %v4093 = vpop.f32.mrb[0].mxu0
        %v4094 = vpop.f32.mrb[0].mxu0
        %4095 = vdwg.mxu0
        %4096 = vmatprep.subr.bf16.mxu0 0
        %4097 = vmatpush1.bf16.msra.mxu0 %v3800
        %4098 = vmatprep.subr.bf16.mxu0 0
        %4099 = vmatpush1.bf16.msra.mxu0 %v3801
        %4100 = vmatprep.subr.bf16.mxu0 0
        %4101 = vmatpush1.bf16.msra.mxu0 %v3802
        %4102 = vmatprep.subr.bf16.mxu0 0
        %4103 = vmatpush1.bf16.msra.mxu0 %v3803
        %4104 = vmatprep.subr.bf16.mxu0 0
        %4105 = vmatpush1.bf16.msra.mxu0 %v3804
        %4106 = vmatprep.subr.bf16.mxu0 0
        %4107 = vmatpush1.bf16.msra.mxu0 %v3805
        %4108 = vmatprep.subr.bf16.mxu0 0
        %4109 = vmatpush1.bf16.msra.mxu0 %v3806
        %4110 = vmatprep.subr.bf16.mxu0 0
        %4111 = vmatpush1.bf16.msra.mxu0 %v3807
        %4112 = vmatprep.subr.bf16.mxu0 0
        %4113 = vmatpush1.bf16.msra.mxu0 %v3808
        %4114 = vmatprep.subr.bf16.mxu0 0
        %4115 = vmatpush1.bf16.msra.mxu0 %v3809
        %4116 = vmatprep.subr.bf16.mxu0 0
        %4117 = vmatpush1.bf16.msra.mxu0 %v3810
        %4118 = vmatprep.subr.bf16.mxu0 0
        %4119 = vmatpush1.bf16.msra.mxu0 %v3811
        %4120 = vmatprep.subr.bf16.mxu0 0
        %4121 = vmatpush1.bf16.msra.mxu0 %v3812
        %4122 = vmatprep.subr.bf16.mxu0 0
        %4123 = vmatpush1.bf16.msra.mxu0 %v3813
        %4124 = vmatprep.subr.bf16.mxu0 0
        %4125 = vmatpush1.bf16.msra.mxu0 %v3814
        %4126 = vmatprep.subr.bf16.mxu0 0
        %4127 = vmatpush1.bf16.msra.mxu0 %v3815
        %4128 = vmatprep.mubr.bf16.mxu0 %v3143
        %4129 = vmatmul.mubr.bf16.gmra.mrb[0].mxu0 %v3142
        %v4130 = vpop.f32.mrb[0].mxu0
        %v4131 = vadd.f32 %v4091, %v4130
        %v4132 = vpop.f32.mrb[0].mxu0
        %v4133 = vpop.f32.mrb[0].mxu0
        %v4134 = vpop.f32.mrb[0].mxu0
        %4135 = vdwg.mxu0
        %4136 = vmatprep.subr.bf16.mxu0 0
        %4137 = vmatpush1.bf16.msra.mxu0 %v3816
        %4138 = vmatprep.subr.bf16.mxu0 0
        %4139 = vmatpush1.bf16.msra.mxu0 %v3817
        %4140 = vmatprep.subr.bf16.mxu0 0
        %4141 = vmatpush1.bf16.msra.mxu0 %v3818
        %4142 = vmatprep.subr.bf16.mxu0 0
        %4143 = vmatpush1.bf16.msra.mxu0 %v3819
        %4144 = vmatprep.subr.bf16.mxu0 0
        %4145 = vmatpush1.bf16.msra.mxu0 %v3820
        %4146 = vmatprep.subr.bf16.mxu0 0
        %4147 = vmatpush1.bf16.msra.mxu0 %v3821
        %4148 = vmatprep.subr.bf16.mxu0 0
        %4149 = vmatpush1.bf16.msra.mxu0 %v3822
        %4150 = vmatprep.subr.bf16.mxu0 0
        %4151 = vmatpush1.bf16.msra.mxu0 %v3823
        %4152 = vmatprep.subr.bf16.mxu0 0
        %4153 = vmatpush1.bf16.msra.mxu0 %v3824
        %4154 = vmatprep.subr.bf16.mxu0 0
        %4155 = vmatpush1.bf16.msra.mxu0 %v3825
        %4156 = vmatprep.subr.bf16.mxu0 0
        %4157 = vmatpush1.bf16.msra.mxu0 %v3826
        %4158 = vmatprep.subr.bf16.mxu0 0
        %4159 = vmatpush1.bf16.msra.mxu0 %v3827
        %4160 = vmatprep.subr.bf16.mxu0 0
        %4161 = vmatpush1.bf16.msra.mxu0 %v3828
        %4162 = vmatprep.subr.bf16.mxu0 0
        %4163 = vmatpush1.bf16.msra.mxu0 %v3829
        %4164 = vmatprep.subr.bf16.mxu0 0
        %4165 = vmatpush1.bf16.msra.mxu0 %v3830
        %4166 = vmatprep.subr.bf16.mxu0 0
        %4167 = vmatpush1.bf16.msra.mxu0 %v3831
        %4168 = vmatprep.mubr.bf16.mxu0 %v3145
        %4169 = vmatmul.mubr.bf16.gmra.mrb[0].mxu0 %v3144
        %v4170 = vpop.f32.mrb[0].mxu0
        %v4171 = vadd.f32 %v4131, %v4170
        %v4172 = vpop.f32.mrb[0].mxu0
        %v4173 = vpop.f32.mrb[0].mxu0
        %v4174 = vpop.f32.mrb[0].mxu0
        %4175 = vdwg.mxu0
        %4176 = vmatprep.subr.bf16.mxu0 0
        %4177 = vmatpush1.bf16.msra.mxu0 %v3832
        %4178 = vmatprep.subr.bf16.mxu0 0
        %4179 = vmatpush1.bf16.msra.mxu0 %v3833
        %4180 = vmatprep.subr.bf16.mxu0 0
        %4181 = vmatpush1.bf16.msra.mxu0 0
        %4182 = vmatprep.subr.bf16.mxu0 0
        %4183 = vmatpush1.bf16.msra.mxu0 0
        %4184 = vmatprep.subr.bf16.mxu0 0
        %4185 = vmatpush1.bf16.msra.mxu0 0
        %4186 = vmatprep.subr.bf16.mxu0 0
        %4187 = vmatpush1.bf16.msra.mxu0 0
        %4188 = vmatprep.subr.bf16.mxu0 0
        %4189 = vmatpush1.bf16.msra.mxu0 0
        %4190 = vmatprep.subr.bf16.mxu0 0
        %4191 = vmatpush1.bf16.msra.mxu0 0
        %4192 = vmatprep.subr.bf16.mxu0 0
        %4193 = vmatpush1.bf16.msra.mxu0 0
        %4194 = vmatprep.subr.bf16.mxu0 0
        %4195 = vmatpush1.bf16.msra.mxu0 0
        %4196 = vmatprep.subr.bf16.mxu0 0
        %4197 = vmatpush1.bf16.msra.mxu0 0
        %4198 = vmatprep.subr.bf16.mxu0 0
        %4199 = vmatpush1.bf16.msra.mxu0 0
        %4200 = vmatprep.subr.bf16.mxu0 0
        %4201 = vmatpush1.bf16.msra.mxu0 0
        %4202 = vmatprep.subr.bf16.mxu0 0
        %4203 = vmatpush1.bf16.msra.mxu0 0
        %4204 = vmatprep.subr.bf16.mxu0 0
        %4205 = vmatpush1.bf16.msra.mxu0 0
        %4206 = vmatprep.subr.bf16.mxu0 0
        %4207 = vmatpush1.bf16.msra.mxu0 0
        %4208 = vmatprep.mubr.bf16.mxu0 0
        %4209 = vmatmul.mubr.bf16.gmra.mrb[0].mxu0 %v3934
        %v4210 = vpop.f32.mrb[0].mxu0
        %v4211 = vadd.f32 %v4171, %v4210
        %v4212 = vpop.f32.mrb[0].mxu0
        %v4213 = vpop.f32.mrb[0].mxu0
        %v4214 = vpop.f32.mrb[0].mxu0
        %4215 = vdwg.mxu0
        %4216 = vst [vmem:[%s270] sm:$0x1] %v4211
        %s4217 = sand.u32 %s181, 1
        %s4218 = scalar_lea.sflag [#allocation6], %s4217
        %s4219 = sand.u32 %s181, 1
        %s4220 = scalar_lea.vmem [#allocation5], %s4219
        // Predicated region
        $region49: #{encoder_forward.1} parent=47 // pred_check
          %p4221 = pneg %p191
        $region50: #{encoder_forward.1} parent=47 // pred_check_branch
          %4223 = sbr.rel (%p4221) target = $region52
        $region51: #{encoder_forward.1} parent=47 // pred_region
          %s4225 = ssub.s32 16, 16
          %4226 = vsyncadd %s4218, %s4225
          %s4227 = smul.addr %s21, 16
          %s4228 = scalar_lea.hbm %s7, %s4227
          %s4230 = sshll.u32 %s4220, 4
          %s4231 = int_to_ptr.vmem [resolvable:$true] %s4230
          %4233 = dma.vmem_to_hbm [thread:$0]  %s4231, 16, %s4228, %s4218
        $region52: #{encoder_forward.1} parent=47 // pred_fallthru
          _
      $region48: #{encoder_forward.1} parent=5 // pred_fallthru
        _
      %p4234 = scmp.le.s32.totalorder 2, %s16
      // Predicated region
      $region53: #{encoder_forward.1} parent=5 // pred_check
        %p4235 = pneg %p4234
      $region54: #{encoder_forward.1} parent=5 // pred_check_branch
        %4237 = sbr.rel (%p4235) target = $region56
      $region55: #{encoder_forward.1} parent=5 // pred_region
        %s4238 = ssub.s32 %s16, 2
        // Predicated region
        $region57: #{encoder_forward.1} parent=55 // pred_check
          %p4239 = pneg %p197
        $region58: #{encoder_forward.1} parent=55 // pred_check_branch
          %4241 = sbr.rel (%p4239) target = $region60
        $region59: #{encoder_forward.1} parent=55 // pred_region
          %s4242 = sand.u32 %s182, 1
          %s4243 = scalar_lea.sflag [#allocation6], %s4242
          %s4244 = sand.u32 %s182, 1
          %s4245 = scalar_lea.vmem [#allocation5], %s4244
          %4246 = dma.done %s4243, 16
        $region60: #{encoder_forward.1} parent=55 // pred_fallthru
          _
      $region56: #{encoder_forward.1} parent=5 // pred_fallthru
        _
    $region6: #{encoder_forward.1} parent=1 // loop_footer
      %s20 = sadd.s32 1, %s16
    $region7: #{encoder_forward.1} parent=1 // loop_footer_branch
      %15 = sbr.rel target = $region3
    $region8: #{encoder_forward.1} parent=1 // loop_exit
      _
    %4247 = vsyncpa [#allocation6], 1
    %s4248 = scalar_lea.sflag [#allocation6], 1
    %4249 = vsyncpa %s4248, 1

</llo_original>
